<compile_context>
chip_gen: v7x
topology: tpu7x:2x2x1
jax: 0.10.0
libtpu: 0.0.40
codegen_flags: <defaults>
</compile_context>

<pallas_src>
import math

import numpy as np
import jax
import jax.numpy as jnp
from jax import lax
from jax.experimental import pallas as pl
from jax.experimental.pallas import tpu as pltpu  # noqa: F401  (TPU backend)

# ---------------------------------------------------------------------------
# Small, module-consistent configuration
# ---------------------------------------------------------------------------
B = 2                  # batch
L = 8                  # max sequence length
VOCAB = 100            # stand-in vocab for the BERT embedding lookup
WORD_DIM = 32          # opt.word_dim (BERT hidden size stand-in)
EMBED = 32             # opt.embed_size
H = EMBED // 2         # GRU hidden per direction (bidirectional)
D_H = WORD_DIM // 2    # PIE attention hidden
N_HEAD = 1             # opt.num_embeds (single embedding -> squeeze path)
LN_EPS = 1e-5
NEG_INF = -1e30        # finite "masked" value (NaN-safe vs. -inf)


# ---------------------------------------------------------------------------
# Fused kernel: bidirectional packed GRU -> PIENet attention pooling ->
#               gated residual -> layer-norm -> l2norm
# ---------------------------------------------------------------------------
def encoder_text_kernel(x_ref, len_ref,
                        wih_ref, bih_ref,
                        whh_f_ref, bhh_f_ref, whh_b_ref, bhh_b_ref,
                        w1_ref, w2_ref, fcw_ref, fcb_ref,
                        gamma_ref, beta_ref,
                        out_ref, attn_ref, res_ref):
    Bc, Lc, Dc = x_ref.shape
    Hc = whh_f_ref.shape[0]          # whh is (H, 3H) pre-transposed

    x = x_ref[...]                   # (B, L, D)
    lens = len_ref[...]              # (B, 1) int32

    # Hoist all weight/bias reads out of the recurrence (read once).
    whh_f = whh_f_ref[...]
    bhh_f = bhh_f_ref[...]
    whh_b = whh_b_ref[...]
    bhh_b = bhh_b_ref[...]

    # ---- GRU input projection hoisted out of the recurrence ---------------
    # One (B*L, D) @ (D, 6H) matmul covers both directions for all timesteps;
    # only the tiny gh = h @ whh matmul remains on the serial chain.
    x2 = x.reshape(Bc * Lc, Dc)                                   # (B*L, D)
    gi_all = (jnp.dot(x2, wih_ref[...], preferred_element_type=jnp.float32)
              + bih_ref[...])                                     # (B*L, 6H)
    gi_all = gi_all.reshape(Bc, Lc, 6 * Hc)                       # (B, L, 6H)

    def cell(gi, h, whh, bhh):
        gh = jnp.dot(h, whh, preferred_element_type=jnp.float32) + bhh
        r = jax.nn.sigmoid(gi[:, 0 * Hc:1 * Hc] + gh[:, 0 * Hc:1 * Hc])
        z = jax.nn.sigmoid(gi[:, 1 * Hc:2 * Hc] + gh[:, 1 * Hc:2 * Hc])
        n = jnp.tanh(gi[:, 2 * Hc:3 * Hc] + r * gh[:, 2 * Hc:3 * Hc])
        return (1.0 - z) * n + z * h

    h_f = jnp.zeros((Bc, Hc), jnp.float32)
    h_b = jnp.zeros((Bc, Hc), jnp.float32)
    # Fully unrolled (L static & small); fwd/bwd interleaved so the two
    # independent recurrences overlap on MXU / EUP.
    for t in range(Lc):
        tb = Lc - 1 - t
        gi_f = gi_all[:, t, 0:3 * Hc]                             # (B, 3H)
        gi_b = gi_all[:, tb, 3 * Hc:6 * Hc]                       # (B, 3H)
        hn_f = cell(gi_f, h_f, whh_f, bhh_f)
        hn_b = cell(gi_b, h_b, whh_b, bhh_b)
        # packed-sequence semantics: padded steps leave h unchanged (h0 == 0)
        h_f = jnp.where(t < lens, hn_f, h_f)
        h_b = jnp.where(tb < lens, hn_b, h_b)

    rnn_out = jnp.concatenate([h_f, h_b], axis=-1)                # (B, EMBED)

    # ---- PIENet single-head self-attention ---------------------------------
    hid = jnp.tanh(jnp.dot(x2, w1_ref[...],
                           preferred_element_type=jnp.float32))   # (B*L, D_H)
    # N=1-output matmul replaced by VPU multiply + lane reduction.
    logits = jnp.sum(hid.reshape(Bc, Lc, -1) * w2_ref[...], axis=-1)  # (B, L)

    # pad mask (set_pad_to_one=True): positions >= length are masked out
    pos = lax.broadcasted_iota(jnp.int32, (Bc, Lc), 1)
    logits = jnp.where(pos >= lens, NEG_INF, logits)

    # softmax over the sequence axis
    m = jnp.max(logits, axis=-1, keepdims=True)
    e = jnp.exp(logits - m)
    attn = e / jnp.sum(e, axis=-1, keepdims=True)                 # (B, L)
    attn_ref[...] = attn

    # pooled = attn^T @ x   (small batched MXU matmul, n_head == 1 -> squeeze)
    pooled = jnp.einsum('bql,bld->bqd', attn.reshape(Bc, 1, Lc), x,
                        preferred_element_type=jnp.float32).reshape(Bc, Dc)

    # residual = sigmoid(fc(pooled))
    res = jax.nn.sigmoid(
        jnp.dot(pooled, fcw_ref[...], preferred_element_type=jnp.float32)
        + fcb_ref[...])
    res_ref[...] = res

    # layer_norm(rnn_out + residual)
    o = rnn_out + res
    mu = jnp.mean(o, axis=-1, keepdims=True)
    var = jnp.mean((o - mu) ** 2, axis=-1, keepdims=True)
    o = (o - mu) * lax.rsqrt(var + LN_EPS) * gamma_ref[...] + beta_ref[...]

    # l2norm
    nrm = jnp.sqrt(jnp.sum(o * o, axis=-1, keepdims=True))
    out_ref[...] = o / nrm


# ---------------------------------------------------------------------------
# Parameter construction (deterministic)
# ---------------------------------------------------------------------------
def make_params(key):
    keys = jax.random.split(key, 12)

    def uniform(k, shape, bound):
        return jax.random.uniform(k, shape, jnp.float32, -bound, bound)

    def xavier_t(k, fan_out, fan_in):
        # torch xavier_uniform_ on weight (fan_out, fan_in); stored transposed.
        bound = math.sqrt(6.0 / (fan_in + fan_out))
        return uniform(k, (fan_out, fan_in), bound).T

    kgru = 1.0 / math.sqrt(H)
    wih_f = uniform(keys[1], (3 * H, WORD_DIM), kgru).T   # (D, 3H)
    whh_f = uniform(keys[2], (3 * H, H), kgru).T          # (H, 3H)
    bih_f = uniform(keys[3], (1, 3 * H), kgru)
    bhh_f = uniform(keys[4], (1, 3 * H), kgru)
    wih_b = uniform(keys[5], (3 * H, WORD_DIM), kgru).T
    whh_b = uniform(keys[6], (3 * H, H), kgru).T
    bih_b = uniform(keys[7], (1, 3 * H), kgru)
    bhh_b = uniform(keys[8], (1, 3 * H), kgru)

    w2_bound = math.sqrt(6.0 / (D_H + N_HEAD))

    params = dict(
        emb_table=0.02 * jax.random.normal(keys[0], (VOCAB, WORD_DIM), jnp.float32),
        # per-direction GRU weights (used by the pure-JAX reference)
        wih_f=wih_f, whh_f=whh_f, bih_f=bih_f, bhh_f=bhh_f,
        wih_b=wih_b, whh_b=whh_b, bih_b=bih_b, bhh_b=bhh_b,
        # fused forms consumed by the Pallas kernel (built once, not per call)
        wih_all=jnp.concatenate([wih_f, wih_b], axis=1),   # (D, 6H)
        bih_all=jnp.concatenate([bih_f, bih_b], axis=1),   # (1, 6H)
        # PIENet: attention (w1: D->D_H, w2 row: (1, D_H)), fc: D->EMBED
        w1=xavier_t(keys[9], D_H, WORD_DIM),
        w2=uniform(keys[10], (N_HEAD, D_H), w2_bound),     # row form
        fcw=xavier_t(keys[11], EMBED, WORD_DIM),
        fcb=jnp.zeros((1, EMBED), jnp.float32),
        ln_gamma=jnp.ones((1, EMBED), jnp.float32),
        ln_beta=jnp.zeros((1, EMBED), jnp.float32),
    )
    return params


# ---------------------------------------------------------------------------
# Forward wrapper (embedding lookup in plain JAX, everything else fused Pallas)
# ---------------------------------------------------------------------------
def encoder_text_forward(params, token_ids, lengths):
    # --- BERT stand-in: deterministic embedding lookup (glue) ---
    wemb = jnp.take(params["emb_table"], token_ids, axis=0)      # (B, L, D) f32
    lens2d = lengths.astype(jnp.int32).reshape(B, 1)

    out, attn2d, residual = pl.pallas_call(
        encoder_text_kernel,
        out_shape=(
            jax.ShapeDtypeStruct((B, EMBED), jnp.float32),
            jax.ShapeDtypeStruct((B, L), jnp.float32),
            jax.ShapeDtypeStruct((B, EMBED), jnp.float32),
        ),
    )(wemb, lens2d,
      params["wih_all"], params["bih_all"],
      params["whh_f"], params["bhh_f"], params["whh_b"], params["bhh_b"],
      params["w1"], params["w2"], params["fcw"], params["fcb"],
      params["ln_gamma"], params["ln_beta"])

    attn = attn2d[:, :, None]                                    # (B, L, n_head=1)
    # opt.order is unset -> self.abs == False, so no torch.abs here.
    return out, attn, residual


# ---------------------------------------------------------------------------
# Pure-JAX reference for a correctness sanity check
# ---------------------------------------------------------------------------
def reference_forward(params, token_ids, lengths):
    wemb = jnp.take(params["emb_table"], token_ids, axis=0)
    lens = lengths.astype(jnp.int32)

    def cell(x_t, h, wih, whh, bih, bhh):
        gi = x_t @ wih + bih
        gh = h @ whh + bhh
        r = jax.nn.sigmoid(gi[:, :H] + gh[:, :H])
        z = jax.nn.sigmoid(gi[:, H:2 * H] + gh[:, H:2 * H])
        n = jnp.tanh(gi[:, 2 * H:] + r * gh[:, 2 * H:])
        return (1.0 - z) * n + z * h

    h_f = jnp.zeros((B, H), jnp.float32)
    for t in range(L):
        hn = cell(wemb[:, t], h_f, params["wih_f"], params["whh_f"],
                  params["bih_f"], params["bhh_f"])
        h_f = jnp.where((t < lens)[:, None], hn, h_f)
    h_b = jnp.zeros((B, H), jnp.float32)
    for t in range(L - 1, -1, -1):
        hn = cell(wemb[:, t], h_b, params["wih_b"], params["whh_b"],
                  params["bih_b"], params["bhh_b"])
        h_b = jnp.where((t < lens)[:, None], hn, h_b)
    rnn_out = jnp.concatenate([h_f, h_b], axis=-1)

    hid = jnp.tanh(wemb @ params["w1"])
    logits = jnp.sum(hid * params["w2"], axis=-1)                # (B, L)
    pad = jnp.arange(L)[None, :] >= lens[:, None]
    logits = jnp.where(pad, -jnp.inf, logits)
    attn = jax.nn.softmax(logits, axis=-1)
    pooled = jnp.sum(attn[:, :, None] * wemb, axis=1)
    res = jax.nn.sigmoid(pooled @ params["fcw"] + params["fcb"])
    o = rnn_out + res
    mu = jnp.mean(o, axis=-1, keepdims=True)
    var = jnp.mean((o - mu) ** 2, axis=-1, keepdims=True)
    o = (o - mu) / jnp.sqrt(var + LN_EPS) * params["ln_gamma"] + params["ln_beta"]
    o = o / jnp.sqrt(jnp.sum(o * o, axis=-1, keepdims=True))
    return o, attn[:, :, None], res


# ---------------------------------------------------------------------------
if __name__ == "__main__":
    key = jax.random.PRNGKey(0)
    kp, kx = jax.random.split(key)
    params = make_params(kp)

    token_ids = jax.random.randint(kx, (B, L), 0, VOCAB, dtype=jnp.int32)
    lengths = jnp.array([L, 5], dtype=jnp.int32)     # variable lengths <= L

    out, attn, residual = encoder_text_forward(params, token_ids, lengths)
    out = jax.block_until_ready(out)
    attn = jax.block_until_ready(attn)
    residual = jax.block_until_ready(residual)

    out_r, attn_r, res_r = reference_forward(params, token_ids, lengths)
    assert np.allclose(np.asarray(out), np.asarray(out_r), atol=5e-2), "out mismatch"
    assert np.allclose(np.asarray(attn), np.asarray(attn_r), atol=5e-2), "attn mismatch"
    assert np.allclose(np.asarray(residual), np.asarray(res_r), atol=5e-2), "residual mismatch"

    print("KERNEL_OK")
</pallas_src>

<mosaic_0001>
module attributes {stable_mosaic.version = 11 : i64} {
  func.func @encoder_text_kernel(%arg0: memref<2x8x32xf32, #tpu.memory_space<vmem>>, %arg1: memref<2x1xi32, #tpu.memory_space<vmem>>, %arg2: memref<32x96xf32, #tpu.memory_space<vmem>>, %arg3: memref<1x96xf32, #tpu.memory_space<vmem>>, %arg4: memref<16x48xf32, #tpu.memory_space<vmem>>, %arg5: memref<1x48xf32, #tpu.memory_space<vmem>>, %arg6: memref<16x48xf32, #tpu.memory_space<vmem>>, %arg7: memref<1x48xf32, #tpu.memory_space<vmem>>, %arg8: memref<32x16xf32, #tpu.memory_space<vmem>>, %arg9: memref<1x16xf32, #tpu.memory_space<vmem>>, %arg10: memref<32x32xf32, #tpu.memory_space<vmem>>, %arg11: memref<1x32xf32, #tpu.memory_space<vmem>>, %arg12: memref<1x32xf32, #tpu.memory_space<vmem>>, %arg13: memref<1x32xf32, #tpu.memory_space<vmem>>, %arg14: memref<2x32xf32, #tpu.memory_space<vmem>>, %arg15: memref<2x8xf32, #tpu.memory_space<vmem>>, %arg16: memref<2x32xf32, #tpu.memory_space<vmem>>) attributes {dimension_semantics = [], scalar_prefetch = 0 : i64, scratch_operands = 0 : i64, tpu.core_type = #tpu.core_type<tc>} {
    %c0 = arith.constant 0 : index
    %c0_0 = arith.constant 0 : index
    %c0_1 = arith.constant 0 : index
    %0 = vector.load %arg0[%c0, %c0_0, %c0_1] : memref<2x8x32xf32, #tpu.memory_space<vmem>>, vector<2x8x32xf32>
    %c0_2 = arith.constant 0 : index
    %c0_3 = arith.constant 0 : index
    %1 = vector.load %arg1[%c0_2, %c0_3] : memref<2x1xi32, #tpu.memory_space<vmem>>, vector<2x1xi32>
    %c0_4 = arith.constant 0 : index
    %c0_5 = arith.constant 0 : index
    %2 = vector.load %arg4[%c0_4, %c0_5] : memref<16x48xf32, #tpu.memory_space<vmem>>, vector<16x48xf32>
    %c0_6 = arith.constant 0 : index
    %c0_7 = arith.constant 0 : index
    %3 = vector.load %arg5[%c0_6, %c0_7] : memref<1x48xf32, #tpu.memory_space<vmem>>, vector<1x48xf32>
    %c0_8 = arith.constant 0 : index
    %c0_9 = arith.constant 0 : index
    %4 = vector.load %arg6[%c0_8, %c0_9] : memref<16x48xf32, #tpu.memory_space<vmem>>, vector<16x48xf32>
    %c0_10 = arith.constant 0 : index
    %c0_11 = arith.constant 0 : index
    %5 = vector.load %arg7[%c0_10, %c0_11] : memref<1x48xf32, #tpu.memory_space<vmem>>, vector<1x48xf32>
    %6 = vector.shape_cast %0 : vector<2x8x32xf32> to vector<16x32xf32>
    %c0_12 = arith.constant 0 : index
    %c0_13 = arith.constant 0 : index
    %7 = vector.load %arg2[%c0_12, %c0_13] : memref<32x96xf32, #tpu.memory_space<vmem>>, vector<32x96xf32>
    %cst = arith.constant dense<0.000000e+00> : vector<16x96xf32>
    %8 = tpu.matmul %6, %7, %cst {dimension_numbers = #tpu.dot_dimension_numbers<[1], [0], [0], [1], [0, 0, 1, 1], [], []>} : vector<16x32xf32>, vector<32x96xf32>, vector<16x96xf32> -> vector<16x96xf32>
    %c0_14 = arith.constant 0 : index
    %c0_15 = arith.constant 0 : index
    %9 = vector.load %arg3[%c0_14, %c0_15] : memref<1x96xf32, #tpu.memory_space<vmem>>, vector<1x96xf32>
    %10 = vector.broadcast %9 : vector<1x96xf32> to vector<16x96xf32>
    %11 = arith.addf %8, %10 : vector<16x96xf32>
    %12 = vector.shape_cast %11 : vector<16x96xf32> to vector<2x8x96xf32>
    %cst_16 = arith.constant 0.000000e+00 : f32
    %13 = vector.broadcast %cst_16 : f32 to vector<2x16xf32>
    %cst_17 = arith.constant 0.000000e+00 : f32
    %14 = vector.broadcast %cst_17 : f32 to vector<2x16xf32>
    %15 = vector.extract_strided_slice %12 {offsets = [0, 0, 0], sizes = [2, 1, 48], strides = [1, 1, 1]} : vector<2x8x96xf32> to vector<2x1x48xf32>
    %16 = vector.shape_cast %15 : vector<2x1x48xf32> to vector<2x48xf32>
    %17 = vector.extract_strided_slice %12 {offsets = [0, 7, 48], sizes = [2, 1, 48], strides = [1, 1, 1]} : vector<2x8x96xf32> to vector<2x1x48xf32>
    %18 = vector.shape_cast %17 : vector<2x1x48xf32> to vector<2x48xf32>
    %cst_18 = arith.constant dense<0.000000e+00> : vector<2x48xf32>
    %19 = tpu.matmul %13, %2, %cst_18 {dimension_numbers = #tpu.dot_dimension_numbers<[1], [0], [0], [1], [0, 0, 1, 1], [], []>} : vector<2x16xf32>, vector<16x48xf32>, vector<2x48xf32> -> vector<2x48xf32>
    %20 = vector.broadcast %3 : vector<1x48xf32> to vector<2x48xf32>
    %21 = arith.addf %19, %20 : vector<2x48xf32>
    %22 = vector.extract_strided_slice %16 {offsets = [0, 0], sizes = [2, 16], strides = [1, 1]} : vector<2x48xf32> to vector<2x16xf32>
    %23 = vector.extract_strided_slice %21 {offsets = [0, 0], sizes = [2, 16], strides = [1, 1]} : vector<2x48xf32> to vector<2x16xf32>
    %24 = arith.addf %22, %23 : vector<2x16xf32>
    %25 = arith.negf %24 : vector<2x16xf32>
    %26 = math.exp %25 : vector<2x16xf32>
    %cst_19 = arith.constant 1.000000e+00 : f32
    %27 = vector.broadcast %cst_19 : f32 to vector<2x16xf32>
    %28 = arith.addf %27, %26 : vector<2x16xf32>
    %29 = arith.divf %27, %28 : vector<2x16xf32>
    %30 = vector.extract_strided_slice %16 {offsets = [0, 16], sizes = [2, 16], strides = [1, 1]} : vector<2x48xf32> to vector<2x16xf32>
    %31 = vector.extract_strided_slice %21 {offsets = [0, 16], sizes = [2, 16], strides = [1, 1]} : vector<2x48xf32> to vector<2x16xf32>
    %32 = arith.addf %30, %31 : vector<2x16xf32>
    %33 = arith.negf %32 : vector<2x16xf32>
    %34 = math.exp %33 : vector<2x16xf32>
    %cst_20 = arith.constant 1.000000e+00 : f32
    %35 = vector.broadcast %cst_20 : f32 to vector<2x16xf32>
    %36 = arith.addf %35, %34 : vector<2x16xf32>
    %37 = arith.divf %35, %36 : vector<2x16xf32>
    %38 = vector.extract_strided_slice %16 {offsets = [0, 32], sizes = [2, 16], strides = [1, 1]} : vector<2x48xf32> to vector<2x16xf32>
    %39 = vector.extract_strided_slice %21 {offsets = [0, 32], sizes = [2, 16], strides = [1, 1]} : vector<2x48xf32> to vector<2x16xf32>
    %40 = arith.mulf %29, %39 : vector<2x16xf32>
    %41 = arith.addf %38, %40 : vector<2x16xf32>
    %42 = math.tanh %41 : vector<2x16xf32>
    %cst_21 = arith.constant 1.000000e+00 : f32
    %43 = vector.broadcast %cst_21 : f32 to vector<2x16xf32>
    %44 = arith.subf %43, %37 : vector<2x16xf32>
    %45 = arith.mulf %44, %42 : vector<2x16xf32>
    %46 = arith.mulf %37, %13 : vector<2x16xf32>
    %47 = arith.addf %45, %46 : vector<2x16xf32>
    %cst_22 = arith.constant dense<0.000000e+00> : vector<2x48xf32>
    %48 = tpu.matmul %14, %4, %cst_22 {dimension_numbers = #tpu.dot_dimension_numbers<[1], [0], [0], [1], [0, 0, 1, 1], [], []>} : vector<2x16xf32>, vector<16x48xf32>, vector<2x48xf32> -> vector<2x48xf32>
    %49 = vector.broadcast %5 : vector<1x48xf32> to vector<2x48xf32>
    %50 = arith.addf %48, %49 : vector<2x48xf32>
    %51 = vector.extract_strided_slice %18 {offsets = [0, 0], sizes = [2, 16], strides = [1, 1]} : vector<2x48xf32> to vector<2x16xf32>
    %52 = vector.extract_strided_slice %50 {offsets = [0, 0], sizes = [2, 16], strides = [1, 1]} : vector<2x48xf32> to vector<2x16xf32>
    %53 = arith.addf %51, %52 : vector<2x16xf32>
    %54 = arith.negf %53 : vector<2x16xf32>
    %55 = math.exp %54 : vector<2x16xf32>
    %cst_23 = arith.constant 1.000000e+00 : f32
    %56 = vector.broadcast %cst_23 : f32 to vector<2x16xf32>
    %57 = arith.addf %56, %55 : vector<2x16xf32>
    %58 = arith.divf %56, %57 : vector<2x16xf32>
    %59 = vector.extract_strided_slice %18 {offsets = [0, 16], sizes = [2, 16], strides = [1, 1]} : vector<2x48xf32> to vector<2x16xf32>
    %60 = vector.extract_strided_slice %50 {offsets = [0, 16], sizes = [2, 16], strides = [1, 1]} : vector<2x48xf32> to vector<2x16xf32>
    %61 = arith.addf %59, %60 : vector<2x16xf32>
    %62 = arith.negf %61 : vector<2x16xf32>
    %63 = math.exp %62 : vector<2x16xf32>
    %cst_24 = arith.constant 1.000000e+00 : f32
    %64 = vector.broadcast %cst_24 : f32 to vector<2x16xf32>
    %65 = arith.addf %64, %63 : vector<2x16xf32>
    %66 = arith.divf %64, %65 : vector<2x16xf32>
    %67 = vector.extract_strided_slice %18 {offsets = [0, 32], sizes = [2, 16], strides = [1, 1]} : vector<2x48xf32> to vector<2x16xf32>
    %68 = vector.extract_strided_slice %50 {offsets = [0, 32], sizes = [2, 16], strides = [1, 1]} : vector<2x48xf32> to vector<2x16xf32>
    %69 = arith.mulf %58, %68 : vector<2x16xf32>
    %70 = arith.addf %67, %69 : vector<2x16xf32>
    %71 = math.tanh %70 : vector<2x16xf32>
    %cst_25 = arith.constant 1.000000e+00 : f32
    %72 = vector.broadcast %cst_25 : f32 to vector<2x16xf32>
    %73 = arith.subf %72, %66 : vector<2x16xf32>
    %74 = arith.mulf %73, %71 : vector<2x16xf32>
    %75 = arith.mulf %66, %14 : vector<2x16xf32>
    %76 = arith.addf %74, %75 : vector<2x16xf32>
    %c0_i32 = arith.constant 0 : i32
    %77 = vector.broadcast %c0_i32 : i32 to vector<2x1xi32>
    %78 = arith.cmpi sgt, %1, %77 : vector<2x1xi32>
    %79 = vector.shape_cast %78 : vector<2x1xi1> to vector<2x1xi1>
    %80 = vector.broadcast %79 : vector<2x1xi1> to vector<2x16xi1>
    %81 = arith.select %80, %47, %13 : vector<2x16xi1>, vector<2x16xf32>
    %c7_i32 = arith.constant 7 : i32
    %82 = vector.broadcast %c7_i32 : i32 to vector<2x1xi32>
    %83 = arith.cmpi sgt, %1, %82 : vector<2x1xi32>
    %84 = vector.shape_cast %83 : vector<2x1xi1> to vector<2x1xi1>
    %85 = vector.broadcast %84 : vector<2x1xi1> to vector<2x16xi1>
    %86 = arith.select %85, %76, %14 : vector<2x16xi1>, vector<2x16xf32>
    %87 = vector.extract_strided_slice %12 {offsets = [0, 1, 0], sizes = [2, 1, 48], strides = [1, 1, 1]} : vector<2x8x96xf32> to vector<2x1x48xf32>
    %88 = vector.shape_cast %87 : vector<2x1x48xf32> to vector<2x48xf32>
    %89 = vector.extract_strided_slice %12 {offsets = [0, 6, 48], sizes = [2, 1, 48], strides = [1, 1, 1]} : vector<2x8x96xf32> to vector<2x1x48xf32>
    %90 = vector.shape_cast %89 : vector<2x1x48xf32> to vector<2x48xf32>
    %cst_26 = arith.constant dense<0.000000e+00> : vector<2x48xf32>
    %91 = tpu.matmul %81, %2, %cst_26 {dimension_numbers = #tpu.dot_dimension_numbers<[1], [0], [0], [1], [0, 0, 1, 1], [], []>} : vector<2x16xf32>, vector<16x48xf32>, vector<2x48xf32> -> vector<2x48xf32>
    %92 = vector.broadcast %3 : vector<1x48xf32> to vector<2x48xf32>
    %93 = arith.addf %91, %92 : vector<2x48xf32>
    %94 = vector.extract_strided_slice %88 {offsets = [0, 0], sizes = [2, 16], strides = [1, 1]} : vector<2x48xf32> to vector<2x16xf32>
    %95 = vector.extract_strided_slice %93 {offsets = [0, 0], sizes = [2, 16], strides = [1, 1]} : vector<2x48xf32> to vector<2x16xf32>
    %96 = arith.addf %94, %95 : vector<2x16xf32>
    %97 = arith.negf %96 : vector<2x16xf32>
    %98 = math.exp %97 : vector<2x16xf32>
    %cst_27 = arith.constant 1.000000e+00 : f32
    %99 = vector.broadcast %cst_27 : f32 to vector<2x16xf32>
    %100 = arith.addf %99, %98 : vector<2x16xf32>
    %101 = arith.divf %99, %100 : vector<2x16xf32>
    %102 = vector.extract_strided_slice %88 {offsets = [0, 16], sizes = [2, 16], strides = [1, 1]} : vector<2x48xf32> to vector<2x16xf32>
    %103 = vector.extract_strided_slice %93 {offsets = [0, 16], sizes = [2, 16], strides = [1, 1]} : vector<2x48xf32> to vector<2x16xf32>
    %104 = arith.addf %102, %103 : vector<2x16xf32>
    %105 = arith.negf %104 : vector<2x16xf32>
    %106 = math.exp %105 : vector<2x16xf32>
    %cst_28 = arith.constant 1.000000e+00 : f32
    %107 = vector.broadcast %cst_28 : f32 to vector<2x16xf32>
    %108 = arith.addf %107, %106 : vector<2x16xf32>
    %109 = arith.divf %107, %108 : vector<2x16xf32>
    %110 = vector.extract_strided_slice %88 {offsets = [0, 32], sizes = [2, 16], strides = [1, 1]} : vector<2x48xf32> to vector<2x16xf32>
    %111 = vector.extract_strided_slice %93 {offsets = [0, 32], sizes = [2, 16], strides = [1, 1]} : vector<2x48xf32> to vector<2x16xf32>
    %112 = arith.mulf %101, %111 : vector<2x16xf32>
    %113 = arith.addf %110, %112 : vector<2x16xf32>
    %114 = math.tanh %113 : vector<2x16xf32>
    %cst_29 = arith.constant 1.000000e+00 : f32
    %115 = vector.broadcast %cst_29 : f32 to vector<2x16xf32>
    %116 = arith.subf %115, %109 : vector<2x16xf32>
    %117 = arith.mulf %116, %114 : vector<2x16xf32>
    %118 = arith.mulf %109, %81 : vector<2x16xf32>
    %119 = arith.addf %117, %118 : vector<2x16xf32>
    %cst_30 = arith.constant dense<0.000000e+00> : vector<2x48xf32>
    %120 = tpu.matmul %86, %4, %cst_30 {dimension_numbers = #tpu.dot_dimension_numbers<[1], [0], [0], [1], [0, 0, 1, 1], [], []>} : vector<2x16xf32>, vector<16x48xf32>, vector<2x48xf32> -> vector<2x48xf32>
    %121 = vector.broadcast %5 : vector<1x48xf32> to vector<2x48xf32>
    %122 = arith.addf %120, %121 : vector<2x48xf32>
    %123 = vector.extract_strided_slice %90 {offsets = [0, 0], sizes = [2, 16], strides = [1, 1]} : vector<2x48xf32> to vector<2x16xf32>
    %124 = vector.extract_strided_slice %122 {offsets = [0, 0], sizes = [2, 16], strides = [1, 1]} : vector<2x48xf32> to vector<2x16xf32>
    %125 = arith.addf %123, %124 : vector<2x16xf32>
    %126 = arith.negf %125 : vector<2x16xf32>
    %127 = math.exp %126 : vector<2x16xf32>
    %cst_31 = arith.constant 1.000000e+00 : f32
    %128 = vector.broadcast %cst_31 : f32 to vector<2x16xf32>
    %129 = arith.addf %128, %127 : vector<2x16xf32>
    %130 = arith.divf %128, %129 : vector<2x16xf32>
    %131 = vector.extract_strided_slice %90 {offsets = [0, 16], sizes = [2, 16], strides = [1, 1]} : vector<2x48xf32> to vector<2x16xf32>
    %132 = vector.extract_strided_slice %122 {offsets = [0, 16], sizes = [2, 16], strides = [1, 1]} : vector<2x48xf32> to vector<2x16xf32>
    %133 = arith.addf %131, %132 : vector<2x16xf32>
    %134 = arith.negf %133 : vector<2x16xf32>
    %135 = math.exp %134 : vector<2x16xf32>
    %cst_32 = arith.constant 1.000000e+00 : f32
    %136 = vector.broadcast %cst_32 : f32 to vector<2x16xf32>
    %137 = arith.addf %136, %135 : vector<2x16xf32>
    %138 = arith.divf %136, %137 : vector<2x16xf32>
    %139 = vector.extract_strided_slice %90 {offsets = [0, 32], sizes = [2, 16], strides = [1, 1]} : vector<2x48xf32> to vector<2x16xf32>
    %140 = vector.extract_strided_slice %122 {offsets = [0, 32], sizes = [2, 16], strides = [1, 1]} : vector<2x48xf32> to vector<2x16xf32>
    %141 = arith.mulf %130, %140 : vector<2x16xf32>
    %142 = arith.addf %139, %141 : vector<2x16xf32>
    %143 = math.tanh %142 : vector<2x16xf32>
    %cst_33 = arith.constant 1.000000e+00 : f32
    %144 = vector.broadcast %cst_33 : f32 to vector<2x16xf32>
    %145 = arith.subf %144, %138 : vector<2x16xf32>
    %146 = arith.mulf %145, %143 : vector<2x16xf32>
    %147 = arith.mulf %138, %86 : vector<2x16xf32>
    %148 = arith.addf %146, %147 : vector<2x16xf32>
    %c1_i32 = arith.constant 1 : i32
    %149 = vector.broadcast %c1_i32 : i32 to vector<2x1xi32>
    %150 = arith.cmpi sgt, %1, %149 : vector<2x1xi32>
    %151 = vector.shape_cast %150 : vector<2x1xi1> to vector<2x1xi1>
    %152 = vector.broadcast %151 : vector<2x1xi1> to vector<2x16xi1>
    %153 = arith.select %152, %119, %81 : vector<2x16xi1>, vector<2x16xf32>
    %c6_i32 = arith.constant 6 : i32
    %154 = vector.broadcast %c6_i32 : i32 to vector<2x1xi32>
    %155 = arith.cmpi sgt, %1, %154 : vector<2x1xi32>
    %156 = vector.shape_cast %155 : vector<2x1xi1> to vector<2x1xi1>
    %157 = vector.broadcast %156 : vector<2x1xi1> to vector<2x16xi1>
    %158 = arith.select %157, %148, %86 : vector<2x16xi1>, vector<2x16xf32>
    %159 = vector.extract_strided_slice %12 {offsets = [0, 2, 0], sizes = [2, 1, 48], strides = [1, 1, 1]} : vector<2x8x96xf32> to vector<2x1x48xf32>
    %160 = vector.shape_cast %159 : vector<2x1x48xf32> to vector<2x48xf32>
    %161 = vector.extract_strided_slice %12 {offsets = [0, 5, 48], sizes = [2, 1, 48], strides = [1, 1, 1]} : vector<2x8x96xf32> to vector<2x1x48xf32>
    %162 = vector.shape_cast %161 : vector<2x1x48xf32> to vector<2x48xf32>
    %cst_34 = arith.constant dense<0.000000e+00> : vector<2x48xf32>
    %163 = tpu.matmul %153, %2, %cst_34 {dimension_numbers = #tpu.dot_dimension_numbers<[1], [0], [0], [1], [0, 0, 1, 1], [], []>} : vector<2x16xf32>, vector<16x48xf32>, vector<2x48xf32> -> vector<2x48xf32>
    %164 = vector.broadcast %3 : vector<1x48xf32> to vector<2x48xf32>
    %165 = arith.addf %163, %164 : vector<2x48xf32>
    %166 = vector.extract_strided_slice %160 {offsets = [0, 0], sizes = [2, 16], strides = [1, 1]} : vector<2x48xf32> to vector<2x16xf32>
    %167 = vector.extract_strided_slice %165 {offsets = [0, 0], sizes = [2, 16], strides = [1, 1]} : vector<2x48xf32> to vector<2x16xf32>
    %168 = arith.addf %166, %167 : vector<2x16xf32>
    %169 = arith.negf %168 : vector<2x16xf32>
    %170 = math.exp %169 : vector<2x16xf32>
    %cst_35 = arith.constant 1.000000e+00 : f32
    %171 = vector.broadcast %cst_35 : f32 to vector<2x16xf32>
    %172 = arith.addf %171, %170 : vector<2x16xf32>
    %173 = arith.divf %171, %172 : vector<2x16xf32>
    %174 = vector.extract_strided_slice %160 {offsets = [0, 16], sizes = [2, 16], strides = [1, 1]} : vector<2x48xf32> to vector<2x16xf32>
    %175 = vector.extract_strided_slice %165 {offsets = [0, 16], sizes = [2, 16], strides = [1, 1]} : vector<2x48xf32> to vector<2x16xf32>
    %176 = arith.addf %174, %175 : vector<2x16xf32>
    %177 = arith.negf %176 : vector<2x16xf32>
    %178 = math.exp %177 : vector<2x16xf32>
    %cst_36 = arith.constant 1.000000e+00 : f32
    %179 = vector.broadcast %cst_36 : f32 to vector<2x16xf32>
    %180 = arith.addf %179, %178 : vector<2x16xf32>
    %181 = arith.divf %179, %180 : vector<2x16xf32>
    %182 = vector.extract_strided_slice %160 {offsets = [0, 32], sizes = [2, 16], strides = [1, 1]} : vector<2x48xf32> to vector<2x16xf32>
    %183 = vector.extract_strided_slice %165 {offsets = [0, 32], sizes = [2, 16], strides = [1, 1]} : vector<2x48xf32> to vector<2x16xf32>
    %184 = arith.mulf %173, %183 : vector<2x16xf32>
    %185 = arith.addf %182, %184 : vector<2x16xf32>
    %186 = math.tanh %185 : vector<2x16xf32>
    %cst_37 = arith.constant 1.000000e+00 : f32
    %187 = vector.broadcast %cst_37 : f32 to vector<2x16xf32>
    %188 = arith.subf %187, %181 : vector<2x16xf32>
    %189 = arith.mulf %188, %186 : vector<2x16xf32>
    %190 = arith.mulf %181, %153 : vector<2x16xf32>
    %191 = arith.addf %189, %190 : vector<2x16xf32>
    %cst_38 = arith.constant dense<0.000000e+00> : vector<2x48xf32>
    %192 = tpu.matmul %158, %4, %cst_38 {dimension_numbers = #tpu.dot_dimension_numbers<[1], [0], [0], [1], [0, 0, 1, 1], [], []>} : vector<2x16xf32>, vector<16x48xf32>, vector<2x48xf32> -> vector<2x48xf32>
    %193 = vector.broadcast %5 : vector<1x48xf32> to vector<2x48xf32>
    %194 = arith.addf %192, %193 : vector<2x48xf32>
    %195 = vector.extract_strided_slice %162 {offsets = [0, 0], sizes = [2, 16], strides = [1, 1]} : vector<2x48xf32> to vector<2x16xf32>
    %196 = vector.extract_strided_slice %194 {offsets = [0, 0], sizes = [2, 16], strides = [1, 1]} : vector<2x48xf32> to vector<2x16xf32>
    %197 = arith.addf %195, %196 : vector<2x16xf32>
    %198 = arith.negf %197 : vector<2x16xf32>
    %199 = math.exp %198 : vector<2x16xf32>
    %cst_39 = arith.constant 1.000000e+00 : f32
    %200 = vector.broadcast %cst_39 : f32 to vector<2x16xf32>
    %201 = arith.addf %200, %199 : vector<2x16xf32>
    %202 = arith.divf %200, %201 : vector<2x16xf32>
    %203 = vector.extract_strided_slice %162 {offsets = [0, 16], sizes = [2, 16], strides = [1, 1]} : vector<2x48xf32> to vector<2x16xf32>
    %204 = vector.extract_strided_slice %194 {offsets = [0, 16], sizes = [2, 16], strides = [1, 1]} : vector<2x48xf32> to vector<2x16xf32>
    %205 = arith.addf %203, %204 : vector<2x16xf32>
    %206 = arith.negf %205 : vector<2x16xf32>
    %207 = math.exp %206 : vector<2x16xf32>
    %cst_40 = arith.constant 1.000000e+00 : f32
    %208 = vector.broadcast %cst_40 : f32 to vector<2x16xf32>
    %209 = arith.addf %208, %207 : vector<2x16xf32>
    %210 = arith.divf %208, %209 : vector<2x16xf32>
    %211 = vector.extract_strided_slice %162 {offsets = [0, 32], sizes = [2, 16], strides = [1, 1]} : vector<2x48xf32> to vector<2x16xf32>
    %212 = vector.extract_strided_slice %194 {offsets = [0, 32], sizes = [2, 16], strides = [1, 1]} : vector<2x48xf32> to vector<2x16xf32>
    %213 = arith.mulf %202, %212 : vector<2x16xf32>
    %214 = arith.addf %211, %213 : vector<2x16xf32>
    %215 = math.tanh %214 : vector<2x16xf32>
    %cst_41 = arith.constant 1.000000e+00 : f32
    %216 = vector.broadcast %cst_41 : f32 to vector<2x16xf32>
    %217 = arith.subf %216, %210 : vector<2x16xf32>
    %218 = arith.mulf %217, %215 : vector<2x16xf32>
    %219 = arith.mulf %210, %158 : vector<2x16xf32>
    %220 = arith.addf %218, %219 : vector<2x16xf32>
    %c2_i32 = arith.constant 2 : i32
    %221 = vector.broadcast %c2_i32 : i32 to vector<2x1xi32>
    %222 = arith.cmpi sgt, %1, %221 : vector<2x1xi32>
    %223 = vector.shape_cast %222 : vector<2x1xi1> to vector<2x1xi1>
    %224 = vector.broadcast %223 : vector<2x1xi1> to vector<2x16xi1>
    %225 = arith.select %224, %191, %153 : vector<2x16xi1>, vector<2x16xf32>
    %c5_i32 = arith.constant 5 : i32
    %226 = vector.broadcast %c5_i32 : i32 to vector<2x1xi32>
    %227 = arith.cmpi sgt, %1, %226 : vector<2x1xi32>
    %228 = vector.shape_cast %227 : vector<2x1xi1> to vector<2x1xi1>
    %229 = vector.broadcast %228 : vector<2x1xi1> to vector<2x16xi1>
    %230 = arith.select %229, %220, %158 : vector<2x16xi1>, vector<2x16xf32>
    %231 = vector.extract_strided_slice %12 {offsets = [0, 3, 0], sizes = [2, 1, 48], strides = [1, 1, 1]} : vector<2x8x96xf32> to vector<2x1x48xf32>
    %232 = vector.shape_cast %231 : vector<2x1x48xf32> to vector<2x48xf32>
    %233 = vector.extract_strided_slice %12 {offsets = [0, 4, 48], sizes = [2, 1, 48], strides = [1, 1, 1]} : vector<2x8x96xf32> to vector<2x1x48xf32>
    %234 = vector.shape_cast %233 : vector<2x1x48xf32> to vector<2x48xf32>
    %cst_42 = arith.constant dense<0.000000e+00> : vector<2x48xf32>
    %235 = tpu.matmul %225, %2, %cst_42 {dimension_numbers = #tpu.dot_dimension_numbers<[1], [0], [0], [1], [0, 0, 1, 1], [], []>} : vector<2x16xf32>, vector<16x48xf32>, vector<2x48xf32> -> vector<2x48xf32>
    %236 = vector.broadcast %3 : vector<1x48xf32> to vector<2x48xf32>
    %237 = arith.addf %235, %236 : vector<2x48xf32>
    %238 = vector.extract_strided_slice %232 {offsets = [0, 0], sizes = [2, 16], strides = [1, 1]} : vector<2x48xf32> to vector<2x16xf32>
    %239 = vector.extract_strided_slice %237 {offsets = [0, 0], sizes = [2, 16], strides = [1, 1]} : vector<2x48xf32> to vector<2x16xf32>
    %240 = arith.addf %238, %239 : vector<2x16xf32>
    %241 = arith.negf %240 : vector<2x16xf32>
    %242 = math.exp %241 : vector<2x16xf32>
    %cst_43 = arith.constant 1.000000e+00 : f32
    %243 = vector.broadcast %cst_43 : f32 to vector<2x16xf32>
    %244 = arith.addf %243, %242 : vector<2x16xf32>
    %245 = arith.divf %243, %244 : vector<2x16xf32>
    %246 = vector.extract_strided_slice %232 {offsets = [0, 16], sizes = [2, 16], strides = [1, 1]} : vector<2x48xf32> to vector<2x16xf32>
    %247 = vector.extract_strided_slice %237 {offsets = [0, 16], sizes = [2, 16], strides = [1, 1]} : vector<2x48xf32> to vector<2x16xf32>
    %248 = arith.addf %246, %247 : vector<2x16xf32>
    %249 = arith.negf %248 : vector<2x16xf32>
    %250 = math.exp %249 : vector<2x16xf32>
    %cst_44 = arith.constant 1.000000e+00 : f32
    %251 = vector.broadcast %cst_44 : f32 to vector<2x16xf32>
    %252 = arith.addf %251, %250 : vector<2x16xf32>
    %253 = arith.divf %251, %252 : vector<2x16xf32>
    %254 = vector.extract_strided_slice %232 {offsets = [0, 32], sizes = [2, 16], strides = [1, 1]} : vector<2x48xf32> to vector<2x16xf32>
    %255 = vector.extract_strided_slice %237 {offsets = [0, 32], sizes = [2, 16], strides = [1, 1]} : vector<2x48xf32> to vector<2x16xf32>
    %256 = arith.mulf %245, %255 : vector<2x16xf32>
    %257 = arith.addf %254, %256 : vector<2x16xf32>
    %258 = math.tanh %257 : vector<2x16xf32>
    %cst_45 = arith.constant 1.000000e+00 : f32
    %259 = vector.broadcast %cst_45 : f32 to vector<2x16xf32>
    %260 = arith.subf %259, %253 : vector<2x16xf32>
    %261 = arith.mulf %260, %258 : vector<2x16xf32>
    %262 = arith.mulf %253, %225 : vector<2x16xf32>
    %263 = arith.addf %261, %262 : vector<2x16xf32>
    %cst_46 = arith.constant dense<0.000000e+00> : vector<2x48xf32>
    %264 = tpu.matmul %230, %4, %cst_46 {dimension_numbers = #tpu.dot_dimension_numbers<[1], [0], [0], [1], [0, 0, 1, 1], [], []>} : vector<2x16xf32>, vector<16x48xf32>, vector<2x48xf32> -> vector<2x48xf32>
    %265 = vector.broadcast %5 : vector<1x48xf32> to vector<2x48xf32>
    %266 = arith.addf %264, %265 : vector<2x48xf32>
    %267 = vector.extract_strided_slice %234 {offsets = [0, 0], sizes = [2, 16], strides = [1, 1]} : vector<2x48xf32> to vector<2x16xf32>
    %268 = vector.extract_strided_slice %266 {offsets = [0, 0], sizes = [2, 16], strides = [1, 1]} : vector<2x48xf32> to vector<2x16xf32>
    %269 = arith.addf %267, %268 : vector<2x16xf32>
    %270 = arith.negf %269 : vector<2x16xf32>
    %271 = math.exp %270 : vector<2x16xf32>
    %cst_47 = arith.constant 1.000000e+00 : f32
    %272 = vector.broadcast %cst_47 : f32 to vector<2x16xf32>
    %273 = arith.addf %272, %271 : vector<2x16xf32>
    %274 = arith.divf %272, %273 : vector<2x16xf32>
    %275 = vector.extract_strided_slice %234 {offsets = [0, 16], sizes = [2, 16], strides = [1, 1]} : vector<2x48xf32> to vector<2x16xf32>
    %276 = vector.extract_strided_slice %266 {offsets = [0, 16], sizes = [2, 16], strides = [1, 1]} : vector<2x48xf32> to vector<2x16xf32>
    %277 = arith.addf %275, %276 : vector<2x16xf32>
    %278 = arith.negf %277 : vector<2x16xf32>
    %279 = math.exp %278 : vector<2x16xf32>
    %cst_48 = arith.constant 1.000000e+00 : f32
    %280 = vector.broadcast %cst_48 : f32 to vector<2x16xf32>
    %281 = arith.addf %280, %279 : vector<2x16xf32>
    %282 = arith.divf %280, %281 : vector<2x16xf32>
    %283 = vector.extract_strided_slice %234 {offsets = [0, 32], sizes = [2, 16], strides = [1, 1]} : vector<2x48xf32> to vector<2x16xf32>
    %284 = vector.extract_strided_slice %266 {offsets = [0, 32], sizes = [2, 16], strides = [1, 1]} : vector<2x48xf32> to vector<2x16xf32>
    %285 = arith.mulf %274, %284 : vector<2x16xf32>
    %286 = arith.addf %283, %285 : vector<2x16xf32>
    %287 = math.tanh %286 : vector<2x16xf32>
    %cst_49 = arith.constant 1.000000e+00 : f32
    %288 = vector.broadcast %cst_49 : f32 to vector<2x16xf32>
    %289 = arith.subf %288, %282 : vector<2x16xf32>
    %290 = arith.mulf %289, %287 : vector<2x16xf32>
    %291 = arith.mulf %282, %230 : vector<2x16xf32>
    %292 = arith.addf %290, %291 : vector<2x16xf32>
    %c3_i32 = arith.constant 3 : i32
    %293 = vector.broadcast %c3_i32 : i32 to vector<2x1xi32>
    %294 = arith.cmpi sgt, %1, %293 : vector<2x1xi32>
    %295 = vector.shape_cast %294 : vector<2x1xi1> to vector<2x1xi1>
    %296 = vector.broadcast %295 : vector<2x1xi1> to vector<2x16xi1>
    %297 = arith.select %296, %263, %225 : vector<2x16xi1>, vector<2x16xf32>
    %c4_i32 = arith.constant 4 : i32
    %298 = vector.broadcast %c4_i32 : i32 to vector<2x1xi32>
    %299 = arith.cmpi sgt, %1, %298 : vector<2x1xi32>
    %300 = vector.shape_cast %299 : vector<2x1xi1> to vector<2x1xi1>
    %301 = vector.broadcast %300 : vector<2x1xi1> to vector<2x16xi1>
    %302 = arith.select %301, %292, %230 : vector<2x16xi1>, vector<2x16xf32>
    %303 = vector.extract_strided_slice %12 {offsets = [0, 4, 0], sizes = [2, 1, 48], strides = [1, 1, 1]} : vector<2x8x96xf32> to vector<2x1x48xf32>
    %304 = vector.shape_cast %303 : vector<2x1x48xf32> to vector<2x48xf32>
    %305 = vector.extract_strided_slice %12 {offsets = [0, 3, 48], sizes = [2, 1, 48], strides = [1, 1, 1]} : vector<2x8x96xf32> to vector<2x1x48xf32>
    %306 = vector.shape_cast %305 : vector<2x1x48xf32> to vector<2x48xf32>
    %cst_50 = arith.constant dense<0.000000e+00> : vector<2x48xf32>
    %307 = tpu.matmul %297, %2, %cst_50 {dimension_numbers = #tpu.dot_dimension_numbers<[1], [0], [0], [1], [0, 0, 1, 1], [], []>} : vector<2x16xf32>, vector<16x48xf32>, vector<2x48xf32> -> vector<2x48xf32>
    %308 = vector.broadcast %3 : vector<1x48xf32> to vector<2x48xf32>
    %309 = arith.addf %307, %308 : vector<2x48xf32>
    %310 = vector.extract_strided_slice %304 {offsets = [0, 0], sizes = [2, 16], strides = [1, 1]} : vector<2x48xf32> to vector<2x16xf32>
    %311 = vector.extract_strided_slice %309 {offsets = [0, 0], sizes = [2, 16], strides = [1, 1]} : vector<2x48xf32> to vector<2x16xf32>
    %312 = arith.addf %310, %311 : vector<2x16xf32>
    %313 = arith.negf %312 : vector<2x16xf32>
    %314 = math.exp %313 : vector<2x16xf32>
    %cst_51 = arith.constant 1.000000e+00 : f32
    %315 = vector.broadcast %cst_51 : f32 to vector<2x16xf32>
    %316 = arith.addf %315, %314 : vector<2x16xf32>
    %317 = arith.divf %315, %316 : vector<2x16xf32>
    %318 = vector.extract_strided_slice %304 {offsets = [0, 16], sizes = [2, 16], strides = [1, 1]} : vector<2x48xf32> to vector<2x16xf32>
    %319 = vector.extract_strided_slice %309 {offsets = [0, 16], sizes = [2, 16], strides = [1, 1]} : vector<2x48xf32> to vector<2x16xf32>
    %320 = arith.addf %318, %319 : vector<2x16xf32>
    %321 = arith.negf %320 : vector<2x16xf32>
    %322 = math.exp %321 : vector<2x16xf32>
    %cst_52 = arith.constant 1.000000e+00 : f32
    %323 = vector.broadcast %cst_52 : f32 to vector<2x16xf32>
    %324 = arith.addf %323, %322 : vector<2x16xf32>
    %325 = arith.divf %323, %324 : vector<2x16xf32>
    %326 = vector.extract_strided_slice %304 {offsets = [0, 32], sizes = [2, 16], strides = [1, 1]} : vector<2x48xf32> to vector<2x16xf32>
    %327 = vector.extract_strided_slice %309 {offsets = [0, 32], sizes = [2, 16], strides = [1, 1]} : vector<2x48xf32> to vector<2x16xf32>
    %328 = arith.mulf %317, %327 : vector<2x16xf32>
    %329 = arith.addf %326, %328 : vector<2x16xf32>
    %330 = math.tanh %329 : vector<2x16xf32>
    %cst_53 = arith.constant 1.000000e+00 : f32
    %331 = vector.broadcast %cst_53 : f32 to vector<2x16xf32>
    %332 = arith.subf %331, %325 : vector<2x16xf32>
    %333 = arith.mulf %332, %330 : vector<2x16xf32>
    %334 = arith.mulf %325, %297 : vector<2x16xf32>
    %335 = arith.addf %333, %334 : vector<2x16xf32>
    %cst_54 = arith.constant dense<0.000000e+00> : vector<2x48xf32>
    %336 = tpu.matmul %302, %4, %cst_54 {dimension_numbers = #tpu.dot_dimension_numbers<[1], [0], [0], [1], [0, 0, 1, 1], [], []>} : vector<2x16xf32>, vector<16x48xf32>, vector<2x48xf32> -> vector<2x48xf32>
    %337 = vector.broadcast %5 : vector<1x48xf32> to vector<2x48xf32>
    %338 = arith.addf %336, %337 : vector<2x48xf32>
    %339 = vector.extract_strided_slice %306 {offsets = [0, 0], sizes = [2, 16], strides = [1, 1]} : vector<2x48xf32> to vector<2x16xf32>
    %340 = vector.extract_strided_slice %338 {offsets = [0, 0], sizes = [2, 16], strides = [1, 1]} : vector<2x48xf32> to vector<2x16xf32>
    %341 = arith.addf %339, %340 : vector<2x16xf32>
    %342 = arith.negf %341 : vector<2x16xf32>
    %343 = math.exp %342 : vector<2x16xf32>
    %cst_55 = arith.constant 1.000000e+00 : f32
    %344 = vector.broadcast %cst_55 : f32 to vector<2x16xf32>
    %345 = arith.addf %344, %343 : vector<2x16xf32>
    %346 = arith.divf %344, %345 : vector<2x16xf32>
    %347 = vector.extract_strided_slice %306 {offsets = [0, 16], sizes = [2, 16], strides = [1, 1]} : vector<2x48xf32> to vector<2x16xf32>
    %348 = vector.extract_strided_slice %338 {offsets = [0, 16], sizes = [2, 16], strides = [1, 1]} : vector<2x48xf32> to vector<2x16xf32>
    %349 = arith.addf %347, %348 : vector<2x16xf32>
    %350 = arith.negf %349 : vector<2x16xf32>
    %351 = math.exp %350 : vector<2x16xf32>
    %cst_56 = arith.constant 1.000000e+00 : f32
    %352 = vector.broadcast %cst_56 : f32 to vector<2x16xf32>
    %353 = arith.addf %352, %351 : vector<2x16xf32>
    %354 = arith.divf %352, %353 : vector<2x16xf32>
    %355 = vector.extract_strided_slice %306 {offsets = [0, 32], sizes = [2, 16], strides = [1, 1]} : vector<2x48xf32> to vector<2x16xf32>
    %356 = vector.extract_strided_slice %338 {offsets = [0, 32], sizes = [2, 16], strides = [1, 1]} : vector<2x48xf32> to vector<2x16xf32>
    %357 = arith.mulf %346, %356 : vector<2x16xf32>
    %358 = arith.addf %355, %357 : vector<2x16xf32>
    %359 = math.tanh %358 : vector<2x16xf32>
    %cst_57 = arith.constant 1.000000e+00 : f32
    %360 = vector.broadcast %cst_57 : f32 to vector<2x16xf32>
    %361 = arith.subf %360, %354 : vector<2x16xf32>
    %362 = arith.mulf %361, %359 : vector<2x16xf32>
    %363 = arith.mulf %354, %302 : vector<2x16xf32>
    %364 = arith.addf %362, %363 : vector<2x16xf32>
    %c4_i32_58 = arith.constant 4 : i32
    %365 = vector.broadcast %c4_i32_58 : i32 to vector<2x1xi32>
    %366 = arith.cmpi sgt, %1, %365 : vector<2x1xi32>
    %367 = vector.shape_cast %366 : vector<2x1xi1> to vector<2x1xi1>
    %368 = vector.broadcast %367 : vector<2x1xi1> to vector<2x16xi1>
    %369 = arith.select %368, %335, %297 : vector<2x16xi1>, vector<2x16xf32>
    %c3_i32_59 = arith.constant 3 : i32
    %370 = vector.broadcast %c3_i32_59 : i32 to vector<2x1xi32>
    %371 = arith.cmpi sgt, %1, %370 : vector<2x1xi32>
    %372 = vector.shape_cast %371 : vector<2x1xi1> to vector<2x1xi1>
    %373 = vector.broadcast %372 : vector<2x1xi1> to vector<2x16xi1>
    %374 = arith.select %373, %364, %302 : vector<2x16xi1>, vector<2x16xf32>
    %375 = vector.extract_strided_slice %12 {offsets = [0, 5, 0], sizes = [2, 1, 48], strides = [1, 1, 1]} : vector<2x8x96xf32> to vector<2x1x48xf32>
    %376 = vector.shape_cast %375 : vector<2x1x48xf32> to vector<2x48xf32>
    %377 = vector.extract_strided_slice %12 {offsets = [0, 2, 48], sizes = [2, 1, 48], strides = [1, 1, 1]} : vector<2x8x96xf32> to vector<2x1x48xf32>
    %378 = vector.shape_cast %377 : vector<2x1x48xf32> to vector<2x48xf32>
    %cst_60 = arith.constant dense<0.000000e+00> : vector<2x48xf32>
    %379 = tpu.matmul %369, %2, %cst_60 {dimension_numbers = #tpu.dot_dimension_numbers<[1], [0], [0], [1], [0, 0, 1, 1], [], []>} : vector<2x16xf32>, vector<16x48xf32>, vector<2x48xf32> -> vector<2x48xf32>
    %380 = vector.broadcast %3 : vector<1x48xf32> to vector<2x48xf32>
    %381 = arith.addf %379, %380 : vector<2x48xf32>
    %382 = vector.extract_strided_slice %376 {offsets = [0, 0], sizes = [2, 16], strides = [1, 1]} : vector<2x48xf32> to vector<2x16xf32>
    %383 = vector.extract_strided_slice %381 {offsets = [0, 0], sizes = [2, 16], strides = [1, 1]} : vector<2x48xf32> to vector<2x16xf32>
    %384 = arith.addf %382, %383 : vector<2x16xf32>
    %385 = arith.negf %384 : vector<2x16xf32>
    %386 = math.exp %385 : vector<2x16xf32>
    %cst_61 = arith.constant 1.000000e+00 : f32
    %387 = vector.broadcast %cst_61 : f32 to vector<2x16xf32>
    %388 = arith.addf %387, %386 : vector<2x16xf32>
    %389 = arith.divf %387, %388 : vector<2x16xf32>
    %390 = vector.extract_strided_slice %376 {offsets = [0, 16], sizes = [2, 16], strides = [1, 1]} : vector<2x48xf32> to vector<2x16xf32>
    %391 = vector.extract_strided_slice %381 {offsets = [0, 16], sizes = [2, 16], strides = [1, 1]} : vector<2x48xf32> to vector<2x16xf32>
    %392 = arith.addf %390, %391 : vector<2x16xf32>
    %393 = arith.negf %392 : vector<2x16xf32>
    %394 = math.exp %393 : vector<2x16xf32>
    %cst_62 = arith.constant 1.000000e+00 : f32
    %395 = vector.broadcast %cst_62 : f32 to vector<2x16xf32>
    %396 = arith.addf %395, %394 : vector<2x16xf32>
    %397 = arith.divf %395, %396 : vector<2x16xf32>
    %398 = vector.extract_strided_slice %376 {offsets = [0, 32], sizes = [2, 16], strides = [1, 1]} : vector<2x48xf32> to vector<2x16xf32>
    %399 = vector.extract_strided_slice %381 {offsets = [0, 32], sizes = [2, 16], strides = [1, 1]} : vector<2x48xf32> to vector<2x16xf32>
    %400 = arith.mulf %389, %399 : vector<2x16xf32>
    %401 = arith.addf %398, %400 : vector<2x16xf32>
    %402 = math.tanh %401 : vector<2x16xf32>
    %cst_63 = arith.constant 1.000000e+00 : f32
    %403 = vector.broadcast %cst_63 : f32 to vector<2x16xf32>
    %404 = arith.subf %403, %397 : vector<2x16xf32>
    %405 = arith.mulf %404, %402 : vector<2x16xf32>
    %406 = arith.mulf %397, %369 : vector<2x16xf32>
    %407 = arith.addf %405, %406 : vector<2x16xf32>
    %cst_64 = arith.constant dense<0.000000e+00> : vector<2x48xf32>
    %408 = tpu.matmul %374, %4, %cst_64 {dimension_numbers = #tpu.dot_dimension_numbers<[1], [0], [0], [1], [0, 0, 1, 1], [], []>} : vector<2x16xf32>, vector<16x48xf32>, vector<2x48xf32> -> vector<2x48xf32>
    %409 = vector.broadcast %5 : vector<1x48xf32> to vector<2x48xf32>
    %410 = arith.addf %408, %409 : vector<2x48xf32>
    %411 = vector.extract_strided_slice %378 {offsets = [0, 0], sizes = [2, 16], strides = [1, 1]} : vector<2x48xf32> to vector<2x16xf32>
    %412 = vector.extract_strided_slice %410 {offsets = [0, 0], sizes = [2, 16], strides = [1, 1]} : vector<2x48xf32> to vector<2x16xf32>
    %413 = arith.addf %411, %412 : vector<2x16xf32>
    %414 = arith.negf %413 : vector<2x16xf32>
    %415 = math.exp %414 : vector<2x16xf32>
    %cst_65 = arith.constant 1.000000e+00 : f32
    %416 = vector.broadcast %cst_65 : f32 to vector<2x16xf32>
    %417 = arith.addf %416, %415 : vector<2x16xf32>
    %418 = arith.divf %416, %417 : vector<2x16xf32>
    %419 = vector.extract_strided_slice %378 {offsets = [0, 16], sizes = [2, 16], strides = [1, 1]} : vector<2x48xf32> to vector<2x16xf32>
    %420 = vector.extract_strided_slice %410 {offsets = [0, 16], sizes = [2, 16], strides = [1, 1]} : vector<2x48xf32> to vector<2x16xf32>
    %421 = arith.addf %419, %420 : vector<2x16xf32>
    %422 = arith.negf %421 : vector<2x16xf32>
    %423 = math.exp %422 : vector<2x16xf32>
    %cst_66 = arith.constant 1.000000e+00 : f32
    %424 = vector.broadcast %cst_66 : f32 to vector<2x16xf32>
    %425 = arith.addf %424, %423 : vector<2x16xf32>
    %426 = arith.divf %424, %425 : vector<2x16xf32>
    %427 = vector.extract_strided_slice %378 {offsets = [0, 32], sizes = [2, 16], strides = [1, 1]} : vector<2x48xf32> to vector<2x16xf32>
    %428 = vector.extract_strided_slice %410 {offsets = [0, 32], sizes = [2, 16], strides = [1, 1]} : vector<2x48xf32> to vector<2x16xf32>
    %429 = arith.mulf %418, %428 : vector<2x16xf32>
    %430 = arith.addf %427, %429 : vector<2x16xf32>
    %431 = math.tanh %430 : vector<2x16xf32>
    %cst_67 = arith.constant 1.000000e+00 : f32
    %432 = vector.broadcast %cst_67 : f32 to vector<2x16xf32>
    %433 = arith.subf %432, %426 : vector<2x16xf32>
    %434 = arith.mulf %433, %431 : vector<2x16xf32>
    %435 = arith.mulf %426, %374 : vector<2x16xf32>
    %436 = arith.addf %434, %435 : vector<2x16xf32>
    %c5_i32_68 = arith.constant 5 : i32
    %437 = vector.broadcast %c5_i32_68 : i32 to vector<2x1xi32>
    %438 = arith.cmpi sgt, %1, %437 : vector<2x1xi32>
    %439 = vector.shape_cast %438 : vector<2x1xi1> to vector<2x1xi1>
    %440 = vector.broadcast %439 : vector<2x1xi1> to vector<2x16xi1>
    %441 = arith.select %440, %407, %369 : vector<2x16xi1>, vector<2x16xf32>
    %c2_i32_69 = arith.constant 2 : i32
    %442 = vector.broadcast %c2_i32_69 : i32 to vector<2x1xi32>
    %443 = arith.cmpi sgt, %1, %442 : vector<2x1xi32>
    %444 = vector.shape_cast %443 : vector<2x1xi1> to vector<2x1xi1>
    %445 = vector.broadcast %444 : vector<2x1xi1> to vector<2x16xi1>
    %446 = arith.select %445, %436, %374 : vector<2x16xi1>, vector<2x16xf32>
    %447 = vector.extract_strided_slice %12 {offsets = [0, 6, 0], sizes = [2, 1, 48], strides = [1, 1, 1]} : vector<2x8x96xf32> to vector<2x1x48xf32>
    %448 = vector.shape_cast %447 : vector<2x1x48xf32> to vector<2x48xf32>
    %449 = vector.extract_strided_slice %12 {offsets = [0, 1, 48], sizes = [2, 1, 48], strides = [1, 1, 1]} : vector<2x8x96xf32> to vector<2x1x48xf32>
    %450 = vector.shape_cast %449 : vector<2x1x48xf32> to vector<2x48xf32>
    %cst_70 = arith.constant dense<0.000000e+00> : vector<2x48xf32>
    %451 = tpu.matmul %441, %2, %cst_70 {dimension_numbers = #tpu.dot_dimension_numbers<[1], [0], [0], [1], [0, 0, 1, 1], [], []>} : vector<2x16xf32>, vector<16x48xf32>, vector<2x48xf32> -> vector<2x48xf32>
    %452 = vector.broadcast %3 : vector<1x48xf32> to vector<2x48xf32>
    %453 = arith.addf %451, %452 : vector<2x48xf32>
    %454 = vector.extract_strided_slice %448 {offsets = [0, 0], sizes = [2, 16], strides = [1, 1]} : vector<2x48xf32> to vector<2x16xf32>
    %455 = vector.extract_strided_slice %453 {offsets = [0, 0], sizes = [2, 16], strides = [1, 1]} : vector<2x48xf32> to vector<2x16xf32>
    %456 = arith.addf %454, %455 : vector<2x16xf32>
    %457 = arith.negf %456 : vector<2x16xf32>
    %458 = math.exp %457 : vector<2x16xf32>
    %cst_71 = arith.constant 1.000000e+00 : f32
    %459 = vector.broadcast %cst_71 : f32 to vector<2x16xf32>
    %460 = arith.addf %459, %458 : vector<2x16xf32>
    %461 = arith.divf %459, %460 : vector<2x16xf32>
    %462 = vector.extract_strided_slice %448 {offsets = [0, 16], sizes = [2, 16], strides = [1, 1]} : vector<2x48xf32> to vector<2x16xf32>
    %463 = vector.extract_strided_slice %453 {offsets = [0, 16], sizes = [2, 16], strides = [1, 1]} : vector<2x48xf32> to vector<2x16xf32>
    %464 = arith.addf %462, %463 : vector<2x16xf32>
    %465 = arith.negf %464 : vector<2x16xf32>
    %466 = math.exp %465 : vector<2x16xf32>
    %cst_72 = arith.constant 1.000000e+00 : f32
    %467 = vector.broadcast %cst_72 : f32 to vector<2x16xf32>
    %468 = arith.addf %467, %466 : vector<2x16xf32>
    %469 = arith.divf %467, %468 : vector<2x16xf32>
    %470 = vector.extract_strided_slice %448 {offsets = [0, 32], sizes = [2, 16], strides = [1, 1]} : vector<2x48xf32> to vector<2x16xf32>
    %471 = vector.extract_strided_slice %453 {offsets = [0, 32], sizes = [2, 16], strides = [1, 1]} : vector<2x48xf32> to vector<2x16xf32>
    %472 = arith.mulf %461, %471 : vector<2x16xf32>
    %473 = arith.addf %470, %472 : vector<2x16xf32>
    %474 = math.tanh %473 : vector<2x16xf32>
    %cst_73 = arith.constant 1.000000e+00 : f32
    %475 = vector.broadcast %cst_73 : f32 to vector<2x16xf32>
    %476 = arith.subf %475, %469 : vector<2x16xf32>
    %477 = arith.mulf %476, %474 : vector<2x16xf32>
    %478 = arith.mulf %469, %441 : vector<2x16xf32>
    %479 = arith.addf %477, %478 : vector<2x16xf32>
    %cst_74 = arith.constant dense<0.000000e+00> : vector<2x48xf32>
    %480 = tpu.matmul %446, %4, %cst_74 {dimension_numbers = #tpu.dot_dimension_numbers<[1], [0], [0], [1], [0, 0, 1, 1], [], []>} : vector<2x16xf32>, vector<16x48xf32>, vector<2x48xf32> -> vector<2x48xf32>
    %481 = vector.broadcast %5 : vector<1x48xf32> to vector<2x48xf32>
    %482 = arith.addf %480, %481 : vector<2x48xf32>
    %483 = vector.extract_strided_slice %450 {offsets = [0, 0], sizes = [2, 16], strides = [1, 1]} : vector<2x48xf32> to vector<2x16xf32>
    %484 = vector.extract_strided_slice %482 {offsets = [0, 0], sizes = [2, 16], strides = [1, 1]} : vector<2x48xf32> to vector<2x16xf32>
    %485 = arith.addf %483, %484 : vector<2x16xf32>
    %486 = arith.negf %485 : vector<2x16xf32>
    %487 = math.exp %486 : vector<2x16xf32>
    %cst_75 = arith.constant 1.000000e+00 : f32
    %488 = vector.broadcast %cst_75 : f32 to vector<2x16xf32>
    %489 = arith.addf %488, %487 : vector<2x16xf32>
    %490 = arith.divf %488, %489 : vector<2x16xf32>
    %491 = vector.extract_strided_slice %450 {offsets = [0, 16], sizes = [2, 16], strides = [1, 1]} : vector<2x48xf32> to vector<2x16xf32>
    %492 = vector.extract_strided_slice %482 {offsets = [0, 16], sizes = [2, 16], strides = [1, 1]} : vector<2x48xf32> to vector<2x16xf32>
    %493 = arith.addf %491, %492 : vector<2x16xf32>
    %494 = arith.negf %493 : vector<2x16xf32>
    %495 = math.exp %494 : vector<2x16xf32>
    %cst_76 = arith.constant 1.000000e+00 : f32
    %496 = vector.broadcast %cst_76 : f32 to vector<2x16xf32>
    %497 = arith.addf %496, %495 : vector<2x16xf32>
    %498 = arith.divf %496, %497 : vector<2x16xf32>
    %499 = vector.extract_strided_slice %450 {offsets = [0, 32], sizes = [2, 16], strides = [1, 1]} : vector<2x48xf32> to vector<2x16xf32>
    %500 = vector.extract_strided_slice %482 {offsets = [0, 32], sizes = [2, 16], strides = [1, 1]} : vector<2x48xf32> to vector<2x16xf32>
    %501 = arith.mulf %490, %500 : vector<2x16xf32>
    %502 = arith.addf %499, %501 : vector<2x16xf32>
    %503 = math.tanh %502 : vector<2x16xf32>
    %cst_77 = arith.constant 1.000000e+00 : f32
    %504 = vector.broadcast %cst_77 : f32 to vector<2x16xf32>
    %505 = arith.subf %504, %498 : vector<2x16xf32>
    %506 = arith.mulf %505, %503 : vector<2x16xf32>
    %507 = arith.mulf %498, %446 : vector<2x16xf32>
    %508 = arith.addf %506, %507 : vector<2x16xf32>
    %c6_i32_78 = arith.constant 6 : i32
    %509 = vector.broadcast %c6_i32_78 : i32 to vector<2x1xi32>
    %510 = arith.cmpi sgt, %1, %509 : vector<2x1xi32>
    %511 = vector.shape_cast %510 : vector<2x1xi1> to vector<2x1xi1>
    %512 = vector.broadcast %511 : vector<2x1xi1> to vector<2x16xi1>
    %513 = arith.select %512, %479, %441 : vector<2x16xi1>, vector<2x16xf32>
    %c1_i32_79 = arith.constant 1 : i32
    %514 = vector.broadcast %c1_i32_79 : i32 to vector<2x1xi32>
    %515 = arith.cmpi sgt, %1, %514 : vector<2x1xi32>
    %516 = vector.shape_cast %515 : vector<2x1xi1> to vector<2x1xi1>
    %517 = vector.broadcast %516 : vector<2x1xi1> to vector<2x16xi1>
    %518 = arith.select %517, %508, %446 : vector<2x16xi1>, vector<2x16xf32>
    %519 = vector.extract_strided_slice %12 {offsets = [0, 7, 0], sizes = [2, 1, 48], strides = [1, 1, 1]} : vector<2x8x96xf32> to vector<2x1x48xf32>
    %520 = vector.shape_cast %519 : vector<2x1x48xf32> to vector<2x48xf32>
    %521 = vector.extract_strided_slice %12 {offsets = [0, 0, 48], sizes = [2, 1, 48], strides = [1, 1, 1]} : vector<2x8x96xf32> to vector<2x1x48xf32>
    %522 = vector.shape_cast %521 : vector<2x1x48xf32> to vector<2x48xf32>
    %cst_80 = arith.constant dense<0.000000e+00> : vector<2x48xf32>
    %523 = tpu.matmul %513, %2, %cst_80 {dimension_numbers = #tpu.dot_dimension_numbers<[1], [0], [0], [1], [0, 0, 1, 1], [], []>} : vector<2x16xf32>, vector<16x48xf32>, vector<2x48xf32> -> vector<2x48xf32>
    %524 = vector.broadcast %3 : vector<1x48xf32> to vector<2x48xf32>
    %525 = arith.addf %523, %524 : vector<2x48xf32>
    %526 = vector.extract_strided_slice %520 {offsets = [0, 0], sizes = [2, 16], strides = [1, 1]} : vector<2x48xf32> to vector<2x16xf32>
    %527 = vector.extract_strided_slice %525 {offsets = [0, 0], sizes = [2, 16], strides = [1, 1]} : vector<2x48xf32> to vector<2x16xf32>
    %528 = arith.addf %526, %527 : vector<2x16xf32>
    %529 = arith.negf %528 : vector<2x16xf32>
    %530 = math.exp %529 : vector<2x16xf32>
    %cst_81 = arith.constant 1.000000e+00 : f32
    %531 = vector.broadcast %cst_81 : f32 to vector<2x16xf32>
    %532 = arith.addf %531, %530 : vector<2x16xf32>
    %533 = arith.divf %531, %532 : vector<2x16xf32>
    %534 = vector.extract_strided_slice %520 {offsets = [0, 16], sizes = [2, 16], strides = [1, 1]} : vector<2x48xf32> to vector<2x16xf32>
    %535 = vector.extract_strided_slice %525 {offsets = [0, 16], sizes = [2, 16], strides = [1, 1]} : vector<2x48xf32> to vector<2x16xf32>
    %536 = arith.addf %534, %535 : vector<2x16xf32>
    %537 = arith.negf %536 : vector<2x16xf32>
    %538 = math.exp %537 : vector<2x16xf32>
    %cst_82 = arith.constant 1.000000e+00 : f32
    %539 = vector.broadcast %cst_82 : f32 to vector<2x16xf32>
    %540 = arith.addf %539, %538 : vector<2x16xf32>
    %541 = arith.divf %539, %540 : vector<2x16xf32>
    %542 = vector.extract_strided_slice %520 {offsets = [0, 32], sizes = [2, 16], strides = [1, 1]} : vector<2x48xf32> to vector<2x16xf32>
    %543 = vector.extract_strided_slice %525 {offsets = [0, 32], sizes = [2, 16], strides = [1, 1]} : vector<2x48xf32> to vector<2x16xf32>
    %544 = arith.mulf %533, %543 : vector<2x16xf32>
    %545 = arith.addf %542, %544 : vector<2x16xf32>
    %546 = math.tanh %545 : vector<2x16xf32>
    %cst_83 = arith.constant 1.000000e+00 : f32
    %547 = vector.broadcast %cst_83 : f32 to vector<2x16xf32>
    %548 = arith.subf %547, %541 : vector<2x16xf32>
    %549 = arith.mulf %548, %546 : vector<2x16xf32>
    %550 = arith.mulf %541, %513 : vector<2x16xf32>
    %551 = arith.addf %549, %550 : vector<2x16xf32>
    %cst_84 = arith.constant dense<0.000000e+00> : vector<2x48xf32>
    %552 = tpu.matmul %518, %4, %cst_84 {dimension_numbers = #tpu.dot_dimension_numbers<[1], [0], [0], [1], [0, 0, 1, 1], [], []>} : vector<2x16xf32>, vector<16x48xf32>, vector<2x48xf32> -> vector<2x48xf32>
    %553 = vector.broadcast %5 : vector<1x48xf32> to vector<2x48xf32>
    %554 = arith.addf %552, %553 : vector<2x48xf32>
    %555 = vector.extract_strided_slice %522 {offsets = [0, 0], sizes = [2, 16], strides = [1, 1]} : vector<2x48xf32> to vector<2x16xf32>
    %556 = vector.extract_strided_slice %554 {offsets = [0, 0], sizes = [2, 16], strides = [1, 1]} : vector<2x48xf32> to vector<2x16xf32>
    %557 = arith.addf %555, %556 : vector<2x16xf32>
    %558 = arith.negf %557 : vector<2x16xf32>
    %559 = math.exp %558 : vector<2x16xf32>
    %cst_85 = arith.constant 1.000000e+00 : f32
    %560 = vector.broadcast %cst_85 : f32 to vector<2x16xf32>
    %561 = arith.addf %560, %559 : vector<2x16xf32>
    %562 = arith.divf %560, %561 : vector<2x16xf32>
    %563 = vector.extract_strided_slice %522 {offsets = [0, 16], sizes = [2, 16], strides = [1, 1]} : vector<2x48xf32> to vector<2x16xf32>
    %564 = vector.extract_strided_slice %554 {offsets = [0, 16], sizes = [2, 16], strides = [1, 1]} : vector<2x48xf32> to vector<2x16xf32>
    %565 = arith.addf %563, %564 : vector<2x16xf32>
    %566 = arith.negf %565 : vector<2x16xf32>
    %567 = math.exp %566 : vector<2x16xf32>
    %cst_86 = arith.constant 1.000000e+00 : f32
    %568 = vector.broadcast %cst_86 : f32 to vector<2x16xf32>
    %569 = arith.addf %568, %567 : vector<2x16xf32>
    %570 = arith.divf %568, %569 : vector<2x16xf32>
    %571 = vector.extract_strided_slice %522 {offsets = [0, 32], sizes = [2, 16], strides = [1, 1]} : vector<2x48xf32> to vector<2x16xf32>
    %572 = vector.extract_strided_slice %554 {offsets = [0, 32], sizes = [2, 16], strides = [1, 1]} : vector<2x48xf32> to vector<2x16xf32>
    %573 = arith.mulf %562, %572 : vector<2x16xf32>
    %574 = arith.addf %571, %573 : vector<2x16xf32>
    %575 = math.tanh %574 : vector<2x16xf32>
    %cst_87 = arith.constant 1.000000e+00 : f32
    %576 = vector.broadcast %cst_87 : f32 to vector<2x16xf32>
    %577 = arith.subf %576, %570 : vector<2x16xf32>
    %578 = arith.mulf %577, %575 : vector<2x16xf32>
    %579 = arith.mulf %570, %518 : vector<2x16xf32>
    %580 = arith.addf %578, %579 : vector<2x16xf32>
    %c7_i32_88 = arith.constant 7 : i32
    %581 = vector.broadcast %c7_i32_88 : i32 to vector<2x1xi32>
    %582 = arith.cmpi sgt, %1, %581 : vector<2x1xi32>
    %583 = vector.shape_cast %582 : vector<2x1xi1> to vector<2x1xi1>
    %584 = vector.broadcast %583 : vector<2x1xi1> to vector<2x16xi1>
    %585 = arith.select %584, %551, %513 : vector<2x16xi1>, vector<2x16xf32>
    %c0_i32_89 = arith.constant 0 : i32
    %586 = vector.broadcast %c0_i32_89 : i32 to vector<2x1xi32>
    %587 = arith.cmpi sgt, %1, %586 : vector<2x1xi32>
    %588 = vector.shape_cast %587 : vector<2x1xi1> to vector<2x1xi1>
    %589 = vector.broadcast %588 : vector<2x1xi1> to vector<2x16xi1>
    %590 = arith.select %589, %580, %518 : vector<2x16xi1>, vector<2x16xf32>
    %591 = tpu.concatenate %585, %590 in 1 : vector<2x16xf32>, vector<2x16xf32> -> vector<2x32xf32>
    %c0_90 = arith.constant 0 : index
    %c0_91 = arith.constant 0 : index
    %592 = vector.load %arg8[%c0_90, %c0_91] : memref<32x16xf32, #tpu.memory_space<vmem>>, vector<32x16xf32>
    %cst_92 = arith.constant dense<0.000000e+00> : vector<16x16xf32>
    %593 = tpu.matmul %6, %592, %cst_92 {dimension_numbers = #tpu.dot_dimension_numbers<[1], [0], [0], [1], [0, 0, 1, 1], [], []>} : vector<16x32xf32>, vector<32x16xf32>, vector<16x16xf32> -> vector<16x16xf32>
    %594 = math.tanh %593 : vector<16x16xf32>
    %595 = vector.shape_cast %594 : vector<16x16xf32> to vector<2x8x16xf32>
    %c0_93 = arith.constant 0 : index
    %c0_94 = arith.constant 0 : index
    %596 = vector.load %arg9[%c0_93, %c0_94] : memref<1x16xf32, #tpu.memory_space<vmem>>, vector<1x16xf32>
    %597 = vector.shape_cast %596 : vector<1x16xf32> to vector<1x1x16xf32>
    %598 = vector.broadcast %597 : vector<1x1x16xf32> to vector<2x8x16xf32>
    %599 = arith.mulf %595, %598 : vector<2x8x16xf32>
    %cst_95 = arith.constant dense<0.000000e+00> : vector<2x8xf32>
    %600 = vector.multi_reduction <add>, %599, %cst_95 [2] : vector<2x8x16xf32> to vector<2x8xf32>
    %601 = tpu.iota {dimensions = array<i32: 1>} : vector<2x8xi32>
    %602 = vector.broadcast %1 : vector<2x1xi32> to vector<2x8xi32>
    %603 = arith.cmpi sge, %601, %602 : vector<2x8xi32>
    %cst_96 = arith.constant -1.000000e+30 : f32
    %604 = vector.broadcast %cst_96 : f32 to vector<2x8xf32>
    %605 = arith.select %603, %604, %600 : vector<2x8xi1>, vector<2x8xf32>
    %cst_97 = arith.constant dense<0xFF800000> : vector<2xf32>
    %606 = vector.multi_reduction <maximumf>, %605, %cst_97 [1] : vector<2x8xf32> to vector<2xf32>
    %607 = vector.shape_cast %606 : vector<2xf32> to vector<2x1xf32>
    %608 = vector.broadcast %607 : vector<2x1xf32> to vector<2x8xf32>
    %609 = arith.subf %605, %608 : vector<2x8xf32>
    %610 = math.exp %609 : vector<2x8xf32>
    %cst_98 = arith.constant dense<0.000000e+00> : vector<2xf32>
    %611 = vector.multi_reduction <add>, %610, %cst_98 [1] : vector<2x8xf32> to vector<2xf32>
    %612 = vector.shape_cast %611 : vector<2xf32> to vector<2x1xf32>
    %613 = vector.broadcast %612 : vector<2x1xf32> to vector<2x8xf32>
    %614 = arith.divf %610, %613 : vector<2x8xf32>
    %c0_99 = arith.constant 0 : index
    %c0_100 = arith.constant 0 : index
    %615 = vector.load %arg15[%c0_99, %c0_100] : memref<2x8xf32, #tpu.memory_space<vmem>>, vector<2x8xf32>
    tpu.vector_store %arg15[%c0_99, %c0_100], %614 {strides = array<i32>} : memref<2x8xf32, #tpu.memory_space<vmem>>, vector<2x8xf32>,
    %616 = vector.shape_cast %614 : vector<2x8xf32> to vector<2x1x8xf32>
    "tpu.trace_start"() <{level = 10 : i32, message = "bql,bld->bqd"}> : () -> ()
    %cst_101 = arith.constant dense<0.000000e+00> : vector<2x1x32xf32>
    %617 = tpu.matmul %616, %0, %cst_101 {dimension_numbers = #tpu.dot_dimension_numbers<[2], [1], [1], [2], [0, 0, 0, 1, 1, 2], [0], [0]>} : vector<2x1x8xf32>, vector<2x8x32xf32>, vector<2x1x32xf32> -> vector<2x1x32xf32>
    "tpu.trace_stop"() : () -> ()
    %618 = vector.shape_cast %617 : vector<2x1x32xf32> to vector<2x32xf32>
    %c0_102 = arith.constant 0 : index
    %c0_103 = arith.constant 0 : index
    %619 = vector.load %arg10[%c0_102, %c0_103] : memref<32x32xf32, #tpu.memory_space<vmem>>, vector<32x32xf32>
    %cst_104 = arith.constant dense<0.000000e+00> : vector<2x32xf32>
    %620 = tpu.matmul %618, %619, %cst_104 {dimension_numbers = #tpu.dot_dimension_numbers<[1], [0], [0], [1], [0, 0, 1, 1], [], []>} : vector<2x32xf32>, vector<32x32xf32>, vector<2x32xf32> -> vector<2x32xf32>
    %c0_105 = arith.constant 0 : index
    %c0_106 = arith.constant 0 : index
    %621 = vector.load %arg11[%c0_105, %c0_106] : memref<1x32xf32, #tpu.memory_space<vmem>>, vector<1x32xf32>
    %622 = vector.broadcast %621 : vector<1x32xf32> to vector<2x32xf32>
    %623 = arith.addf %620, %622 : vector<2x32xf32>
    %624 = arith.negf %623 : vector<2x32xf32>
    %625 = math.exp %624 : vector<2x32xf32>
    %cst_107 = arith.constant 1.000000e+00 : f32
    %626 = vector.broadcast %cst_107 : f32 to vector<2x32xf32>
    %627 = arith.addf %626, %625 : vector<2x32xf32>
    %628 = arith.divf %626, %627 : vector<2x32xf32>
    %c0_108 = arith.constant 0 : index
    %c0_109 = arith.constant 0 : index
    %629 = vector.load %arg16[%c0_108, %c0_109] : memref<2x32xf32, #tpu.memory_space<vmem>>, vector<2x32xf32>
    tpu.vector_store %arg16[%c0_108, %c0_109], %628 {strides = array<i32>} : memref<2x32xf32, #tpu.memory_space<vmem>>, vector<2x32xf32>,
    %630 = arith.addf %591, %628 : vector<2x32xf32>
    %cst_110 = arith.constant dense<0.000000e+00> : vector<2xf32>
    %631 = vector.multi_reduction <add>, %630, %cst_110 [1] : vector<2x32xf32> to vector<2xf32>
    %632 = vector.shape_cast %631 : vector<2xf32> to vector<2x1xf32>
    %cst_111 = arith.constant 3.200000e+01 : f32
    %633 = vector.broadcast %cst_111 : f32 to vector<2x1xf32>
    %634 = arith.divf %632, %633 : vector<2x1xf32>
    %635 = vector.broadcast %634 : vector<2x1xf32> to vector<2x32xf32>
    %636 = arith.subf %630, %635 : vector<2x32xf32>
    %637 = arith.mulf %636, %636 : vector<2x32xf32>
    %cst_112 = arith.constant dense<0.000000e+00> : vector<2xf32>
    %638 = vector.multi_reduction <add>, %637, %cst_112 [1] : vector<2x32xf32> to vector<2xf32>
    %639 = vector.shape_cast %638 : vector<2xf32> to vector<2x1xf32>
    %cst_113 = arith.constant 3.200000e+01 : f32
    %640 = vector.broadcast %cst_113 : f32 to vector<2x1xf32>
    %641 = arith.divf %639, %640 : vector<2x1xf32>
    %642 = vector.broadcast %634 : vector<2x1xf32> to vector<2x32xf32>
    %643 = arith.subf %630, %642 : vector<2x32xf32>
    %cst_114 = arith.constant 9.99999974E-6 : f32
    %644 = vector.broadcast %cst_114 : f32 to vector<2x1xf32>
    %645 = arith.addf %641, %644 : vector<2x1xf32>
    %646 = math.rsqrt %645 : vector<2x1xf32>
    %647 = vector.broadcast %646 : vector<2x1xf32> to vector<2x32xf32>
    %648 = arith.mulf %643, %647 : vector<2x32xf32>
    %c0_115 = arith.constant 0 : index
    %c0_116 = arith.constant 0 : index
    %649 = vector.load %arg12[%c0_115, %c0_116] : memref<1x32xf32, #tpu.memory_space<vmem>>, vector<1x32xf32>
    %650 = vector.broadcast %649 : vector<1x32xf32> to vector<2x32xf32>
    %651 = arith.mulf %648, %650 : vector<2x32xf32>
    %c0_117 = arith.constant 0 : index
    %c0_118 = arith.constant 0 : index
    %652 = vector.load %arg13[%c0_117, %c0_118] : memref<1x32xf32, #tpu.memory_space<vmem>>, vector<1x32xf32>
    %653 = vector.broadcast %652 : vector<1x32xf32> to vector<2x32xf32>
    %654 = arith.addf %651, %653 : vector<2x32xf32>
    %655 = arith.mulf %654, %654 : vector<2x32xf32>
    %cst_119 = arith.constant dense<0.000000e+00> : vector<2xf32>
    %656 = vector.multi_reduction <add>, %655, %cst_119 [1] : vector<2x32xf32> to vector<2xf32>
    %657 = vector.shape_cast %656 : vector<2xf32> to vector<2x1xf32>
    %658 = math.sqrt %657 : vector<2x1xf32>
    %659 = vector.broadcast %658 : vector<2x1xf32> to vector<2x32xf32>
    %660 = arith.divf %654, %659 : vector<2x32xf32>
    %c0_120 = arith.constant 0 : index
    %c0_121 = arith.constant 0 : index
    %661 = vector.load %arg14[%c0_120, %c0_121] : memref<2x32xf32, #tpu.memory_space<vmem>>, vector<2x32xf32>
    tpu.vector_store %arg14[%c0_120, %c0_121], %660 {strides = array<i32>} : memref<2x32xf32, #tpu.memory_space<vmem>>, vector<2x32xf32>,
    return
  }
}

</mosaic_0001>

<llo_original>
// kernel: tpu_custom_call.1
$region0: #{tpu_custom_call.1}
  #allocation0 [shape = 'u32[]', space=smem, size = 0x4, offset = 0x4, fixed_abs, tag = 'smem constant byte address 0x4 - core index']
  #allocation1 [shape = 'u32[144,128]{1,0:T(1,128)}', space=vmem, size = 0x12000, scoped, tag = 'internal scratch']
  %s0 = inlined_call_operand.hbm [shape: f32[2,8,32], index: 0, kind: input, shape index: {}]
  %s1 = inlined_call_operand.vmem [shape: s32[2,1], index: 1, kind: input, shape index: {}]
  %s2 = inlined_call_operand.vmem [shape: f32[32,96], index: 2, kind: input, shape index: {}]
  %s3 = inlined_call_operand.vmem [shape: f32[1,96], index: 3, kind: input, shape index: {}]
  %s4 = inlined_call_operand.hbm [shape: f32[16,48], index: 4, kind: input, shape index: {}]
  %s5 = inlined_call_operand.vmem [shape: f32[1,48], index: 5, kind: input, shape index: {}]
  %s6 = inlined_call_operand.hbm [shape: f32[16,48], index: 6, kind: input, shape index: {}]
  %s7 = inlined_call_operand.hbm [shape: f32[1,48], index: 7, kind: input, shape index: {}]
  %s8 = inlined_call_operand.vmem [shape: f32[32,16], index: 8, kind: input, shape index: {}]
  %s9 = inlined_call_operand.vmem [shape: f32[1,16], index: 9, kind: input, shape index: {}]
  %s10 = inlined_call_operand.vmem [shape: f32[32,32], index: 10, kind: input, shape index: {}]
  %s11 = inlined_call_operand.vmem [shape: f32[1,32], index: 11, kind: input, shape index: {}]
  %s12 = inlined_call_operand.vmem [shape: f32[1,32], index: 12, kind: input, shape index: {}]
  %s13 = inlined_call_operand.vmem [shape: f32[1,32], index: 13, kind: input, shape index: {}]
  %s14 = inlined_call_operand.hbm [shape: f32[2,32], index: 14, kind: output, shape index: {0}]
  %s15 = inlined_call_operand.hbm [shape: f32[2,8], index: 15, kind: output, shape index: {1}]
  %s16 = inlined_call_operand.hbm [shape: f32[2,32], index: 16, kind: output, shape index: {2}]
  %17 = xla_tuple %s14, %s15, %s16
  %s18 = sld [smem:[#allocation0]]
  $region98: #{tpu_custom_call.1} parent=0
    _
  %s20 = ssub.s32 1, %s18
  %s21 = scalar_select 0, %s20, %s18
  $region1: #{tpu_custom_call.1} parent=0
    #allocation2 [shape = 'u8[8192]{0}', space=vmem, size = 0x2000, scoped, tag = 'input window, operand 0, single buffered']
    #allocation3 [shape = 's32[1]{0}', space=sflag, size = 0x4, scoped, tag = 'scoped memory for tpu_custom_call.1']
    #allocation4 [shape = 's32[1]{0}', space=sflag, size = 0x4, scoped, tag = 'scoped memory for tpu_custom_call.1']
    #allocation5 [shape = 'u8[8192]{0}', space=vmem, size = 0x2000, scoped, tag = 'input window, operand 4, single buffered']
    #allocation6 [shape = 's32[1]{0}', space=sflag, size = 0x4, scoped, tag = 'scoped memory for tpu_custom_call.1']
    #allocation7 [shape = 'u8[8192]{0}', space=vmem, size = 0x2000, scoped, tag = 'input window, operand 6, single buffered']
    #allocation8 [shape = 'u8[512]{0}', space=vmem, size = 0x400, scoped, tag = 'input window, operand 7, single buffered']
    #allocation9 [shape = 's32[1]{0}', space=sflag, size = 0x4, scoped, tag = 'scoped memory for tpu_custom_call.1']
    #allocation10 [shape = 'u8[1024]{0}', space=vmem, size = 0x400, scoped, tag = 'output window, operand 0, single buffered']
    #allocation11 [shape = 'u8[1024]{0}', space=vmem, size = 0x400, scoped, tag = 'output window, operand 1, single buffered']
    #allocation12 [shape = 's32[1]{0}', space=sflag, size = 0x4, scoped, tag = 'scoped memory for tpu_custom_call.1']
    #allocation13 [shape = 'u8[1024]{0}', space=vmem, size = 0x400, scoped, tag = 'output window, operand 2, single buffered']
    %22 = vsyncpa [#allocation3], 0
    %23 = vsyncpa [#allocation6], 0
    %24 = vsyncpa [#allocation9], 0
    %25 = vsyncpa [#allocation4], 0
    %26 = vsyncpa [#allocation12], 0
    // Predicated region
    $region2: #{tpu_custom_call.1} parent=1 // pred_check
      _
    $region3: #{tpu_custom_call.1} parent=1 // pred_check_branch
      %28 = sbr.rel (0) target = $region5
    $region4: #{tpu_custom_call.1} parent=1 // pred_region
      %s30 = ssub.s32 256, 256
      %31 = vsyncadd [#allocation3], %s30
      %s32 = sshll.u32 [#allocation2], 4
      %s33 = int_to_ptr.vmem [resolvable:$true] %s32
      %38 = dma.hbm_to_vmem [thread:$0]  %s0, 256, %s33, [#allocation3], 128, 128, 8
    $region5: #{tpu_custom_call.1} parent=1 // pred_fallthru
      _
    // Predicated region
    $region6: #{tpu_custom_call.1} parent=1 // pred_check
      _
    $region7: #{tpu_custom_call.1} parent=1 // pred_check_branch
      %40 = sbr.rel (0) target = $region9
    $region8: #{tpu_custom_call.1} parent=1 // pred_region
      _
    $region9: #{tpu_custom_call.1} parent=1 // pred_fallthru
      _
    // Predicated region
    $region10: #{tpu_custom_call.1} parent=1 // pred_check
      _
    $region11: #{tpu_custom_call.1} parent=1 // pred_check_branch
      %42 = sbr.rel (0) target = $region13
    $region12: #{tpu_custom_call.1} parent=1 // pred_region
      _
    $region13: #{tpu_custom_call.1} parent=1 // pred_fallthru
      _
    // Predicated region
    $region14: #{tpu_custom_call.1} parent=1 // pred_check
      _
    $region15: #{tpu_custom_call.1} parent=1 // pred_check_branch
      %44 = sbr.rel (0) target = $region17
    $region16: #{tpu_custom_call.1} parent=1 // pred_region
      _
    $region17: #{tpu_custom_call.1} parent=1 // pred_fallthru
      _
    // Predicated region
    $region18: #{tpu_custom_call.1} parent=1 // pred_check
      _
    $region19: #{tpu_custom_call.1} parent=1 // pred_check_branch
      %46 = sbr.rel (0) target = $region21
    $region20: #{tpu_custom_call.1} parent=1 // pred_region
      %s48 = ssub.s32 256, 256
      %49 = vsyncadd [#allocation6], %s48
      %s50 = sshll.u32 [#allocation5], 4
      %s51 = int_to_ptr.vmem [resolvable:$true] %s50
      %56 = dma.hbm_to_vmem [thread:$0]  %s4, 256, %s51, [#allocation6], 128, 128, 8
    $region21: #{tpu_custom_call.1} parent=1 // pred_fallthru
      _
    // Predicated region
    $region22: #{tpu_custom_call.1} parent=1 // pred_check
      _
    $region23: #{tpu_custom_call.1} parent=1 // pred_check_branch
      %58 = sbr.rel (0) target = $region25
    $region24: #{tpu_custom_call.1} parent=1 // pred_region
      _
    $region25: #{tpu_custom_call.1} parent=1 // pred_fallthru
      _
    // Predicated region
    $region26: #{tpu_custom_call.1} parent=1 // pred_check
      _
    $region27: #{tpu_custom_call.1} parent=1 // pred_check_branch
      %60 = sbr.rel (0) target = $region29
    $region28: #{tpu_custom_call.1} parent=1 // pred_region
      %s62 = ssub.s32 256, 256
      %63 = vsyncadd [#allocation6], %s62
      %s64 = sshll.u32 [#allocation7], 4
      %s65 = int_to_ptr.vmem [resolvable:$true] %s64
      %70 = dma.hbm_to_vmem [thread:$0]  %s6, 256, %s65, [#allocation6], 128, 128, 8
    $region29: #{tpu_custom_call.1} parent=1 // pred_fallthru
      _
    // Predicated region
    $region30: #{tpu_custom_call.1} parent=1 // pred_check
      _
    $region31: #{tpu_custom_call.1} parent=1 // pred_check_branch
      %72 = sbr.rel (0) target = $region33
    $region32: #{tpu_custom_call.1} parent=1 // pred_region
      %s74 = ssub.s32 16, 16
      %75 = vsyncadd [#allocation9], %s74
      %s77 = sshll.u32 [#allocation8], 4
      %s78 = int_to_ptr.vmem [resolvable:$true] %s77
      %80 = dma.hbm_to_vmem [thread:$0]  %s7, 16, %s78, [#allocation9]
    $region33: #{tpu_custom_call.1} parent=1 // pred_fallthru
      _
    // Predicated region
    $region34: #{tpu_custom_call.1} parent=1 // pred_check
      _
    $region35: #{tpu_custom_call.1} parent=1 // pred_check_branch
      %82 = sbr.rel (0) target = $region37
    $region36: #{tpu_custom_call.1} parent=1 // pred_region
      _
    $region37: #{tpu_custom_call.1} parent=1 // pred_fallthru
      _
    // Predicated region
    $region38: #{tpu_custom_call.1} parent=1 // pred_check
      _
    $region39: #{tpu_custom_call.1} parent=1 // pred_check_branch
      %84 = sbr.rel (0) target = $region41
    $region40: #{tpu_custom_call.1} parent=1 // pred_region
      _
    $region41: #{tpu_custom_call.1} parent=1 // pred_fallthru
      _
    // Predicated region
    $region42: #{tpu_custom_call.1} parent=1 // pred_check
      _
    $region43: #{tpu_custom_call.1} parent=1 // pred_check_branch
      %86 = sbr.rel (0) target = $region45
    $region44: #{tpu_custom_call.1} parent=1 // pred_region
      _
    $region45: #{tpu_custom_call.1} parent=1 // pred_fallthru
      _
    // Predicated region
    $region46: #{tpu_custom_call.1} parent=1 // pred_check
      _
    $region47: #{tpu_custom_call.1} parent=1 // pred_check_branch
      %88 = sbr.rel (0) target = $region49
    $region48: #{tpu_custom_call.1} parent=1 // pred_region
      _
    $region49: #{tpu_custom_call.1} parent=1 // pred_fallthru
      _
    // Predicated region
    $region50: #{tpu_custom_call.1} parent=1 // pred_check
      _
    $region51: #{tpu_custom_call.1} parent=1 // pred_check_branch
      %90 = sbr.rel (0) target = $region53
    $region52: #{tpu_custom_call.1} parent=1 // pred_region
      _
    $region53: #{tpu_custom_call.1} parent=1 // pred_fallthru
      _
    // Predicated region
    $region54: #{tpu_custom_call.1} parent=1 // pred_check
      _
    $region55: #{tpu_custom_call.1} parent=1 // pred_check_branch
      %92 = sbr.rel (0) target = $region57
    $region56: #{tpu_custom_call.1} parent=1 // pred_region
      _
    $region57: #{tpu_custom_call.1} parent=1 // pred_fallthru
      _
    // Predicated region
    $region58: #{tpu_custom_call.1} parent=1 // pred_check
      _
    $region59: #{tpu_custom_call.1} parent=1 // pred_check_branch
      %94 = sbr.rel (0) target = $region61
    $region60: #{tpu_custom_call.1} parent=1 // pred_region
      %95 = dma.done [#allocation3], 256
    $region61: #{tpu_custom_call.1} parent=1 // pred_fallthru
      _
    // Predicated region
    $region62: #{tpu_custom_call.1} parent=1 // pred_check
      _
    $region63: #{tpu_custom_call.1} parent=1 // pred_check_branch
      %97 = sbr.rel (0) target = $region65
    $region64: #{tpu_custom_call.1} parent=1 // pred_region
      %98 = dma.done [#allocation6], 256
    $region65: #{tpu_custom_call.1} parent=1 // pred_fallthru
      _
    // Predicated region
    $region66: #{tpu_custom_call.1} parent=1 // pred_check
      _
    $region67: #{tpu_custom_call.1} parent=1 // pred_check_branch
      %100 = sbr.rel (0) target = $region69
    $region68: #{tpu_custom_call.1} parent=1 // pred_region
      %101 = dma.done [#allocation6], 256
    $region69: #{tpu_custom_call.1} parent=1 // pred_fallthru
      _
    // Predicated region
    $region70: #{tpu_custom_call.1} parent=1 // pred_check
      _
    $region71: #{tpu_custom_call.1} parent=1 // pred_check_branch
      %103 = sbr.rel (0) target = $region73
    $region72: #{tpu_custom_call.1} parent=1 // pred_region
      %104 = dma.done [#allocation9], 16
    $region73: #{tpu_custom_call.1} parent=1 // pred_fallthru
      _
    %v105 = vld [vmem:[#allocation2] sm:$0xff]
    %v106 = vld [vmem:[#allocation2 + $0x8] sm:$0xff]
    %v107 = vld [vmem:[%s1] sm:$0x3]
    %v108 = vld [vmem:[#allocation5] sm:$0xff]
    %v109 = vld [vmem:[#allocation5 + $0x8] sm:$0xff]
    %v110 = vld [vmem:[%s5] sm:$0x1]
    %v111 = vld [vmem:[#allocation7] sm:$0xff]
    %v112 = vld [vmem:[#allocation7 + $0x8] sm:$0xff]
    %v113 = vld [vmem:[#allocation8] sm:$0x1]
    %v114 = vld [vmem:[%s2] sm:$0xff]
    %v115 = vld [vmem:[%s2 + $0x8] sm:$0xff]
    %v116 = vld [vmem:[%s2 + $0x10] sm:$0xff]
    %v117 = vld [vmem:[%s2 + $0x18] sm:$0xff]
    %v118 = vld [vmem:[%s3] sm:$0x1]
    %v120 = vlaneseq
    %v121 = vshrl.u32 %v120, 7
    %v122 = vsub.s32 0, %v121
    %v123 = vrot.slane %v118, %v122
    %vm125 = vcmask 261120
    %v127 = vsel %vm125, %v105, 0
    %v130 = vsel %vm125, %v106, 0
    %132 = vmatprep.subr.mxu0 0.0
    %133 = vmatpush1.msra.mxu0 %v114
    %134 = vmatprep.subr.mxu0 0.0
    %135 = vmatpush1.msra.mxu0 %v115
    %136 = vmatprep.subr.mxu0 0.0
    %137 = vmatpush1.msra.mxu0 %v116
    %138 = vmatprep.subr.mxu0 0.0
    %139 = vmatpush1.msra.mxu0 %v117
    %140 = vmatprep.subr.mxu0 0.0
    %141 = vmatpush1.msra.mxu0 0.0
    %142 = vmatprep.subr.mxu0 0.0
    %143 = vmatpush1.msra.mxu0 0.0
    %144 = vmatprep.subr.mxu0 0.0
    %145 = vmatpush1.msra.mxu0 0.0
    %146 = vmatprep.subr.mxu0 0.0
    %147 = vmatpush1.msra.mxu0 0.0
    %148 = vmatprep.subr.mxu0 0.0
    %149 = vmatpush1.msra.mxu0 0.0
    %150 = vmatprep.subr.mxu0 0.0
    %151 = vmatpush1.msra.mxu0 0.0
    %152 = vmatprep.subr.mxu0 0.0
    %153 = vmatpush1.msra.mxu0 0.0
    %154 = vmatprep.subr.mxu0 0.0
    %155 = vmatpush1.msra.mxu0 0.0
    %156 = vmatprep.subr.mxu0 0.0
    %157 = vmatpush1.msra.mxu0 0.0
    %158 = vmatprep.subr.mxu0 0.0
    %159 = vmatpush1.msra.mxu0 0.0
    %160 = vmatprep.subr.mxu0 0.0
    %161 = vmatpush1.msra.mxu0 0.0
    %162 = vmatprep.subr.mxu0 0.0
    %163 = vmatpush1.msra.mxu0 0.0
    %164 = vmatprep.subr.mxu0 0.0
    %165 = vmatpush1.msra.mxu0 0.0
    %166 = vmatprep.subr.mxu0 0.0
    %167 = vmatpush1.msra.mxu0 0.0
    %168 = vmatprep.subr.mxu0 0.0
    %169 = vmatpush1.msra.mxu0 0.0
    %170 = vmatprep.subr.mxu0 0.0
    %171 = vmatpush1.msra.mxu0 0.0
    %172 = vmatprep.subr.mxu0 0.0
    %173 = vmatpush1.msra.mxu0 0.0
    %174 = vmatprep.subr.mxu0 0.0
    %175 = vmatpush1.msra.mxu0 0.0
    %176 = vmatprep.subr.mxu0 0.0
    %177 = vmatpush1.msra.mxu0 0.0
    %178 = vmatprep.subr.mxu0 0.0
    %179 = vmatpush1.msra.mxu0 0.0
    %180 = vmatprep.subr.mxu0 0.0
    %181 = vmatpush1.msra.mxu0 0.0
    %182 = vmatprep.subr.mxu0 0.0
    %183 = vmatpush1.msra.mxu0 0.0
    %184 = vmatprep.subr.mxu0 0.0
    %185 = vmatpush1.msra.mxu0 0.0
    %186 = vmatprep.subr.mxu0 0.0
    %187 = vmatpush1.msra.mxu0 0.0
    %188 = vmatprep.subr.mxu0 0.0
    %189 = vmatpush1.msra.mxu0 0.0
    %190 = vmatprep.subr.mxu0 0.0
    %191 = vmatpush1.msra.mxu0 0.0
    %192 = vmatprep.subr.mxu0 0.0
    %193 = vmatpush1.msra.mxu0 0.0
    %194 = vmatprep.subr.mxu0 0.0
    %195 = vmatpush1.msra.mxu0 0.0
    %196 = vmatprep.mubr.f32.mxu0 0.0
    %197 = vmatmul.mubr.f32.gmra.mrb[0].mxu0 %v127
    %v198 = vpop.f32.mrb[0].mxu0
    %v199 = vadd.f32 %v123, %v198
    %v200 = vpop.f32.mrb[0].mxu0
    %201 = vmatprep.mubr.f32.mxu0 0.0
    %202 = vmatmul.mubr.f32.gmra.mrb[0].mxu0 %v130
    %v203 = vpop.f32.mrb[0].mxu0
    %v204 = vadd.f32 %v123, %v203
    %v205 = vpop.f32.mrb[0].mxu0
    %206 = vdwg.mxu0
    %v208 = vlaneseq
    %v209 = vshrl.u32 %v208, 7
    %v210 = vsub.s32 0, %v209
    %v211 = vrot.slane %v110, %v210
    %vm213 = vcmask 130048
    %v215 = vsel %vm213, 0.0, 0
    %217 = vmatprep.subr.mxu0 0.0
    %218 = vmatpush1.msra.mxu0 %v108
    %219 = vmatprep.subr.mxu0 0.0
    %220 = vmatpush1.msra.mxu0 %v109
    %221 = vmatprep.subr.mxu0 0.0
    %222 = vmatpush1.msra.mxu0 0.0
    %223 = vmatprep.subr.mxu0 0.0
    %224 = vmatpush1.msra.mxu0 0.0
    %225 = vmatprep.subr.mxu0 0.0
    %226 = vmatpush1.msra.mxu0 0.0
    %227 = vmatprep.subr.mxu0 0.0
    %228 = vmatpush1.msra.mxu0 0.0
    %229 = vmatprep.subr.mxu0 0.0
    %230 = vmatpush1.msra.mxu0 0.0
    %231 = vmatprep.subr.mxu0 0.0
    %232 = vmatpush1.msra.mxu0 0.0
    %233 = vmatprep.subr.mxu0 0.0
    %234 = vmatpush1.msra.mxu0 0.0
    %235 = vmatprep.subr.mxu0 0.0
    %236 = vmatpush1.msra.mxu0 0.0
    %237 = vmatprep.subr.mxu0 0.0
    %238 = vmatpush1.msra.mxu0 0.0
    %239 = vmatprep.subr.mxu0 0.0
    %240 = vmatpush1.msra.mxu0 0.0
    %241 = vmatprep.subr.mxu0 0.0
    %242 = vmatpush1.msra.mxu0 0.0
    %243 = vmatprep.subr.mxu0 0.0
    %244 = vmatpush1.msra.mxu0 0.0
    %245 = vmatprep.subr.mxu0 0.0
    %246 = vmatpush1.msra.mxu0 0.0
    %247 = vmatprep.subr.mxu0 0.0
    %248 = vmatpush1.msra.mxu0 0.0
    %249 = vmatprep.subr.mxu0 0.0
    %250 = vmatpush1.msra.mxu0 0.0
    %251 = vmatprep.subr.mxu0 0.0
    %252 = vmatpush1.msra.mxu0 0.0
    %253 = vmatprep.subr.mxu0 0.0
    %254 = vmatpush1.msra.mxu0 0.0
    %255 = vmatprep.subr.mxu0 0.0
    %256 = vmatpush1.msra.mxu0 0.0
    %257 = vmatprep.subr.mxu0 0.0
    %258 = vmatpush1.msra.mxu0 0.0
    %259 = vmatprep.subr.mxu0 0.0
    %260 = vmatpush1.msra.mxu0 0.0
    %261 = vmatprep.subr.mxu0 0.0
    %262 = vmatpush1.msra.mxu0 0.0
    %263 = vmatprep.subr.mxu0 0.0
    %264 = vmatpush1.msra.mxu0 0.0
    %265 = vmatprep.subr.mxu0 0.0
    %266 = vmatpush1.msra.mxu0 0.0
    %267 = vmatprep.subr.mxu0 0.0
    %268 = vmatpush1.msra.mxu0 0.0
    %269 = vmatprep.subr.mxu0 0.0
    %270 = vmatpush1.msra.mxu0 0.0
    %271 = vmatprep.subr.mxu0 0.0
    %272 = vmatpush1.msra.mxu0 0.0
    %273 = vmatprep.subr.mxu0 0.0
    %274 = vmatpush1.msra.mxu0 0.0
    %275 = vmatprep.subr.mxu0 0.0
    %276 = vmatpush1.msra.mxu0 0.0
    %277 = vmatprep.subr.mxu0 0.0
    %278 = vmatpush1.msra.mxu0 0.0
    %279 = vmatprep.subr.mxu0 0.0
    %280 = vmatpush1.msra.mxu0 0.0
    %281 = vmatprep.mubr.f32.mxu0 0.0
    %282 = vmatmul.mubr.f32.gmra.mrb[0].mxu0 %v215
    %v283 = vpop.f32.mrb[0].mxu0
    %v284 = vadd.f32 %v211, %v283
    %v285 = vpop.f32.mrb[0].mxu0
    %286 = vdwg.mxu0
    %v288 = vrot.slane %v284, 1
    %v291 = vadd.f32 %v199, %v284
    %v292 = vadd.f32 %v204, %v288
    %v293 = vxor.u32 %v291, 2147483648
    %v294 = vxor.u32 %v292, 2147483648
    %v295 = vmul.f32 %v293, 1.442695
    %v296 = vpow.pop %v295
    %v297 = vmul.f32 %v294, 1.442695
    %v298 = vpow.pop %v297
    %v299 = vadd.f32 %v296, 1.0
    %v300 = vadd.f32 %v298, 1.0
    %v301 = vrcp.pop %v299
    %v302 = vmul.f32 1.0, %v301
    %v303 = vrcp.pop %v300
    %v304 = vmul.f32 1.0, %v303
    %305 = vrot.lane.b32.xlu0 %v284, 96
    %v306 = vpop.permute.xlu0 %305
    %307 = vrot.lane.b32.xlu0 %v288, 96
    %v308 = vpop.permute.xlu0 %307
    %v311 = vmul.f32 %v302, %v306
    %v312 = vmul.f32 %v304, %v308
    %315 = vrot.lane.b32.xlu0 %v311, 32
    %v316 = vpop.permute.xlu0 %315
    %317 = vrot.lane.b32.xlu0 %v312, 32
    %v318 = vpop.permute.xlu0 %317
    %v321 = vadd.f32 %v199, %v316
    %v322 = vadd.f32 %v204, %v318
    %v323 = vtanh.pop %v321
    %v324 = vtanh.pop %v322
    %v325 = vsub.f32 1.0, %v302
    %v326 = vsub.f32 1.0, %v304
    %329 = vrot.lane.b32.xlu0 %v323, 112
    %v330 = vpop.permute.xlu0 %329
    %331 = vrot.lane.b32.xlu0 %v324, 112
    %v332 = vpop.permute.xlu0 %331
    %v335 = vmul.f32 %v325, %v330
    %v336 = vmul.f32 %v326, %v332
    %v337 = vmul.f32 %v302, 0.0
    %v338 = vmul.f32 %v304, 0.0
    %v339 = vadd.f32 %v335, %v337
    %v340 = vadd.f32 %v336, %v338
    %v342 = vlaneseq
    %v343 = vshrl.u32 %v342, 7
    %v344 = vsub.s32 0, %v343
    %v345 = vrot.slane %v113, %v344
    %347 = vmatprep.subr.mxu0 0.0
    %348 = vmatpush1.msra.mxu0 %v111
    %349 = vmatprep.subr.mxu0 0.0
    %350 = vmatpush1.msra.mxu0 %v112
    %351 = vmatprep.subr.mxu0 0.0
    %352 = vmatpush1.msra.mxu0 0.0
    %353 = vmatprep.subr.mxu0 0.0
    %354 = vmatpush1.msra.mxu0 0.0
    %355 = vmatprep.subr.mxu0 0.0
    %356 = vmatpush1.msra.mxu0 0.0
    %357 = vmatprep.subr.mxu0 0.0
    %358 = vmatpush1.msra.mxu0 0.0
    %359 = vmatprep.subr.mxu0 0.0
    %360 = vmatpush1.msra.mxu0 0.0
    %361 = vmatprep.subr.mxu0 0.0
    %362 = vmatpush1.msra.mxu0 0.0
    %363 = vmatprep.subr.mxu0 0.0
    %364 = vmatpush1.msra.mxu0 0.0
    %365 = vmatprep.subr.mxu0 0.0
    %366 = vmatpush1.msra.mxu0 0.0
    %367 = vmatprep.subr.mxu0 0.0
    %368 = vmatpush1.msra.mxu0 0.0
    %369 = vmatprep.subr.mxu0 0.0
    %370 = vmatpush1.msra.mxu0 0.0
    %371 = vmatprep.subr.mxu0 0.0
    %372 = vmatpush1.msra.mxu0 0.0
    %373 = vmatprep.subr.mxu0 0.0
    %374 = vmatpush1.msra.mxu0 0.0
    %375 = vmatprep.subr.mxu0 0.0
    %376 = vmatpush1.msra.mxu0 0.0
    %377 = vmatprep.subr.mxu0 0.0
    %378 = vmatpush1.msra.mxu0 0.0
    %379 = vmatprep.subr.mxu0 0.0
    %380 = vmatpush1.msra.mxu0 0.0
    %381 = vmatprep.subr.mxu0 0.0
    %382 = vmatpush1.msra.mxu0 0.0
    %383 = vmatprep.subr.mxu0 0.0
    %384 = vmatpush1.msra.mxu0 0.0
    %385 = vmatprep.subr.mxu0 0.0
    %386 = vmatpush1.msra.mxu0 0.0
    %387 = vmatprep.subr.mxu0 0.0
    %388 = vmatpush1.msra.mxu0 0.0
    %389 = vmatprep.subr.mxu0 0.0
    %390 = vmatpush1.msra.mxu0 0.0
    %391 = vmatprep.subr.mxu0 0.0
    %392 = vmatpush1.msra.mxu0 0.0
    %393 = vmatprep.subr.mxu0 0.0
    %394 = vmatpush1.msra.mxu0 0.0
    %395 = vmatprep.subr.mxu0 0.0
    %396 = vmatpush1.msra.mxu0 0.0
    %397 = vmatprep.subr.mxu0 0.0
    %398 = vmatpush1.msra.mxu0 0.0
    %399 = vmatprep.subr.mxu0 0.0
    %400 = vmatpush1.msra.mxu0 0.0
    %401 = vmatprep.subr.mxu0 0.0
    %402 = vmatpush1.msra.mxu0 0.0
    %403 = vmatprep.subr.mxu0 0.0
    %404 = vmatpush1.msra.mxu0 0.0
    %405 = vmatprep.subr.mxu0 0.0
    %406 = vmatpush1.msra.mxu0 0.0
    %407 = vmatprep.subr.mxu0 0.0
    %408 = vmatpush1.msra.mxu0 0.0
    %409 = vmatprep.subr.mxu0 0.0
    %410 = vmatpush1.msra.mxu0 0.0
    %411 = vmatprep.mubr.f32.mxu0 0.0
    %412 = vmatmul.mubr.f32.gmra.mrb[0].mxu0 %v215
    %v413 = vpop.f32.mrb[0].mxu0
    %v414 = vadd.f32 %v345, %v413
    %v415 = vpop.f32.mrb[0].mxu0
    %416 = vdwg.mxu0
    %v418 = vrot.slane %v414, 1
    %v419 = vrot.slane %v414, 2
    %420 = vrot.lane.b32.xlu0 %v418, 48
    %v421 = vpop.permute.xlu0 %420
    %422 = vrot.lane.b32.xlu0 %v419, 48
    %v423 = vpop.permute.xlu0 %422
    %v426 = vadd.f32 %v199, %v421
    %v427 = vadd.f32 %v204, %v423
    %v428 = vxor.u32 %v426, 2147483648
    %v429 = vxor.u32 %v427, 2147483648
    %v430 = vmul.f32 %v428, 1.442695
    %v431 = vpow.pop %v430
    %v432 = vmul.f32 %v429, 1.442695
    %v433 = vpow.pop %v432
    %v434 = vadd.f32 %v431, 1.0
    %v435 = vadd.f32 %v433, 1.0
    %v436 = vrcp.pop %v434
    %v437 = vmul.f32 1.0, %v436
    %v438 = vrcp.pop %v435
    %v439 = vmul.f32 1.0, %v438
    %440 = vrot.lane.b32.xlu0 %v418, 16
    %v441 = vpop.permute.xlu0 %440
    %442 = vrot.lane.b32.xlu0 %v419, 16
    %v443 = vpop.permute.xlu0 %442
    %v446 = vmul.f32 %v437, %v441
    %v447 = vmul.f32 %v439, %v443
    %450 = vrot.lane.b32.xlu0 %v446, 32
    %v451 = vpop.permute.xlu0 %450
    %452 = vrot.lane.b32.xlu0 %v447, 32
    %v453 = vpop.permute.xlu0 %452
    %v456 = vadd.f32 %v199, %v451
    %v457 = vadd.f32 %v204, %v453
    %v458 = vtanh.pop %v456
    %v459 = vtanh.pop %v457
    %v460 = vsub.f32 1.0, %v437
    %v461 = vsub.f32 1.0, %v439
    %464 = vrot.lane.b32.xlu0 %v458, 112
    %v465 = vpop.permute.xlu0 %464
    %466 = vrot.lane.b32.xlu0 %v459, 112
    %v467 = vpop.permute.xlu0 %466
    %v470 = vmul.f32 %v460, %v465
    %v471 = vmul.f32 %v461, %v467
    %v472 = vmul.f32 %v437, 0.0
    %v473 = vmul.f32 %v439, 0.0
    %v474 = vadd.f32 %v470, %v472
    %v475 = vadd.f32 %v471, %v473
    %vm476 = vcmp.gt.s32.totalorder %v107, 0
    %v477 = vsel %vm476, 1, 0
    %478 = vset.pattern.permute.xlu0 0
    %479 = vperm.xlu0 %478, %v477
    %v480 = vpop.permute.xlu0 %479
    %vm481 = vcmp.eq.s32.totalorder %v480, 1
    %v484 = vrot.slane %v340, 7
    %vm485 = vcmask 1041409
    %v486 = vsel %vm485, %v484, %v339
    %487 = vrot.lane.b32.xlu0 %v486, 112
    %v488 = vpop.permute.xlu0 %487
    %v490 = vsel %vm481, %v488, 0.0
    %vm491 = vcmp.gt.s32.totalorder %v107, 7
    %v492 = vsel %vm491, 1, 0
    %493 = vset.pattern.permute.xlu0 0
    %494 = vperm.xlu0 %493, %v492
    %v495 = vpop.permute.xlu0 %494
    %vm496 = vcmp.eq.s32.totalorder %v495, 1
    %v499 = vrot.slane %v474, 7
    %v500 = vrot.slane %v475, 6
    %v501 = vsel %vm485, %v500, %v499
    %502 = vrot.lane.b32.xlu0 %v501, 64
    %v503 = vpop.permute.xlu0 %502
    %v505 = vsel %vm496, %v503, 0.0
    %v507 = vsel %vm213, %v490, 0
    %509 = vmatprep.subr.mxu0 0.0
    %510 = vmatpush1.msra.mxu0 %v108
    %511 = vmatprep.subr.mxu0 0.0
    %512 = vmatpush1.msra.mxu0 %v109
    %513 = vmatprep.subr.mxu0 0.0
    %514 = vmatpush1.msra.mxu0 0.0
    %515 = vmatprep.subr.mxu0 0.0
    %516 = vmatpush1.msra.mxu0 0.0
    %517 = vmatprep.subr.mxu0 0.0
    %518 = vmatpush1.msra.mxu0 0.0
    %519 = vmatprep.subr.mxu0 0.0
    %520 = vmatpush1.msra.mxu0 0.0
    %521 = vmatprep.subr.mxu0 0.0
    %522 = vmatpush1.msra.mxu0 0.0
    %523 = vmatprep.subr.mxu0 0.0
    %524 = vmatpush1.msra.mxu0 0.0
    %525 = vmatprep.subr.mxu0 0.0
    %526 = vmatpush1.msra.mxu0 0.0
    %527 = vmatprep.subr.mxu0 0.0
    %528 = vmatpush1.msra.mxu0 0.0
    %529 = vmatprep.subr.mxu0 0.0
    %530 = vmatpush1.msra.mxu0 0.0
    %531 = vmatprep.subr.mxu0 0.0
    %532 = vmatpush1.msra.mxu0 0.0
    %533 = vmatprep.subr.mxu0 0.0
    %534 = vmatpush1.msra.mxu0 0.0
    %535 = vmatprep.subr.mxu0 0.0
    %536 = vmatpush1.msra.mxu0 0.0
    %537 = vmatprep.subr.mxu0 0.0
    %538 = vmatpush1.msra.mxu0 0.0
    %539 = vmatprep.subr.mxu0 0.0
    %540 = vmatpush1.msra.mxu0 0.0
    %541 = vmatprep.subr.mxu0 0.0
    %542 = vmatpush1.msra.mxu0 0.0
    %543 = vmatprep.subr.mxu0 0.0
    %544 = vmatpush1.msra.mxu0 0.0
    %545 = vmatprep.subr.mxu0 0.0
    %546 = vmatpush1.msra.mxu0 0.0
    %547 = vmatprep.subr.mxu0 0.0
    %548 = vmatpush1.msra.mxu0 0.0
    %549 = vmatprep.subr.mxu0 0.0
    %550 = vmatpush1.msra.mxu0 0.0
    %551 = vmatprep.subr.mxu0 0.0
    %552 = vmatpush1.msra.mxu0 0.0
    %553 = vmatprep.subr.mxu0 0.0
    %554 = vmatpush1.msra.mxu0 0.0
    %555 = vmatprep.subr.mxu0 0.0
    %556 = vmatpush1.msra.mxu0 0.0
    %557 = vmatprep.subr.mxu0 0.0
    %558 = vmatpush1.msra.mxu0 0.0
    %559 = vmatprep.subr.mxu0 0.0
    %560 = vmatpush1.msra.mxu0 0.0
    %561 = vmatprep.subr.mxu0 0.0
    %562 = vmatpush1.msra.mxu0 0.0
    %563 = vmatprep.subr.mxu0 0.0
    %564 = vmatpush1.msra.mxu0 0.0
    %565 = vmatprep.subr.mxu0 0.0
    %566 = vmatpush1.msra.mxu0 0.0
    %567 = vmatprep.subr.mxu0 0.0
    %568 = vmatpush1.msra.mxu0 0.0
    %569 = vmatprep.subr.mxu0 0.0
    %570 = vmatpush1.msra.mxu0 0.0
    %571 = vmatprep.subr.mxu0 0.0
    %572 = vmatpush1.msra.mxu0 0.0
    %573 = vmatprep.mubr.f32.mxu0 0.0
    %574 = vmatmul.mubr.f32.gmra.mrb[0].mxu0 %v507
    %v575 = vpop.f32.mrb[0].mxu0
    %v576 = vadd.f32 %v211, %v575
    %v577 = vpop.f32.mrb[0].mxu0
    %578 = vdwg.mxu0
    %v580 = vrot.slane %v576, 7
    %v583 = vadd.f32 %v199, %v580
    %v584 = vadd.f32 %v204, %v576
    %v585 = vxor.u32 %v583, 2147483648
    %v586 = vxor.u32 %v584, 2147483648
    %v587 = vmul.f32 %v585, 1.442695
    %v588 = vpow.pop %v587
    %v589 = vmul.f32 %v586, 1.442695
    %v590 = vpow.pop %v589
    %v591 = vadd.f32 %v588, 1.0
    %v592 = vadd.f32 %v590, 1.0
    %v593 = vrcp.pop %v591
    %v594 = vmul.f32 1.0, %v593
    %v595 = vrcp.pop %v592
    %v596 = vmul.f32 1.0, %v595
    %597 = vrot.lane.b32.xlu0 %v580, 96
    %v598 = vpop.permute.xlu0 %597
    %599 = vrot.lane.b32.xlu0 %v576, 96
    %v600 = vpop.permute.xlu0 %599
    %v603 = vmul.f32 %v594, %v598
    %v604 = vmul.f32 %v596, %v600
    %607 = vrot.lane.b32.xlu0 %v603, 32
    %v608 = vpop.permute.xlu0 %607
    %609 = vrot.lane.b32.xlu0 %v604, 32
    %v610 = vpop.permute.xlu0 %609
    %v613 = vadd.f32 %v199, %v608
    %v614 = vadd.f32 %v204, %v610
    %v615 = vtanh.pop %v613
    %v616 = vtanh.pop %v614
    %v617 = vsub.f32 1.0, %v594
    %v618 = vsub.f32 1.0, %v596
    %621 = vrot.lane.b32.xlu0 %v615, 112
    %v622 = vpop.permute.xlu0 %621
    %623 = vrot.lane.b32.xlu0 %v616, 112
    %v624 = vpop.permute.xlu0 %623
    %v627 = vmul.f32 %v617, %v622
    %v628 = vmul.f32 %v618, %v624
    %v629 = vrot.slane %v490, 7
    %630 = vrot.lane.b32.xlu0 %v629, 16
    %v631 = vpop.permute.xlu0 %630
    %632 = vrot.lane.b32.xlu0 %v490, 16
    %v633 = vpop.permute.xlu0 %632
    %v636 = vmul.f32 %v594, %v631
    %v637 = vmul.f32 %v596, %v633
    %v638 = vadd.f32 %v627, %v636
    %v639 = vadd.f32 %v628, %v637
    %v641 = vsel %vm213, %v505, 0
    %643 = vmatprep.subr.mxu0 0.0
    %644 = vmatpush1.msra.mxu0 %v111
    %645 = vmatprep.subr.mxu0 0.0
    %646 = vmatpush1.msra.mxu0 %v112
    %647 = vmatprep.subr.mxu0 0.0
    %648 = vmatpush1.msra.mxu0 0.0
    %649 = vmatprep.subr.mxu0 0.0
    %650 = vmatpush1.msra.mxu0 0.0
    %651 = vmatprep.subr.mxu0 0.0
    %652 = vmatpush1.msra.mxu0 0.0
    %653 = vmatprep.subr.mxu0 0.0
    %654 = vmatpush1.msra.mxu0 0.0
    %655 = vmatprep.subr.mxu0 0.0
    %656 = vmatpush1.msra.mxu0 0.0
    %657 = vmatprep.subr.mxu0 0.0
    %658 = vmatpush1.msra.mxu0 0.0
    %659 = vmatprep.subr.mxu0 0.0
    %660 = vmatpush1.msra.mxu0 0.0
    %661 = vmatprep.subr.mxu0 0.0
    %662 = vmatpush1.msra.mxu0 0.0
    %663 = vmatprep.subr.mxu0 0.0
    %664 = vmatpush1.msra.mxu0 0.0
    %665 = vmatprep.subr.mxu0 0.0
    %666 = vmatpush1.msra.mxu0 0.0
    %667 = vmatprep.subr.mxu0 0.0
    %668 = vmatpush1.msra.mxu0 0.0
    %669 = vmatprep.subr.mxu0 0.0
    %670 = vmatpush1.msra.mxu0 0.0
    %671 = vmatprep.subr.mxu0 0.0
    %672 = vmatpush1.msra.mxu0 0.0
    %673 = vmatprep.subr.mxu0 0.0
    %674 = vmatpush1.msra.mxu0 0.0
    %675 = vmatprep.subr.mxu0 0.0
    %676 = vmatpush1.msra.mxu0 0.0
    %677 = vmatprep.subr.mxu0 0.0
    %678 = vmatpush1.msra.mxu0 0.0
    %679 = vmatprep.subr.mxu0 0.0
    %680 = vmatpush1.msra.mxu0 0.0
    %681 = vmatprep.subr.mxu0 0.0
    %682 = vmatpush1.msra.mxu0 0.0
    %683 = vmatprep.subr.mxu0 0.0
    %684 = vmatpush1.msra.mxu0 0.0
    %685 = vmatprep.subr.mxu0 0.0
    %686 = vmatpush1.msra.mxu0 0.0
    %687 = vmatprep.subr.mxu0 0.0
    %688 = vmatpush1.msra.mxu0 0.0
    %689 = vmatprep.subr.mxu0 0.0
    %690 = vmatpush1.msra.mxu0 0.0
    %691 = vmatprep.subr.mxu0 0.0
    %692 = vmatpush1.msra.mxu0 0.0
    %693 = vmatprep.subr.mxu0 0.0
    %694 = vmatpush1.msra.mxu0 0.0
    %695 = vmatprep.subr.mxu0 0.0
    %696 = vmatpush1.msra.mxu0 0.0
    %697 = vmatprep.subr.mxu0 0.0
    %698 = vmatpush1.msra.mxu0 0.0
    %699 = vmatprep.subr.mxu0 0.0
    %700 = vmatpush1.msra.mxu0 0.0
    %701 = vmatprep.subr.mxu0 0.0
    %702 = vmatpush1.msra.mxu0 0.0
    %703 = vmatprep.subr.mxu0 0.0
    %704 = vmatpush1.msra.mxu0 0.0
    %705 = vmatprep.subr.mxu0 0.0
    %706 = vmatpush1.msra.mxu0 0.0
    %707 = vmatprep.mubr.f32.mxu0 0.0
    %708 = vmatmul.mubr.f32.gmra.mrb[0].mxu0 %v641
    %v709 = vpop.f32.mrb[0].mxu0
    %v710 = vadd.f32 %v345, %v709
    %v711 = vpop.f32.mrb[0].mxu0
    %712 = vdwg.mxu0
    %v714 = vrot.slane %v710, 2
    %v715 = vrot.slane %v710, 3
    %716 = vrot.lane.b32.xlu0 %v714, 48
    %v717 = vpop.permute.xlu0 %716
    %718 = vrot.lane.b32.xlu0 %v715, 48
    %v719 = vpop.permute.xlu0 %718
    %v722 = vadd.f32 %v199, %v717
    %v723 = vadd.f32 %v204, %v719
    %v724 = vxor.u32 %v722, 2147483648
    %v725 = vxor.u32 %v723, 2147483648
    %v726 = vmul.f32 %v724, 1.442695
    %v727 = vpow.pop %v726
    %v728 = vmul.f32 %v725, 1.442695
    %v729 = vpow.pop %v728
    %v730 = vadd.f32 %v727, 1.0
    %v731 = vadd.f32 %v729, 1.0
    %v732 = vrcp.pop %v730
    %v733 = vmul.f32 1.0, %v732
    %v734 = vrcp.pop %v731
    %v735 = vmul.f32 1.0, %v734
    %736 = vrot.lane.b32.xlu0 %v714, 16
    %v737 = vpop.permute.xlu0 %736
    %738 = vrot.lane.b32.xlu0 %v715, 16
    %v739 = vpop.permute.xlu0 %738
    %v742 = vmul.f32 %v733, %v737
    %v743 = vmul.f32 %v735, %v739
    %746 = vrot.lane.b32.xlu0 %v742, 32
    %v747 = vpop.permute.xlu0 %746
    %748 = vrot.lane.b32.xlu0 %v743, 32
    %v749 = vpop.permute.xlu0 %748
    %v752 = vadd.f32 %v199, %v747
    %v753 = vadd.f32 %v204, %v749
    %v754 = vtanh.pop %v752
    %v755 = vtanh.pop %v753
    %v756 = vsub.f32 1.0, %v733
    %v757 = vsub.f32 1.0, %v735
    %760 = vrot.lane.b32.xlu0 %v754, 112
    %v761 = vpop.permute.xlu0 %760
    %762 = vrot.lane.b32.xlu0 %v755, 112
    %v763 = vpop.permute.xlu0 %762
    %v766 = vmul.f32 %v756, %v761
    %v767 = vmul.f32 %v757, %v763
    %v768 = vrot.slane %v505, 2
    %v769 = vrot.slane %v505, 3
    %770 = vrot.lane.b32.xlu0 %v768, 64
    %v771 = vpop.permute.xlu0 %770
    %772 = vrot.lane.b32.xlu0 %v769, 64
    %v773 = vpop.permute.xlu0 %772
    %v776 = vmul.f32 %v733, %v771
    %v777 = vmul.f32 %v735, %v773
    %v778 = vadd.f32 %v766, %v776
    %v779 = vadd.f32 %v767, %v777
    %vm780 = vcmp.gt.s32.totalorder %v107, 1
    %v781 = vsel %vm780, 1, 0
    %782 = vset.pattern.permute.xlu0 0
    %783 = vperm.xlu0 %782, %v781
    %v784 = vpop.permute.xlu0 %783
    %vm785 = vcmp.eq.s32.totalorder %v784, 1
    %v788 = vrot.slane %v638, 1
    %v789 = vsel %vm485, %v639, %v788
    %790 = vrot.lane.b32.xlu0 %v789, 112
    %v791 = vpop.permute.xlu0 %790
    %v793 = vsel %vm785, %v791, %v490
    %vm794 = vcmp.gt.s32.totalorder %v107, 6
    %v795 = vsel %vm794, 1, 0
    %796 = vset.pattern.permute.xlu0 0
    %797 = vperm.xlu0 %796, %v795
    %v798 = vpop.permute.xlu0 %797
    %vm799 = vcmp.eq.s32.totalorder %v798, 1
    %v802 = vrot.slane %v778, 6
    %v803 = vrot.slane %v779, 5
    %v804 = vsel %vm485, %v803, %v802
    %805 = vrot.lane.b32.xlu0 %v804, 64
    %v806 = vpop.permute.xlu0 %805
    %v808 = vsel %vm799, %v806, %v505
    %v810 = vsel %vm213, %v793, 0
    %812 = vmatprep.subr.mxu0 0.0
    %813 = vmatpush1.msra.mxu0 %v108
    %814 = vmatprep.subr.mxu0 0.0
    %815 = vmatpush1.msra.mxu0 %v109
    %816 = vmatprep.subr.mxu0 0.0
    %817 = vmatpush1.msra.mxu0 0.0
    %818 = vmatprep.subr.mxu0 0.0
    %819 = vmatpush1.msra.mxu0 0.0
    %820 = vmatprep.subr.mxu0 0.0
    %821 = vmatpush1.msra.mxu0 0.0
    %822 = vmatprep.subr.mxu0 0.0
    %823 = vmatpush1.msra.mxu0 0.0
    %824 = vmatprep.subr.mxu0 0.0
    %825 = vmatpush1.msra.mxu0 0.0
    %826 = vmatprep.subr.mxu0 0.0
    %827 = vmatpush1.msra.mxu0 0.0
    %828 = vmatprep.subr.mxu0 0.0
    %829 = vmatpush1.msra.mxu0 0.0
    %830 = vmatprep.subr.mxu0 0.0
    %831 = vmatpush1.msra.mxu0 0.0
    %832 = vmatprep.subr.mxu0 0.0
    %833 = vmatpush1.msra.mxu0 0.0
    %834 = vmatprep.subr.mxu0 0.0
    %835 = vmatpush1.msra.mxu0 0.0
    %836 = vmatprep.subr.mxu0 0.0
    %837 = vmatpush1.msra.mxu0 0.0
    %838 = vmatprep.subr.mxu0 0.0
    %839 = vmatpush1.msra.mxu0 0.0
    %840 = vmatprep.subr.mxu0 0.0
    %841 = vmatpush1.msra.mxu0 0.0
    %842 = vmatprep.subr.mxu0 0.0
    %843 = vmatpush1.msra.mxu0 0.0
    %844 = vmatprep.subr.mxu0 0.0
    %845 = vmatpush1.msra.mxu0 0.0
    %846 = vmatprep.subr.mxu0 0.0
    %847 = vmatpush1.msra.mxu0 0.0
    %848 = vmatprep.subr.mxu0 0.0
    %849 = vmatpush1.msra.mxu0 0.0
    %850 = vmatprep.subr.mxu0 0.0
    %851 = vmatpush1.msra.mxu0 0.0
    %852 = vmatprep.subr.mxu0 0.0
    %853 = vmatpush1.msra.mxu0 0.0
    %854 = vmatprep.subr.mxu0 0.0
    %855 = vmatpush1.msra.mxu0 0.0
    %856 = vmatprep.subr.mxu0 0.0
    %857 = vmatpush1.msra.mxu0 0.0
    %858 = vmatprep.subr.mxu0 0.0
    %859 = vmatpush1.msra.mxu0 0.0
    %860 = vmatprep.subr.mxu0 0.0
    %861 = vmatpush1.msra.mxu0 0.0
    %862 = vmatprep.subr.mxu0 0.0
    %863 = vmatpush1.msra.mxu0 0.0
    %864 = vmatprep.subr.mxu0 0.0
    %865 = vmatpush1.msra.mxu0 0.0
    %866 = vmatprep.subr.mxu0 0.0
    %867 = vmatpush1.msra.mxu0 0.0
    %868 = vmatprep.subr.mxu0 0.0
    %869 = vmatpush1.msra.mxu0 0.0
    %870 = vmatprep.subr.mxu0 0.0
    %871 = vmatpush1.msra.mxu0 0.0
    %872 = vmatprep.subr.mxu0 0.0
    %873 = vmatpush1.msra.mxu0 0.0
    %874 = vmatprep.subr.mxu0 0.0
    %875 = vmatpush1.msra.mxu0 0.0
    %876 = vmatprep.mubr.f32.mxu0 0.0
    %877 = vmatmul.mubr.f32.gmra.mrb[0].mxu0 %v810
    %v878 = vpop.f32.mrb[0].mxu0
    %v879 = vadd.f32 %v211, %v878
    %v880 = vpop.f32.mrb[0].mxu0
    %881 = vdwg.mxu0
    %v883 = vrot.slane %v879, 6
    %v884 = vrot.slane %v879, 7
    %v887 = vadd.f32 %v199, %v883
    %v888 = vadd.f32 %v204, %v884
    %v889 = vxor.u32 %v887, 2147483648
    %v890 = vxor.u32 %v888, 2147483648
    %v891 = vmul.f32 %v889, 1.442695
    %v892 = vpow.pop %v891
    %v893 = vmul.f32 %v890, 1.442695
    %v894 = vpow.pop %v893
    %v895 = vadd.f32 %v892, 1.0
    %v896 = vadd.f32 %v894, 1.0
    %v897 = vrcp.pop %v895
    %v898 = vmul.f32 1.0, %v897
    %v899 = vrcp.pop %v896
    %v900 = vmul.f32 1.0, %v899
    %901 = vrot.lane.b32.xlu0 %v883, 96
    %v902 = vpop.permute.xlu0 %901
    %903 = vrot.lane.b32.xlu0 %v884, 96
    %v904 = vpop.permute.xlu0 %903
    %v907 = vmul.f32 %v898, %v902
    %v908 = vmul.f32 %v900, %v904
    %911 = vrot.lane.b32.xlu0 %v907, 32
    %v912 = vpop.permute.xlu0 %911
    %913 = vrot.lane.b32.xlu0 %v908, 32
    %v914 = vpop.permute.xlu0 %913
    %v917 = vadd.f32 %v199, %v912
    %v918 = vadd.f32 %v204, %v914
    %v919 = vtanh.pop %v917
    %v920 = vtanh.pop %v918
    %v921 = vsub.f32 1.0, %v898
    %v922 = vsub.f32 1.0, %v900
    %925 = vrot.lane.b32.xlu0 %v919, 112
    %v926 = vpop.permute.xlu0 %925
    %927 = vrot.lane.b32.xlu0 %v920, 112
    %v928 = vpop.permute.xlu0 %927
    %v931 = vmul.f32 %v921, %v926
    %v932 = vmul.f32 %v922, %v928
    %v933 = vrot.slane %v793, 6
    %v934 = vrot.slane %v793, 7
    %935 = vrot.lane.b32.xlu0 %v933, 16
    %v936 = vpop.permute.xlu0 %935
    %937 = vrot.lane.b32.xlu0 %v934, 16
    %v938 = vpop.permute.xlu0 %937
    %v941 = vmul.f32 %v898, %v936
    %v942 = vmul.f32 %v900, %v938
    %v943 = vadd.f32 %v931, %v941
    %v944 = vadd.f32 %v932, %v942
    %v946 = vsel %vm213, %v808, 0
    %948 = vmatprep.subr.mxu0 0.0
    %949 = vmatpush1.msra.mxu0 %v111
    %950 = vmatprep.subr.mxu0 0.0
    %951 = vmatpush1.msra.mxu0 %v112
    %952 = vmatprep.subr.mxu0 0.0
    %953 = vmatpush1.msra.mxu0 0.0
    %954 = vmatprep.subr.mxu0 0.0
    %955 = vmatpush1.msra.mxu0 0.0
    %956 = vmatprep.subr.mxu0 0.0
    %957 = vmatpush1.msra.mxu0 0.0
    %958 = vmatprep.subr.mxu0 0.0
    %959 = vmatpush1.msra.mxu0 0.0
    %960 = vmatprep.subr.mxu0 0.0
    %961 = vmatpush1.msra.mxu0 0.0
    %962 = vmatprep.subr.mxu0 0.0
    %963 = vmatpush1.msra.mxu0 0.0
    %964 = vmatprep.subr.mxu0 0.0
    %965 = vmatpush1.msra.mxu0 0.0
    %966 = vmatprep.subr.mxu0 0.0
    %967 = vmatpush1.msra.mxu0 0.0
    %968 = vmatprep.subr.mxu0 0.0
    %969 = vmatpush1.msra.mxu0 0.0
    %970 = vmatprep.subr.mxu0 0.0
    %971 = vmatpush1.msra.mxu0 0.0
    %972 = vmatprep.subr.mxu0 0.0
    %973 = vmatpush1.msra.mxu0 0.0
    %974 = vmatprep.subr.mxu0 0.0
    %975 = vmatpush1.msra.mxu0 0.0
    %976 = vmatprep.subr.mxu0 0.0
    %977 = vmatpush1.msra.mxu0 0.0
    %978 = vmatprep.subr.mxu0 0.0
    %979 = vmatpush1.msra.mxu0 0.0
    %980 = vmatprep.subr.mxu0 0.0
    %981 = vmatpush1.msra.mxu0 0.0
    %982 = vmatprep.subr.mxu0 0.0
    %983 = vmatpush1.msra.mxu0 0.0
    %984 = vmatprep.subr.mxu0 0.0
    %985 = vmatpush1.msra.mxu0 0.0
    %986 = vmatprep.subr.mxu0 0.0
    %987 = vmatpush1.msra.mxu0 0.0
    %988 = vmatprep.subr.mxu0 0.0
    %989 = vmatpush1.msra.mxu0 0.0
    %990 = vmatprep.subr.mxu0 0.0
    %991 = vmatpush1.msra.mxu0 0.0
    %992 = vmatprep.subr.mxu0 0.0
    %993 = vmatpush1.msra.mxu0 0.0
    %994 = vmatprep.subr.mxu0 0.0
    %995 = vmatpush1.msra.mxu0 0.0
    %996 = vmatprep.subr.mxu0 0.0
    %997 = vmatpush1.msra.mxu0 0.0
    %998 = vmatprep.subr.mxu0 0.0
    %999 = vmatpush1.msra.mxu0 0.0
    %1000 = vmatprep.subr.mxu0 0.0
    %1001 = vmatpush1.msra.mxu0 0.0
    %1002 = vmatprep.subr.mxu0 0.0
    %1003 = vmatpush1.msra.mxu0 0.0
    %1004 = vmatprep.subr.mxu0 0.0
    %1005 = vmatpush1.msra.mxu0 0.0
    %1006 = vmatprep.subr.mxu0 0.0
    %1007 = vmatpush1.msra.mxu0 0.0
    %1008 = vmatprep.subr.mxu0 0.0
    %1009 = vmatpush1.msra.mxu0 0.0
    %1010 = vmatprep.subr.mxu0 0.0
    %1011 = vmatpush1.msra.mxu0 0.0
    %1012 = vmatprep.mubr.f32.mxu0 0.0
    %1013 = vmatmul.mubr.f32.gmra.mrb[0].mxu0 %v946
    %v1014 = vpop.f32.mrb[0].mxu0
    %v1015 = vadd.f32 %v345, %v1014
    %v1016 = vpop.f32.mrb[0].mxu0
    %1017 = vdwg.mxu0
    %v1019 = vrot.slane %v1015, 3
    %v1020 = vrot.slane %v1015, 4
    %1021 = vrot.lane.b32.xlu0 %v1019, 48
    %v1022 = vpop.permute.xlu0 %1021
    %1023 = vrot.lane.b32.xlu0 %v1020, 48
    %v1024 = vpop.permute.xlu0 %1023
    %v1027 = vadd.f32 %v199, %v1022
    %v1028 = vadd.f32 %v204, %v1024
    %v1029 = vxor.u32 %v1027, 2147483648
    %v1030 = vxor.u32 %v1028, 2147483648
    %v1031 = vmul.f32 %v1029, 1.442695
    %v1032 = vpow.pop %v1031
    %v1033 = vmul.f32 %v1030, 1.442695
    %v1034 = vpow.pop %v1033
    %v1035 = vadd.f32 %v1032, 1.0
    %v1036 = vadd.f32 %v1034, 1.0
    %v1037 = vrcp.pop %v1035
    %v1038 = vmul.f32 1.0, %v1037
    %v1039 = vrcp.pop %v1036
    %v1040 = vmul.f32 1.0, %v1039
    %1041 = vrot.lane.b32.xlu0 %v1019, 16
    %v1042 = vpop.permute.xlu0 %1041
    %1043 = vrot.lane.b32.xlu0 %v1020, 16
    %v1044 = vpop.permute.xlu0 %1043
    %v1047 = vmul.f32 %v1038, %v1042
    %v1048 = vmul.f32 %v1040, %v1044
    %1051 = vrot.lane.b32.xlu0 %v1047, 32
    %v1052 = vpop.permute.xlu0 %1051
    %1053 = vrot.lane.b32.xlu0 %v1048, 32
    %v1054 = vpop.permute.xlu0 %1053
    %v1057 = vadd.f32 %v199, %v1052
    %v1058 = vadd.f32 %v204, %v1054
    %v1059 = vtanh.pop %v1057
    %v1060 = vtanh.pop %v1058
    %v1061 = vsub.f32 1.0, %v1038
    %v1062 = vsub.f32 1.0, %v1040
    %1065 = vrot.lane.b32.xlu0 %v1059, 112
    %v1066 = vpop.permute.xlu0 %1065
    %1067 = vrot.lane.b32.xlu0 %v1060, 112
    %v1068 = vpop.permute.xlu0 %1067
    %v1071 = vmul.f32 %v1061, %v1066
    %v1072 = vmul.f32 %v1062, %v1068
    %v1073 = vrot.slane %v808, 3
    %v1074 = vrot.slane %v808, 4
    %1075 = vrot.lane.b32.xlu0 %v1073, 64
    %v1076 = vpop.permute.xlu0 %1075
    %1077 = vrot.lane.b32.xlu0 %v1074, 64
    %v1078 = vpop.permute.xlu0 %1077
    %v1081 = vmul.f32 %v1038, %v1076
    %v1082 = vmul.f32 %v1040, %v1078
    %v1083 = vadd.f32 %v1071, %v1081
    %v1084 = vadd.f32 %v1072, %v1082
    %vm1085 = vcmp.gt.s32.totalorder %v107, 2
    %v1086 = vsel %vm1085, 1, 0
    %1087 = vset.pattern.permute.xlu0 0
    %1088 = vperm.xlu0 %1087, %v1086
    %v1089 = vpop.permute.xlu0 %1088
    %vm1090 = vcmp.eq.s32.totalorder %v1089, 1
    %v1093 = vrot.slane %v943, 2
    %v1094 = vrot.slane %v944, 1
    %v1095 = vsel %vm485, %v1094, %v1093
    %1096 = vrot.lane.b32.xlu0 %v1095, 112
    %v1097 = vpop.permute.xlu0 %1096
    %v1099 = vsel %vm1090, %v1097, %v793
    %vm1100 = vcmp.gt.s32.totalorder %v107, 5
    %v1101 = vsel %vm1100, 1, 0
    %1102 = vset.pattern.permute.xlu0 0
    %1103 = vperm.xlu0 %1102, %v1101
    %v1104 = vpop.permute.xlu0 %1103
    %vm1105 = vcmp.eq.s32.totalorder %v1104, 1
    %v1108 = vrot.slane %v1083, 5
    %v1109 = vrot.slane %v1084, 4
    %v1110 = vsel %vm485, %v1109, %v1108
    %1111 = vrot.lane.b32.xlu0 %v1110, 64
    %v1112 = vpop.permute.xlu0 %1111
    %v1114 = vsel %vm1105, %v1112, %v808
    %v1116 = vsel %vm213, %v1099, 0
    %1118 = vmatprep.subr.mxu0 0.0
    %1119 = vmatpush1.msra.mxu0 %v108
    %1120 = vmatprep.subr.mxu0 0.0
    %1121 = vmatpush1.msra.mxu0 %v109
    %1122 = vmatprep.subr.mxu0 0.0
    %1123 = vmatpush1.msra.mxu0 0.0
    %1124 = vmatprep.subr.mxu0 0.0
    %1125 = vmatpush1.msra.mxu0 0.0
    %1126 = vmatprep.subr.mxu0 0.0
    %1127 = vmatpush1.msra.mxu0 0.0
    %1128 = vmatprep.subr.mxu0 0.0
    %1129 = vmatpush1.msra.mxu0 0.0
    %1130 = vmatprep.subr.mxu0 0.0
    %1131 = vmatpush1.msra.mxu0 0.0
    %1132 = vmatprep.subr.mxu0 0.0
    %1133 = vmatpush1.msra.mxu0 0.0
    %1134 = vmatprep.subr.mxu0 0.0
    %1135 = vmatpush1.msra.mxu0 0.0
    %1136 = vmatprep.subr.mxu0 0.0
    %1137 = vmatpush1.msra.mxu0 0.0
    %1138 = vmatprep.subr.mxu0 0.0
    %1139 = vmatpush1.msra.mxu0 0.0
    %1140 = vmatprep.subr.mxu0 0.0
    %1141 = vmatpush1.msra.mxu0 0.0
    %1142 = vmatprep.subr.mxu0 0.0
    %1143 = vmatpush1.msra.mxu0 0.0
    %1144 = vmatprep.subr.mxu0 0.0
    %1145 = vmatpush1.msra.mxu0 0.0
    %1146 = vmatprep.subr.mxu0 0.0
    %1147 = vmatpush1.msra.mxu0 0.0
    %1148 = vmatprep.subr.mxu0 0.0
    %1149 = vmatpush1.msra.mxu0 0.0
    %1150 = vmatprep.subr.mxu0 0.0
    %1151 = vmatpush1.msra.mxu0 0.0
    %1152 = vmatprep.subr.mxu0 0.0
    %1153 = vmatpush1.msra.mxu0 0.0
    %1154 = vmatprep.subr.mxu0 0.0
    %1155 = vmatpush1.msra.mxu0 0.0
    %1156 = vmatprep.subr.mxu0 0.0
    %1157 = vmatpush1.msra.mxu0 0.0
    %1158 = vmatprep.subr.mxu0 0.0
    %1159 = vmatpush1.msra.mxu0 0.0
    %1160 = vmatprep.subr.mxu0 0.0
    %1161 = vmatpush1.msra.mxu0 0.0
    %1162 = vmatprep.subr.mxu0 0.0
    %1163 = vmatpush1.msra.mxu0 0.0
    %1164 = vmatprep.subr.mxu0 0.0
    %1165 = vmatpush1.msra.mxu0 0.0
    %1166 = vmatprep.subr.mxu0 0.0
    %1167 = vmatpush1.msra.mxu0 0.0
    %1168 = vmatprep.subr.mxu0 0.0
    %1169 = vmatpush1.msra.mxu0 0.0
    %1170 = vmatprep.subr.mxu0 0.0
    %1171 = vmatpush1.msra.mxu0 0.0
    %1172 = vmatprep.subr.mxu0 0.0
    %1173 = vmatpush1.msra.mxu0 0.0
    %1174 = vmatprep.subr.mxu0 0.0
    %1175 = vmatpush1.msra.mxu0 0.0
    %1176 = vmatprep.subr.mxu0 0.0
    %1177 = vmatpush1.msra.mxu0 0.0
    %1178 = vmatprep.subr.mxu0 0.0
    %1179 = vmatpush1.msra.mxu0 0.0
    %1180 = vmatprep.subr.mxu0 0.0
    %1181 = vmatpush1.msra.mxu0 0.0
    %1182 = vmatprep.mubr.f32.mxu0 0.0
    %1183 = vmatmul.mubr.f32.gmra.mrb[0].mxu0 %v1116
    %v1184 = vpop.f32.mrb[0].mxu0
    %v1185 = vadd.f32 %v211, %v1184
    %v1186 = vpop.f32.mrb[0].mxu0
    %1187 = vdwg.mxu0
    %v1189 = vrot.slane %v1185, 5
    %v1190 = vrot.slane %v1185, 6
    %v1193 = vadd.f32 %v199, %v1189
    %v1194 = vadd.f32 %v204, %v1190
    %v1195 = vxor.u32 %v1193, 2147483648
    %v1196 = vxor.u32 %v1194, 2147483648
    %v1197 = vmul.f32 %v1195, 1.442695
    %v1198 = vpow.pop %v1197
    %v1199 = vmul.f32 %v1196, 1.442695
    %v1200 = vpow.pop %v1199
    %v1201 = vadd.f32 %v1198, 1.0
    %v1202 = vadd.f32 %v1200, 1.0
    %v1203 = vrcp.pop %v1201
    %v1204 = vmul.f32 1.0, %v1203
    %v1205 = vrcp.pop %v1202
    %v1206 = vmul.f32 1.0, %v1205
    %1207 = vrot.lane.b32.xlu0 %v1189, 96
    %v1208 = vpop.permute.xlu0 %1207
    %1209 = vrot.lane.b32.xlu0 %v1190, 96
    %v1210 = vpop.permute.xlu0 %1209
    %v1213 = vmul.f32 %v1204, %v1208
    %v1214 = vmul.f32 %v1206, %v1210
    %1217 = vrot.lane.b32.xlu0 %v1213, 32
    %v1218 = vpop.permute.xlu0 %1217
    %1219 = vrot.lane.b32.xlu0 %v1214, 32
    %v1220 = vpop.permute.xlu0 %1219
    %v1223 = vadd.f32 %v199, %v1218
    %v1224 = vadd.f32 %v204, %v1220
    %v1225 = vtanh.pop %v1223
    %v1226 = vtanh.pop %v1224
    %v1227 = vsub.f32 1.0, %v1204
    %v1228 = vsub.f32 1.0, %v1206
    %1231 = vrot.lane.b32.xlu0 %v1225, 112
    %v1232 = vpop.permute.xlu0 %1231
    %1233 = vrot.lane.b32.xlu0 %v1226, 112
    %v1234 = vpop.permute.xlu0 %1233
    %v1237 = vmul.f32 %v1227, %v1232
    %v1238 = vmul.f32 %v1228, %v1234
    %v1239 = vrot.slane %v1099, 5
    %v1240 = vrot.slane %v1099, 6
    %1241 = vrot.lane.b32.xlu0 %v1239, 16
    %v1242 = vpop.permute.xlu0 %1241
    %1243 = vrot.lane.b32.xlu0 %v1240, 16
    %v1244 = vpop.permute.xlu0 %1243
    %v1247 = vmul.f32 %v1204, %v1242
    %v1248 = vmul.f32 %v1206, %v1244
    %v1249 = vadd.f32 %v1237, %v1247
    %v1250 = vadd.f32 %v1238, %v1248
    %v1252 = vsel %vm213, %v1114, 0
    %1254 = vmatprep.subr.mxu0 0.0
    %1255 = vmatpush1.msra.mxu0 %v111
    %1256 = vmatprep.subr.mxu0 0.0
    %1257 = vmatpush1.msra.mxu0 %v112
    %1258 = vmatprep.subr.mxu0 0.0
    %1259 = vmatpush1.msra.mxu0 0.0
    %1260 = vmatprep.subr.mxu0 0.0
    %1261 = vmatpush1.msra.mxu0 0.0
    %1262 = vmatprep.subr.mxu0 0.0
    %1263 = vmatpush1.msra.mxu0 0.0
    %1264 = vmatprep.subr.mxu0 0.0
    %1265 = vmatpush1.msra.mxu0 0.0
    %1266 = vmatprep.subr.mxu0 0.0
    %1267 = vmatpush1.msra.mxu0 0.0
    %1268 = vmatprep.subr.mxu0 0.0
    %1269 = vmatpush1.msra.mxu0 0.0
    %1270 = vmatprep.subr.mxu0 0.0
    %1271 = vmatpush1.msra.mxu0 0.0
    %1272 = vmatprep.subr.mxu0 0.0
    %1273 = vmatpush1.msra.mxu0 0.0
    %1274 = vmatprep.subr.mxu0 0.0
    %1275 = vmatpush1.msra.mxu0 0.0
    %1276 = vmatprep.subr.mxu0 0.0
    %1277 = vmatpush1.msra.mxu0 0.0
    %1278 = vmatprep.subr.mxu0 0.0
    %1279 = vmatpush1.msra.mxu0 0.0
    %1280 = vmatprep.subr.mxu0 0.0
    %1281 = vmatpush1.msra.mxu0 0.0
    %1282 = vmatprep.subr.mxu0 0.0
    %1283 = vmatpush1.msra.mxu0 0.0
    %1284 = vmatprep.subr.mxu0 0.0
    %1285 = vmatpush1.msra.mxu0 0.0
    %1286 = vmatprep.subr.mxu0 0.0
    %1287 = vmatpush1.msra.mxu0 0.0
    %1288 = vmatprep.subr.mxu0 0.0
    %1289 = vmatpush1.msra.mxu0 0.0
    %1290 = vmatprep.subr.mxu0 0.0
    %1291 = vmatpush1.msra.mxu0 0.0
    %1292 = vmatprep.subr.mxu0 0.0
    %1293 = vmatpush1.msra.mxu0 0.0
    %1294 = vmatprep.subr.mxu0 0.0
    %1295 = vmatpush1.msra.mxu0 0.0
    %1296 = vmatprep.subr.mxu0 0.0
    %1297 = vmatpush1.msra.mxu0 0.0
    %1298 = vmatprep.subr.mxu0 0.0
    %1299 = vmatpush1.msra.mxu0 0.0
    %1300 = vmatprep.subr.mxu0 0.0
    %1301 = vmatpush1.msra.mxu0 0.0
    %1302 = vmatprep.subr.mxu0 0.0
    %1303 = vmatpush1.msra.mxu0 0.0
    %1304 = vmatprep.subr.mxu0 0.0
    %1305 = vmatpush1.msra.mxu0 0.0
    %1306 = vmatprep.subr.mxu0 0.0
    %1307 = vmatpush1.msra.mxu0 0.0
    %1308 = vmatprep.subr.mxu0 0.0
    %1309 = vmatpush1.msra.mxu0 0.0
    %1310 = vmatprep.subr.mxu0 0.0
    %1311 = vmatpush1.msra.mxu0 0.0
    %1312 = vmatprep.subr.mxu0 0.0
    %1313 = vmatpush1.msra.mxu0 0.0
    %1314 = vmatprep.subr.mxu0 0.0
    %1315 = vmatpush1.msra.mxu0 0.0
    %1316 = vmatprep.subr.mxu0 0.0
    %1317 = vmatpush1.msra.mxu0 0.0
    %1318 = vmatprep.mubr.f32.mxu0 0.0
    %1319 = vmatmul.mubr.f32.gmra.mrb[0].mxu0 %v1252
    %v1320 = vpop.f32.mrb[0].mxu0
    %v1321 = vadd.f32 %v345, %v1320
    %v1322 = vpop.f32.mrb[0].mxu0
    %1323 = vdwg.mxu0
    %v1325 = vrot.slane %v1321, 4
    %v1326 = vrot.slane %v1321, 5
    %1327 = vrot.lane.b32.xlu0 %v1325, 48
    %v1328 = vpop.permute.xlu0 %1327
    %1329 = vrot.lane.b32.xlu0 %v1326, 48
    %v1330 = vpop.permute.xlu0 %1329
    %v1333 = vadd.f32 %v199, %v1328
    %v1334 = vadd.f32 %v204, %v1330
    %v1335 = vxor.u32 %v1333, 2147483648
    %v1336 = vxor.u32 %v1334, 2147483648
    %v1337 = vmul.f32 %v1335, 1.442695
    %v1338 = vpow.pop %v1337
    %v1339 = vmul.f32 %v1336, 1.442695
    %v1340 = vpow.pop %v1339
    %v1341 = vadd.f32 %v1338, 1.0
    %v1342 = vadd.f32 %v1340, 1.0
    %v1343 = vrcp.pop %v1341
    %v1344 = vmul.f32 1.0, %v1343
    %v1345 = vrcp.pop %v1342
    %v1346 = vmul.f32 1.0, %v1345
    %1347 = vrot.lane.b32.xlu0 %v1325, 16
    %v1348 = vpop.permute.xlu0 %1347
    %1349 = vrot.lane.b32.xlu0 %v1326, 16
    %v1350 = vpop.permute.xlu0 %1349
    %v1353 = vmul.f32 %v1344, %v1348
    %v1354 = vmul.f32 %v1346, %v1350
    %1357 = vrot.lane.b32.xlu0 %v1353, 32
    %v1358 = vpop.permute.xlu0 %1357
    %1359 = vrot.lane.b32.xlu0 %v1354, 32
    %v1360 = vpop.permute.xlu0 %1359
    %v1363 = vadd.f32 %v199, %v1358
    %v1364 = vadd.f32 %v204, %v1360
    %v1365 = vtanh.pop %v1363
    %v1366 = vtanh.pop %v1364
    %v1367 = vsub.f32 1.0, %v1344
    %v1368 = vsub.f32 1.0, %v1346
    %1371 = vrot.lane.b32.xlu0 %v1365, 112
    %v1372 = vpop.permute.xlu0 %1371
    %1373 = vrot.lane.b32.xlu0 %v1366, 112
    %v1374 = vpop.permute.xlu0 %1373
    %v1377 = vmul.f32 %v1367, %v1372
    %v1378 = vmul.f32 %v1368, %v1374
    %v1379 = vrot.slane %v1114, 4
    %v1380 = vrot.slane %v1114, 5
    %1381 = vrot.lane.b32.xlu0 %v1379, 64
    %v1382 = vpop.permute.xlu0 %1381
    %1383 = vrot.lane.b32.xlu0 %v1380, 64
    %v1384 = vpop.permute.xlu0 %1383
    %v1387 = vmul.f32 %v1344, %v1382
    %v1388 = vmul.f32 %v1346, %v1384
    %v1389 = vadd.f32 %v1377, %v1387
    %v1390 = vadd.f32 %v1378, %v1388
    %vm1391 = vcmp.gt.s32.totalorder %v107, 3
    %v1392 = vsel %vm1391, 1, 0
    %1393 = vset.pattern.permute.xlu0 0
    %1394 = vperm.xlu0 %1393, %v1392
    %v1395 = vpop.permute.xlu0 %1394
    %vm1396 = vcmp.eq.s32.totalorder %v1395, 1
    %v1399 = vrot.slane %v1249, 3
    %v1400 = vrot.slane %v1250, 2
    %v1401 = vsel %vm485, %v1400, %v1399
    %1402 = vrot.lane.b32.xlu0 %v1401, 112
    %v1403 = vpop.permute.xlu0 %1402
    %v1405 = vsel %vm1396, %v1403, %v1099
    %vm1406 = vcmp.gt.s32.totalorder %v107, 4
    %v1407 = vsel %vm1406, 1, 0
    %1408 = vset.pattern.permute.xlu0 0
    %1409 = vperm.xlu0 %1408, %v1407
    %v1410 = vpop.permute.xlu0 %1409
    %vm1411 = vcmp.eq.s32.totalorder %v1410, 1
    %v1414 = vrot.slane %v1389, 4
    %v1415 = vrot.slane %v1390, 3
    %v1416 = vsel %vm485, %v1415, %v1414
    %1417 = vrot.lane.b32.xlu0 %v1416, 64
    %v1418 = vpop.permute.xlu0 %1417
    %v1420 = vsel %vm1411, %v1418, %v1114
    %v1422 = vsel %vm213, %v1405, 0
    %1424 = vmatprep.subr.mxu0 0.0
    %1425 = vmatpush1.msra.mxu0 %v108
    %1426 = vmatprep.subr.mxu0 0.0
    %1427 = vmatpush1.msra.mxu0 %v109
    %1428 = vmatprep.subr.mxu0 0.0
    %1429 = vmatpush1.msra.mxu0 0.0
    %1430 = vmatprep.subr.mxu0 0.0
    %1431 = vmatpush1.msra.mxu0 0.0
    %1432 = vmatprep.subr.mxu0 0.0
    %1433 = vmatpush1.msra.mxu0 0.0
    %1434 = vmatprep.subr.mxu0 0.0
    %1435 = vmatpush1.msra.mxu0 0.0
    %1436 = vmatprep.subr.mxu0 0.0
    %1437 = vmatpush1.msra.mxu0 0.0
    %1438 = vmatprep.subr.mxu0 0.0
    %1439 = vmatpush1.msra.mxu0 0.0
    %1440 = vmatprep.subr.mxu0 0.0
    %1441 = vmatpush1.msra.mxu0 0.0
    %1442 = vmatprep.subr.mxu0 0.0
    %1443 = vmatpush1.msra.mxu0 0.0
    %1444 = vmatprep.subr.mxu0 0.0
    %1445 = vmatpush1.msra.mxu0 0.0
    %1446 = vmatprep.subr.mxu0 0.0
    %1447 = vmatpush1.msra.mxu0 0.0
    %1448 = vmatprep.subr.mxu0 0.0
    %1449 = vmatpush1.msra.mxu0 0.0
    %1450 = vmatprep.subr.mxu0 0.0
    %1451 = vmatpush1.msra.mxu0 0.0
    %1452 = vmatprep.subr.mxu0 0.0
    %1453 = vmatpush1.msra.mxu0 0.0
    %1454 = vmatprep.subr.mxu0 0.0
    %1455 = vmatpush1.msra.mxu0 0.0
    %1456 = vmatprep.subr.mxu0 0.0
    %1457 = vmatpush1.msra.mxu0 0.0
    %1458 = vmatprep.subr.mxu0 0.0
    %1459 = vmatpush1.msra.mxu0 0.0
    %1460 = vmatprep.subr.mxu0 0.0
    %1461 = vmatpush1.msra.mxu0 0.0
    %1462 = vmatprep.subr.mxu0 0.0
    %1463 = vmatpush1.msra.mxu0 0.0
    %1464 = vmatprep.subr.mxu0 0.0
    %1465 = vmatpush1.msra.mxu0 0.0
    %1466 = vmatprep.subr.mxu0 0.0
    %1467 = vmatpush1.msra.mxu0 0.0
    %1468 = vmatprep.subr.mxu0 0.0
    %1469 = vmatpush1.msra.mxu0 0.0
    %1470 = vmatprep.subr.mxu0 0.0
    %1471 = vmatpush1.msra.mxu0 0.0
    %1472 = vmatprep.subr.mxu0 0.0
    %1473 = vmatpush1.msra.mxu0 0.0
    %1474 = vmatprep.subr.mxu0 0.0
    %1475 = vmatpush1.msra.mxu0 0.0
    %1476 = vmatprep.subr.mxu0 0.0
    %1477 = vmatpush1.msra.mxu0 0.0
    %1478 = vmatprep.subr.mxu0 0.0
    %1479 = vmatpush1.msra.mxu0 0.0
    %1480 = vmatprep.subr.mxu0 0.0
    %1481 = vmatpush1.msra.mxu0 0.0
    %1482 = vmatprep.subr.mxu0 0.0
    %1483 = vmatpush1.msra.mxu0 0.0
    %1484 = vmatprep.subr.mxu0 0.0
    %1485 = vmatpush1.msra.mxu0 0.0
    %1486 = vmatprep.subr.mxu0 0.0
    %1487 = vmatpush1.msra.mxu0 0.0
    %1488 = vmatprep.mubr.f32.mxu0 0.0
    %1489 = vmatmul.mubr.f32.gmra.mrb[0].mxu0 %v1422
    %v1490 = vpop.f32.mrb[0].mxu0
    %v1491 = vadd.f32 %v211, %v1490
    %v1492 = vpop.f32.mrb[0].mxu0
    %1493 = vdwg.mxu0
    %v1495 = vrot.slane %v1491, 4
    %v1496 = vrot.slane %v1491, 5
    %v1499 = vadd.f32 %v199, %v1495
    %v1500 = vadd.f32 %v204, %v1496
    %v1501 = vxor.u32 %v1499, 2147483648
    %v1502 = vxor.u32 %v1500, 2147483648
    %v1503 = vmul.f32 %v1501, 1.442695
    %v1504 = vpow.pop %v1503
    %v1505 = vmul.f32 %v1502, 1.442695
    %v1506 = vpow.pop %v1505
    %v1507 = vadd.f32 %v1504, 1.0
    %v1508 = vadd.f32 %v1506, 1.0
    %v1509 = vrcp.pop %v1507
    %v1510 = vmul.f32 1.0, %v1509
    %v1511 = vrcp.pop %v1508
    %v1512 = vmul.f32 1.0, %v1511
    %1513 = vrot.lane.b32.xlu0 %v1495, 96
    %v1514 = vpop.permute.xlu0 %1513
    %1515 = vrot.lane.b32.xlu0 %v1496, 96
    %v1516 = vpop.permute.xlu0 %1515
    %v1519 = vmul.f32 %v1510, %v1514
    %v1520 = vmul.f32 %v1512, %v1516
    %1523 = vrot.lane.b32.xlu0 %v1519, 32
    %v1524 = vpop.permute.xlu0 %1523
    %1525 = vrot.lane.b32.xlu0 %v1520, 32
    %v1526 = vpop.permute.xlu0 %1525
    %v1529 = vadd.f32 %v199, %v1524
    %v1530 = vadd.f32 %v204, %v1526
    %v1531 = vtanh.pop %v1529
    %v1532 = vtanh.pop %v1530
    %v1533 = vsub.f32 1.0, %v1510
    %v1534 = vsub.f32 1.0, %v1512
    %1537 = vrot.lane.b32.xlu0 %v1531, 112
    %v1538 = vpop.permute.xlu0 %1537
    %1539 = vrot.lane.b32.xlu0 %v1532, 112
    %v1540 = vpop.permute.xlu0 %1539
    %v1543 = vmul.f32 %v1533, %v1538
    %v1544 = vmul.f32 %v1534, %v1540
    %v1545 = vrot.slane %v1405, 4
    %v1546 = vrot.slane %v1405, 5
    %1547 = vrot.lane.b32.xlu0 %v1545, 16
    %v1548 = vpop.permute.xlu0 %1547
    %1549 = vrot.lane.b32.xlu0 %v1546, 16
    %v1550 = vpop.permute.xlu0 %1549
    %v1553 = vmul.f32 %v1510, %v1548
    %v1554 = vmul.f32 %v1512, %v1550
    %v1555 = vadd.f32 %v1543, %v1553
    %v1556 = vadd.f32 %v1544, %v1554
    %v1558 = vsel %vm213, %v1420, 0
    %1560 = vmatprep.subr.mxu0 0.0
    %1561 = vmatpush1.msra.mxu0 %v111
    %1562 = vmatprep.subr.mxu0 0.0
    %1563 = vmatpush1.msra.mxu0 %v112
    %1564 = vmatprep.subr.mxu0 0.0
    %1565 = vmatpush1.msra.mxu0 0.0
    %1566 = vmatprep.subr.mxu0 0.0
    %1567 = vmatpush1.msra.mxu0 0.0
    %1568 = vmatprep.subr.mxu0 0.0
    %1569 = vmatpush1.msra.mxu0 0.0
    %1570 = vmatprep.subr.mxu0 0.0
    %1571 = vmatpush1.msra.mxu0 0.0
    %1572 = vmatprep.subr.mxu0 0.0
    %1573 = vmatpush1.msra.mxu0 0.0
    %1574 = vmatprep.subr.mxu0 0.0
    %1575 = vmatpush1.msra.mxu0 0.0
    %1576 = vmatprep.subr.mxu0 0.0
    %1577 = vmatpush1.msra.mxu0 0.0
    %1578 = vmatprep.subr.mxu0 0.0
    %1579 = vmatpush1.msra.mxu0 0.0
    %1580 = vmatprep.subr.mxu0 0.0
    %1581 = vmatpush1.msra.mxu0 0.0
    %1582 = vmatprep.subr.mxu0 0.0
    %1583 = vmatpush1.msra.mxu0 0.0
    %1584 = vmatprep.subr.mxu0 0.0
    %1585 = vmatpush1.msra.mxu0 0.0
    %1586 = vmatprep.subr.mxu0 0.0
    %1587 = vmatpush1.msra.mxu0 0.0
    %1588 = vmatprep.subr.mxu0 0.0
    %1589 = vmatpush1.msra.mxu0 0.0
    %1590 = vmatprep.subr.mxu0 0.0
    %1591 = vmatpush1.msra.mxu0 0.0
    %1592 = vmatprep.subr.mxu0 0.0
    %1593 = vmatpush1.msra.mxu0 0.0
    %1594 = vmatprep.subr.mxu0 0.0
    %1595 = vmatpush1.msra.mxu0 0.0
    %1596 = vmatprep.subr.mxu0 0.0
    %1597 = vmatpush1.msra.mxu0 0.0
    %1598 = vmatprep.subr.mxu0 0.0
    %1599 = vmatpush1.msra.mxu0 0.0
    %1600 = vmatprep.subr.mxu0 0.0
    %1601 = vmatpush1.msra.mxu0 0.0
    %1602 = vmatprep.subr.mxu0 0.0
    %1603 = vmatpush1.msra.mxu0 0.0
    %1604 = vmatprep.subr.mxu0 0.0
    %1605 = vmatpush1.msra.mxu0 0.0
    %1606 = vmatprep.subr.mxu0 0.0
    %1607 = vmatpush1.msra.mxu0 0.0
    %1608 = vmatprep.subr.mxu0 0.0
    %1609 = vmatpush1.msra.mxu0 0.0
    %1610 = vmatprep.subr.mxu0 0.0
    %1611 = vmatpush1.msra.mxu0 0.0
    %1612 = vmatprep.subr.mxu0 0.0
    %1613 = vmatpush1.msra.mxu0 0.0
    %1614 = vmatprep.subr.mxu0 0.0
    %1615 = vmatpush1.msra.mxu0 0.0
    %1616 = vmatprep.subr.mxu0 0.0
    %1617 = vmatpush1.msra.mxu0 0.0
    %1618 = vmatprep.subr.mxu0 0.0
    %1619 = vmatpush1.msra.mxu0 0.0
    %1620 = vmatprep.subr.mxu0 0.0
    %1621 = vmatpush1.msra.mxu0 0.0
    %1622 = vmatprep.subr.mxu0 0.0
    %1623 = vmatpush1.msra.mxu0 0.0
    %1624 = vmatprep.mubr.f32.mxu0 0.0
    %1625 = vmatmul.mubr.f32.gmra.mrb[0].mxu0 %v1558
    %v1626 = vpop.f32.mrb[0].mxu0
    %v1627 = vadd.f32 %v345, %v1626
    %v1628 = vpop.f32.mrb[0].mxu0
    %1629 = vdwg.mxu0
    %v1631 = vrot.slane %v1627, 5
    %v1632 = vrot.slane %v1627, 6
    %1633 = vrot.lane.b32.xlu0 %v1631, 48
    %v1634 = vpop.permute.xlu0 %1633
    %1635 = vrot.lane.b32.xlu0 %v1632, 48
    %v1636 = vpop.permute.xlu0 %1635
    %v1639 = vadd.f32 %v199, %v1634
    %v1640 = vadd.f32 %v204, %v1636
    %v1641 = vxor.u32 %v1639, 2147483648
    %v1642 = vxor.u32 %v1640, 2147483648
    %v1643 = vmul.f32 %v1641, 1.442695
    %v1644 = vpow.pop %v1643
    %v1645 = vmul.f32 %v1642, 1.442695
    %v1646 = vpow.pop %v1645
    %v1647 = vadd.f32 %v1644, 1.0
    %v1648 = vadd.f32 %v1646, 1.0
    %v1649 = vrcp.pop %v1647
    %v1650 = vmul.f32 1.0, %v1649
    %v1651 = vrcp.pop %v1648
    %v1652 = vmul.f32 1.0, %v1651
    %1653 = vrot.lane.b32.xlu0 %v1631, 16
    %v1654 = vpop.permute.xlu0 %1653
    %1655 = vrot.lane.b32.xlu0 %v1632, 16
    %v1656 = vpop.permute.xlu0 %1655
    %v1659 = vmul.f32 %v1650, %v1654
    %v1660 = vmul.f32 %v1652, %v1656
    %1663 = vrot.lane.b32.xlu0 %v1659, 32
    %v1664 = vpop.permute.xlu0 %1663
    %1665 = vrot.lane.b32.xlu0 %v1660, 32
    %v1666 = vpop.permute.xlu0 %1665
    %v1669 = vadd.f32 %v199, %v1664
    %v1670 = vadd.f32 %v204, %v1666
    %v1671 = vtanh.pop %v1669
    %v1672 = vtanh.pop %v1670
    %v1673 = vsub.f32 1.0, %v1650
    %v1674 = vsub.f32 1.0, %v1652
    %1677 = vrot.lane.b32.xlu0 %v1671, 112
    %v1678 = vpop.permute.xlu0 %1677
    %1679 = vrot.lane.b32.xlu0 %v1672, 112
    %v1680 = vpop.permute.xlu0 %1679
    %v1683 = vmul.f32 %v1673, %v1678
    %v1684 = vmul.f32 %v1674, %v1680
    %v1685 = vrot.slane %v1420, 5
    %v1686 = vrot.slane %v1420, 6
    %1687 = vrot.lane.b32.xlu0 %v1685, 64
    %v1688 = vpop.permute.xlu0 %1687
    %1689 = vrot.lane.b32.xlu0 %v1686, 64
    %v1690 = vpop.permute.xlu0 %1689
    %v1693 = vmul.f32 %v1650, %v1688
    %v1694 = vmul.f32 %v1652, %v1690
    %v1695 = vadd.f32 %v1683, %v1693
    %v1696 = vadd.f32 %v1684, %v1694
    %v1699 = vrot.slane %v1555, 4
    %v1700 = vrot.slane %v1556, 3
    %v1701 = vsel %vm485, %v1700, %v1699
    %1702 = vrot.lane.b32.xlu0 %v1701, 112
    %v1703 = vpop.permute.xlu0 %1702
    %v1705 = vsel %vm1411, %v1703, %v1405
    %v1708 = vrot.slane %v1695, 3
    %v1709 = vrot.slane %v1696, 2
    %v1710 = vsel %vm485, %v1709, %v1708
    %1711 = vrot.lane.b32.xlu0 %v1710, 64
    %v1712 = vpop.permute.xlu0 %1711
    %v1714 = vsel %vm1396, %v1712, %v1420
    %v1716 = vsel %vm213, %v1705, 0
    %1718 = vmatprep.subr.mxu0 0.0
    %1719 = vmatpush1.msra.mxu0 %v108
    %1720 = vmatprep.subr.mxu0 0.0
    %1721 = vmatpush1.msra.mxu0 %v109
    %1722 = vmatprep.subr.mxu0 0.0
    %1723 = vmatpush1.msra.mxu0 0.0
    %1724 = vmatprep.subr.mxu0 0.0
    %1725 = vmatpush1.msra.mxu0 0.0
    %1726 = vmatprep.subr.mxu0 0.0
    %1727 = vmatpush1.msra.mxu0 0.0
    %1728 = vmatprep.subr.mxu0 0.0
    %1729 = vmatpush1.msra.mxu0 0.0
    %1730 = vmatprep.subr.mxu0 0.0
    %1731 = vmatpush1.msra.mxu0 0.0
    %1732 = vmatprep.subr.mxu0 0.0
    %1733 = vmatpush1.msra.mxu0 0.0
    %1734 = vmatprep.subr.mxu0 0.0
    %1735 = vmatpush1.msra.mxu0 0.0
    %1736 = vmatprep.subr.mxu0 0.0
    %1737 = vmatpush1.msra.mxu0 0.0
    %1738 = vmatprep.subr.mxu0 0.0
    %1739 = vmatpush1.msra.mxu0 0.0
    %1740 = vmatprep.subr.mxu0 0.0
    %1741 = vmatpush1.msra.mxu0 0.0
    %1742 = vmatprep.subr.mxu0 0.0
    %1743 = vmatpush1.msra.mxu0 0.0
    %1744 = vmatprep.subr.mxu0 0.0
    %1745 = vmatpush1.msra.mxu0 0.0
    %1746 = vmatprep.subr.mxu0 0.0
    %1747 = vmatpush1.msra.mxu0 0.0
    %1748 = vmatprep.subr.mxu0 0.0
    %1749 = vmatpush1.msra.mxu0 0.0
    %1750 = vmatprep.subr.mxu0 0.0
    %1751 = vmatpush1.msra.mxu0 0.0
    %1752 = vmatprep.subr.mxu0 0.0
    %1753 = vmatpush1.msra.mxu0 0.0
    %1754 = vmatprep.subr.mxu0 0.0
    %1755 = vmatpush1.msra.mxu0 0.0
    %1756 = vmatprep.subr.mxu0 0.0
    %1757 = vmatpush1.msra.mxu0 0.0
    %1758 = vmatprep.subr.mxu0 0.0
    %1759 = vmatpush1.msra.mxu0 0.0
    %1760 = vmatprep.subr.mxu0 0.0
    %1761 = vmatpush1.msra.mxu0 0.0
    %1762 = vmatprep.subr.mxu0 0.0
    %1763 = vmatpush1.msra.mxu0 0.0
    %1764 = vmatprep.subr.mxu0 0.0
    %1765 = vmatpush1.msra.mxu0 0.0
    %1766 = vmatprep.subr.mxu0 0.0
    %1767 = vmatpush1.msra.mxu0 0.0
    %1768 = vmatprep.subr.mxu0 0.0
    %1769 = vmatpush1.msra.mxu0 0.0
    %1770 = vmatprep.subr.mxu0 0.0
    %1771 = vmatpush1.msra.mxu0 0.0
    %1772 = vmatprep.subr.mxu0 0.0
    %1773 = vmatpush1.msra.mxu0 0.0
    %1774 = vmatprep.subr.mxu0 0.0
    %1775 = vmatpush1.msra.mxu0 0.0
    %1776 = vmatprep.subr.mxu0 0.0
    %1777 = vmatpush1.msra.mxu0 0.0
    %1778 = vmatprep.subr.mxu0 0.0
    %1779 = vmatpush1.msra.mxu0 0.0
    %1780 = vmatprep.subr.mxu0 0.0
    %1781 = vmatpush1.msra.mxu0 0.0
    %1782 = vmatprep.mubr.f32.mxu0 0.0
    %1783 = vmatmul.mubr.f32.gmra.mrb[0].mxu0 %v1716
    %v1784 = vpop.f32.mrb[0].mxu0
    %v1785 = vadd.f32 %v211, %v1784
    %v1786 = vpop.f32.mrb[0].mxu0
    %1787 = vdwg.mxu0
    %v1789 = vrot.slane %v1785, 3
    %v1790 = vrot.slane %v1785, 4
    %v1793 = vadd.f32 %v199, %v1789
    %v1794 = vadd.f32 %v204, %v1790
    %v1795 = vxor.u32 %v1793, 2147483648
    %v1796 = vxor.u32 %v1794, 2147483648
    %v1797 = vmul.f32 %v1795, 1.442695
    %v1798 = vpow.pop %v1797
    %v1799 = vmul.f32 %v1796, 1.442695
    %v1800 = vpow.pop %v1799
    %v1801 = vadd.f32 %v1798, 1.0
    %v1802 = vadd.f32 %v1800, 1.0
    %v1803 = vrcp.pop %v1801
    %v1804 = vmul.f32 1.0, %v1803
    %v1805 = vrcp.pop %v1802
    %v1806 = vmul.f32 1.0, %v1805
    %1807 = vrot.lane.b32.xlu0 %v1789, 96
    %v1808 = vpop.permute.xlu0 %1807
    %1809 = vrot.lane.b32.xlu0 %v1790, 96
    %v1810 = vpop.permute.xlu0 %1809
    %v1813 = vmul.f32 %v1804, %v1808
    %v1814 = vmul.f32 %v1806, %v1810
    %1817 = vrot.lane.b32.xlu0 %v1813, 32
    %v1818 = vpop.permute.xlu0 %1817
    %1819 = vrot.lane.b32.xlu0 %v1814, 32
    %v1820 = vpop.permute.xlu0 %1819
    %v1823 = vadd.f32 %v199, %v1818
    %v1824 = vadd.f32 %v204, %v1820
    %v1825 = vtanh.pop %v1823
    %v1826 = vtanh.pop %v1824
    %v1827 = vsub.f32 1.0, %v1804
    %v1828 = vsub.f32 1.0, %v1806
    %1831 = vrot.lane.b32.xlu0 %v1825, 112
    %v1832 = vpop.permute.xlu0 %1831
    %1833 = vrot.lane.b32.xlu0 %v1826, 112
    %v1834 = vpop.permute.xlu0 %1833
    %v1837 = vmul.f32 %v1827, %v1832
    %v1838 = vmul.f32 %v1828, %v1834
    %v1839 = vrot.slane %v1705, 3
    %v1840 = vrot.slane %v1705, 4
    %1841 = vrot.lane.b32.xlu0 %v1839, 16
    %v1842 = vpop.permute.xlu0 %1841
    %1843 = vrot.lane.b32.xlu0 %v1840, 16
    %v1844 = vpop.permute.xlu0 %1843
    %v1847 = vmul.f32 %v1804, %v1842
    %v1848 = vmul.f32 %v1806, %v1844
    %v1849 = vadd.f32 %v1837, %v1847
    %v1850 = vadd.f32 %v1838, %v1848
    %v1852 = vsel %vm213, %v1714, 0
    %1854 = vmatprep.subr.mxu0 0.0
    %1855 = vmatpush1.msra.mxu0 %v111
    %1856 = vmatprep.subr.mxu0 0.0
    %1857 = vmatpush1.msra.mxu0 %v112
    %1858 = vmatprep.subr.mxu0 0.0
    %1859 = vmatpush1.msra.mxu0 0.0
    %1860 = vmatprep.subr.mxu0 0.0
    %1861 = vmatpush1.msra.mxu0 0.0
    %1862 = vmatprep.subr.mxu0 0.0
    %1863 = vmatpush1.msra.mxu0 0.0
    %1864 = vmatprep.subr.mxu0 0.0
    %1865 = vmatpush1.msra.mxu0 0.0
    %1866 = vmatprep.subr.mxu0 0.0
    %1867 = vmatpush1.msra.mxu0 0.0
    %1868 = vmatprep.subr.mxu0 0.0
    %1869 = vmatpush1.msra.mxu0 0.0
    %1870 = vmatprep.subr.mxu0 0.0
    %1871 = vmatpush1.msra.mxu0 0.0
    %1872 = vmatprep.subr.mxu0 0.0
    %1873 = vmatpush1.msra.mxu0 0.0
    %1874 = vmatprep.subr.mxu0 0.0
    %1875 = vmatpush1.msra.mxu0 0.0
    %1876 = vmatprep.subr.mxu0 0.0
    %1877 = vmatpush1.msra.mxu0 0.0
    %1878 = vmatprep.subr.mxu0 0.0
    %1879 = vmatpush1.msra.mxu0 0.0
    %1880 = vmatprep.subr.mxu0 0.0
    %1881 = vmatpush1.msra.mxu0 0.0
    %1882 = vmatprep.subr.mxu0 0.0
    %1883 = vmatpush1.msra.mxu0 0.0
    %1884 = vmatprep.subr.mxu0 0.0
    %1885 = vmatpush1.msra.mxu0 0.0
    %1886 = vmatprep.subr.mxu0 0.0
    %1887 = vmatpush1.msra.mxu0 0.0
    %1888 = vmatprep.subr.mxu0 0.0
    %1889 = vmatpush1.msra.mxu0 0.0
    %1890 = vmatprep.subr.mxu0 0.0
    %1891 = vmatpush1.msra.mxu0 0.0
    %1892 = vmatprep.subr.mxu0 0.0
    %1893 = vmatpush1.msra.mxu0 0.0
    %1894 = vmatprep.subr.mxu0 0.0
    %1895 = vmatpush1.msra.mxu0 0.0
    %1896 = vmatprep.subr.mxu0 0.0
    %1897 = vmatpush1.msra.mxu0 0.0
    %1898 = vmatprep.subr.mxu0 0.0
    %1899 = vmatpush1.msra.mxu0 0.0
    %1900 = vmatprep.subr.mxu0 0.0
    %1901 = vmatpush1.msra.mxu0 0.0
    %1902 = vmatprep.subr.mxu0 0.0
    %1903 = vmatpush1.msra.mxu0 0.0
    %1904 = vmatprep.subr.mxu0 0.0
    %1905 = vmatpush1.msra.mxu0 0.0
    %1906 = vmatprep.subr.mxu0 0.0
    %1907 = vmatpush1.msra.mxu0 0.0
    %1908 = vmatprep.subr.mxu0 0.0
    %1909 = vmatpush1.msra.mxu0 0.0
    %1910 = vmatprep.subr.mxu0 0.0
    %1911 = vmatpush1.msra.mxu0 0.0
    %1912 = vmatprep.subr.mxu0 0.0
    %1913 = vmatpush1.msra.mxu0 0.0
    %1914 = vmatprep.subr.mxu0 0.0
    %1915 = vmatpush1.msra.mxu0 0.0
    %1916 = vmatprep.subr.mxu0 0.0
    %1917 = vmatpush1.msra.mxu0 0.0
    %1918 = vmatprep.mubr.f32.mxu0 0.0
    %1919 = vmatmul.mubr.f32.gmra.mrb[0].mxu0 %v1852
    %v1920 = vpop.f32.mrb[0].mxu0
    %v1921 = vadd.f32 %v345, %v1920
    %v1922 = vpop.f32.mrb[0].mxu0
    %1923 = vdwg.mxu0
    %v1925 = vrot.slane %v1921, 6
    %v1926 = vrot.slane %v1921, 7
    %1927 = vrot.lane.b32.xlu0 %v1925, 48
    %v1928 = vpop.permute.xlu0 %1927
    %1929 = vrot.lane.b32.xlu0 %v1926, 48
    %v1930 = vpop.permute.xlu0 %1929
    %v1933 = vadd.f32 %v199, %v1928
    %v1934 = vadd.f32 %v204, %v1930
    %v1935 = vxor.u32 %v1933, 2147483648
    %v1936 = vxor.u32 %v1934, 2147483648
    %v1937 = vmul.f32 %v1935, 1.442695
    %v1938 = vpow.pop %v1937
    %v1939 = vmul.f32 %v1936, 1.442695
    %v1940 = vpow.pop %v1939
    %v1941 = vadd.f32 %v1938, 1.0
    %v1942 = vadd.f32 %v1940, 1.0
    %v1943 = vrcp.pop %v1941
    %v1944 = vmul.f32 1.0, %v1943
    %v1945 = vrcp.pop %v1942
    %v1946 = vmul.f32 1.0, %v1945
    %1947 = vrot.lane.b32.xlu0 %v1925, 16
    %v1948 = vpop.permute.xlu0 %1947
    %1949 = vrot.lane.b32.xlu0 %v1926, 16
    %v1950 = vpop.permute.xlu0 %1949
    %v1953 = vmul.f32 %v1944, %v1948
    %v1954 = vmul.f32 %v1946, %v1950
    %1957 = vrot.lane.b32.xlu0 %v1953, 32
    %v1958 = vpop.permute.xlu0 %1957
    %1959 = vrot.lane.b32.xlu0 %v1954, 32
    %v1960 = vpop.permute.xlu0 %1959
    %v1963 = vadd.f32 %v199, %v1958
    %v1964 = vadd.f32 %v204, %v1960
    %v1965 = vtanh.pop %v1963
    %v1966 = vtanh.pop %v1964
    %v1967 = vsub.f32 1.0, %v1944
    %v1968 = vsub.f32 1.0, %v1946
    %1971 = vrot.lane.b32.xlu0 %v1965, 112
    %v1972 = vpop.permute.xlu0 %1971
    %1973 = vrot.lane.b32.xlu0 %v1966, 112
    %v1974 = vpop.permute.xlu0 %1973
    %v1977 = vmul.f32 %v1967, %v1972
    %v1978 = vmul.f32 %v1968, %v1974
    %v1979 = vrot.slane %v1714, 6
    %v1980 = vrot.slane %v1714, 7
    %1981 = vrot.lane.b32.xlu0 %v1979, 64
    %v1982 = vpop.permute.xlu0 %1981
    %1983 = vrot.lane.b32.xlu0 %v1980, 64
    %v1984 = vpop.permute.xlu0 %1983
    %v1987 = vmul.f32 %v1944, %v1982
    %v1988 = vmul.f32 %v1946, %v1984
    %v1989 = vadd.f32 %v1977, %v1987
    %v1990 = vadd.f32 %v1978, %v1988
    %v1993 = vrot.slane %v1849, 5
    %v1994 = vrot.slane %v1850, 4
    %v1995 = vsel %vm485, %v1994, %v1993
    %1996 = vrot.lane.b32.xlu0 %v1995, 112
    %v1997 = vpop.permute.xlu0 %1996
    %v1999 = vsel %vm1105, %v1997, %v1705
    %v2002 = vrot.slane %v1989, 2
    %v2003 = vrot.slane %v1990, 1
    %v2004 = vsel %vm485, %v2003, %v2002
    %2005 = vrot.lane.b32.xlu0 %v2004, 64
    %v2006 = vpop.permute.xlu0 %2005
    %v2008 = vsel %vm1090, %v2006, %v1714
    %v2010 = vsel %vm213, %v1999, 0
    %2012 = vmatprep.subr.mxu0 0.0
    %2013 = vmatpush1.msra.mxu0 %v108
    %2014 = vmatprep.subr.mxu0 0.0
    %2015 = vmatpush1.msra.mxu0 %v109
    %2016 = vmatprep.subr.mxu0 0.0
    %2017 = vmatpush1.msra.mxu0 0.0
    %2018 = vmatprep.subr.mxu0 0.0
    %2019 = vmatpush1.msra.mxu0 0.0
    %2020 = vmatprep.subr.mxu0 0.0
    %2021 = vmatpush1.msra.mxu0 0.0
    %2022 = vmatprep.subr.mxu0 0.0
    %2023 = vmatpush1.msra.mxu0 0.0
    %2024 = vmatprep.subr.mxu0 0.0
    %2025 = vmatpush1.msra.mxu0 0.0
    %2026 = vmatprep.subr.mxu0 0.0
    %2027 = vmatpush1.msra.mxu0 0.0
    %2028 = vmatprep.subr.mxu0 0.0
    %2029 = vmatpush1.msra.mxu0 0.0
    %2030 = vmatprep.subr.mxu0 0.0
    %2031 = vmatpush1.msra.mxu0 0.0
    %2032 = vmatprep.subr.mxu0 0.0
    %2033 = vmatpush1.msra.mxu0 0.0
    %2034 = vmatprep.subr.mxu0 0.0
    %2035 = vmatpush1.msra.mxu0 0.0
    %2036 = vmatprep.subr.mxu0 0.0
    %2037 = vmatpush1.msra.mxu0 0.0
    %2038 = vmatprep.subr.mxu0 0.0
    %2039 = vmatpush1.msra.mxu0 0.0
    %2040 = vmatprep.subr.mxu0 0.0
    %2041 = vmatpush1.msra.mxu0 0.0
    %2042 = vmatprep.subr.mxu0 0.0
    %2043 = vmatpush1.msra.mxu0 0.0
    %2044 = vmatprep.subr.mxu0 0.0
    %2045 = vmatpush1.msra.mxu0 0.0
    %2046 = vmatprep.subr.mxu0 0.0
    %2047 = vmatpush1.msra.mxu0 0.0
    %2048 = vmatprep.subr.mxu0 0.0
    %2049 = vmatpush1.msra.mxu0 0.0
    %2050 = vmatprep.subr.mxu0 0.0
    %2051 = vmatpush1.msra.mxu0 0.0
    %2052 = vmatprep.subr.mxu0 0.0
    %2053 = vmatpush1.msra.mxu0 0.0
    %2054 = vmatprep.subr.mxu0 0.0
    %2055 = vmatpush1.msra.mxu0 0.0
    %2056 = vmatprep.subr.mxu0 0.0
    %2057 = vmatpush1.msra.mxu0 0.0
    %2058 = vmatprep.subr.mxu0 0.0
    %2059 = vmatpush1.msra.mxu0 0.0
    %2060 = vmatprep.subr.mxu0 0.0
    %2061 = vmatpush1.msra.mxu0 0.0
    %2062 = vmatprep.subr.mxu0 0.0
    %2063 = vmatpush1.msra.mxu0 0.0
    %2064 = vmatprep.subr.mxu0 0.0
    %2065 = vmatpush1.msra.mxu0 0.0
    %2066 = vmatprep.subr.mxu0 0.0
    %2067 = vmatpush1.msra.mxu0 0.0
    %2068 = vmatprep.subr.mxu0 0.0
    %2069 = vmatpush1.msra.mxu0 0.0
    %2070 = vmatprep.subr.mxu0 0.0
    %2071 = vmatpush1.msra.mxu0 0.0
    %2072 = vmatprep.subr.mxu0 0.0
    %2073 = vmatpush1.msra.mxu0 0.0
    %2074 = vmatprep.subr.mxu0 0.0
    %2075 = vmatpush1.msra.mxu0 0.0
    %2076 = vmatprep.mubr.f32.mxu0 0.0
    %2077 = vmatmul.mubr.f32.gmra.mrb[0].mxu0 %v2010
    %v2078 = vpop.f32.mrb[0].mxu0
    %v2079 = vadd.f32 %v211, %v2078
    %v2080 = vpop.f32.mrb[0].mxu0
    %2081 = vdwg.mxu0
    %v2083 = vrot.slane %v2079, 2
    %v2084 = vrot.slane %v2079, 3
    %v2087 = vadd.f32 %v199, %v2083
    %v2088 = vadd.f32 %v204, %v2084
    %v2089 = vxor.u32 %v2087, 2147483648
    %v2090 = vxor.u32 %v2088, 2147483648
    %v2091 = vmul.f32 %v2089, 1.442695
    %v2092 = vpow.pop %v2091
    %v2093 = vmul.f32 %v2090, 1.442695
    %v2094 = vpow.pop %v2093
    %v2095 = vadd.f32 %v2092, 1.0
    %v2096 = vadd.f32 %v2094, 1.0
    %v2097 = vrcp.pop %v2095
    %v2098 = vmul.f32 1.0, %v2097
    %v2099 = vrcp.pop %v2096
    %v2100 = vmul.f32 1.0, %v2099
    %2101 = vrot.lane.b32.xlu0 %v2083, 96
    %v2102 = vpop.permute.xlu0 %2101
    %2103 = vrot.lane.b32.xlu0 %v2084, 96
    %v2104 = vpop.permute.xlu0 %2103
    %v2107 = vmul.f32 %v2098, %v2102
    %v2108 = vmul.f32 %v2100, %v2104
    %2111 = vrot.lane.b32.xlu0 %v2107, 32
    %v2112 = vpop.permute.xlu0 %2111
    %2113 = vrot.lane.b32.xlu0 %v2108, 32
    %v2114 = vpop.permute.xlu0 %2113
    %v2117 = vadd.f32 %v199, %v2112
    %v2118 = vadd.f32 %v204, %v2114
    %v2119 = vtanh.pop %v2117
    %v2120 = vtanh.pop %v2118
    %v2121 = vsub.f32 1.0, %v2098
    %v2122 = vsub.f32 1.0, %v2100
    %2125 = vrot.lane.b32.xlu0 %v2119, 112
    %v2126 = vpop.permute.xlu0 %2125
    %2127 = vrot.lane.b32.xlu0 %v2120, 112
    %v2128 = vpop.permute.xlu0 %2127
    %v2131 = vmul.f32 %v2121, %v2126
    %v2132 = vmul.f32 %v2122, %v2128
    %v2133 = vrot.slane %v1999, 2
    %v2134 = vrot.slane %v1999, 3
    %2135 = vrot.lane.b32.xlu0 %v2133, 16
    %v2136 = vpop.permute.xlu0 %2135
    %2137 = vrot.lane.b32.xlu0 %v2134, 16
    %v2138 = vpop.permute.xlu0 %2137
    %v2141 = vmul.f32 %v2098, %v2136
    %v2142 = vmul.f32 %v2100, %v2138
    %v2143 = vadd.f32 %v2131, %v2141
    %v2144 = vadd.f32 %v2132, %v2142
    %v2146 = vsel %vm213, %v2008, 0
    %2148 = vmatprep.subr.mxu0 0.0
    %2149 = vmatpush1.msra.mxu0 %v111
    %2150 = vmatprep.subr.mxu0 0.0
    %2151 = vmatpush1.msra.mxu0 %v112
    %2152 = vmatprep.subr.mxu0 0.0
    %2153 = vmatpush1.msra.mxu0 0.0
    %2154 = vmatprep.subr.mxu0 0.0
    %2155 = vmatpush1.msra.mxu0 0.0
    %2156 = vmatprep.subr.mxu0 0.0
    %2157 = vmatpush1.msra.mxu0 0.0
    %2158 = vmatprep.subr.mxu0 0.0
    %2159 = vmatpush1.msra.mxu0 0.0
    %2160 = vmatprep.subr.mxu0 0.0
    %2161 = vmatpush1.msra.mxu0 0.0
    %2162 = vmatprep.subr.mxu0 0.0
    %2163 = vmatpush1.msra.mxu0 0.0
    %2164 = vmatprep.subr.mxu0 0.0
    %2165 = vmatpush1.msra.mxu0 0.0
    %2166 = vmatprep.subr.mxu0 0.0
    %2167 = vmatpush1.msra.mxu0 0.0
    %2168 = vmatprep.subr.mxu0 0.0
    %2169 = vmatpush1.msra.mxu0 0.0
    %2170 = vmatprep.subr.mxu0 0.0
    %2171 = vmatpush1.msra.mxu0 0.0
    %2172 = vmatprep.subr.mxu0 0.0
    %2173 = vmatpush1.msra.mxu0 0.0
    %2174 = vmatprep.subr.mxu0 0.0
    %2175 = vmatpush1.msra.mxu0 0.0
    %2176 = vmatprep.subr.mxu0 0.0
    %2177 = vmatpush1.msra.mxu0 0.0
    %2178 = vmatprep.subr.mxu0 0.0
    %2179 = vmatpush1.msra.mxu0 0.0
    %2180 = vmatprep.subr.mxu0 0.0
    %2181 = vmatpush1.msra.mxu0 0.0
    %2182 = vmatprep.subr.mxu0 0.0
    %2183 = vmatpush1.msra.mxu0 0.0
    %2184 = vmatprep.subr.mxu0 0.0
    %2185 = vmatpush1.msra.mxu0 0.0
    %2186 = vmatprep.subr.mxu0 0.0
    %2187 = vmatpush1.msra.mxu0 0.0
    %2188 = vmatprep.subr.mxu0 0.0
    %2189 = vmatpush1.msra.mxu0 0.0
    %2190 = vmatprep.subr.mxu0 0.0
    %2191 = vmatpush1.msra.mxu0 0.0
    %2192 = vmatprep.subr.mxu0 0.0
    %2193 = vmatpush1.msra.mxu0 0.0
    %2194 = vmatprep.subr.mxu0 0.0
    %2195 = vmatpush1.msra.mxu0 0.0
    %2196 = vmatprep.subr.mxu0 0.0
    %2197 = vmatpush1.msra.mxu0 0.0
    %2198 = vmatprep.subr.mxu0 0.0
    %2199 = vmatpush1.msra.mxu0 0.0
    %2200 = vmatprep.subr.mxu0 0.0
    %2201 = vmatpush1.msra.mxu0 0.0
    %2202 = vmatprep.subr.mxu0 0.0
    %2203 = vmatpush1.msra.mxu0 0.0
    %2204 = vmatprep.subr.mxu0 0.0
    %2205 = vmatpush1.msra.mxu0 0.0
    %2206 = vmatprep.subr.mxu0 0.0
    %2207 = vmatpush1.msra.mxu0 0.0
    %2208 = vmatprep.subr.mxu0 0.0
    %2209 = vmatpush1.msra.mxu0 0.0
    %2210 = vmatprep.subr.mxu0 0.0
    %2211 = vmatpush1.msra.mxu0 0.0
    %2212 = vmatprep.mubr.f32.mxu0 0.0
    %2213 = vmatmul.mubr.f32.gmra.mrb[0].mxu0 %v2146
    %v2214 = vpop.f32.mrb[0].mxu0
    %v2215 = vadd.f32 %v345, %v2214
    %v2216 = vpop.f32.mrb[0].mxu0
    %2217 = vdwg.mxu0
    %v2219 = vrot.slane %v2215, 7
    %2220 = vrot.lane.b32.xlu0 %v2219, 48
    %v2221 = vpop.permute.xlu0 %2220
    %2222 = vrot.lane.b32.xlu0 %v2215, 48
    %v2223 = vpop.permute.xlu0 %2222
    %v2226 = vadd.f32 %v199, %v2221
    %v2227 = vadd.f32 %v204, %v2223
    %v2228 = vxor.u32 %v2226, 2147483648
    %v2229 = vxor.u32 %v2227, 2147483648
    %v2230 = vmul.f32 %v2228, 1.442695
    %v2231 = vpow.pop %v2230
    %v2232 = vmul.f32 %v2229, 1.442695
    %v2233 = vpow.pop %v2232
    %v2234 = vadd.f32 %v2231, 1.0
    %v2235 = vadd.f32 %v2233, 1.0
    %v2236 = vrcp.pop %v2234
    %v2237 = vmul.f32 1.0, %v2236
    %v2238 = vrcp.pop %v2235
    %v2239 = vmul.f32 1.0, %v2238
    %2240 = vrot.lane.b32.xlu0 %v2219, 16
    %v2241 = vpop.permute.xlu0 %2240
    %2242 = vrot.lane.b32.xlu0 %v2215, 16
    %v2243 = vpop.permute.xlu0 %2242
    %v2246 = vmul.f32 %v2237, %v2241
    %v2247 = vmul.f32 %v2239, %v2243
    %2250 = vrot.lane.b32.xlu0 %v2246, 32
    %v2251 = vpop.permute.xlu0 %2250
    %2252 = vrot.lane.b32.xlu0 %v2247, 32
    %v2253 = vpop.permute.xlu0 %2252
    %v2256 = vadd.f32 %v199, %v2251
    %v2257 = vadd.f32 %v204, %v2253
    %v2258 = vtanh.pop %v2256
    %v2259 = vtanh.pop %v2257
    %v2260 = vsub.f32 1.0, %v2237
    %v2261 = vsub.f32 1.0, %v2239
    %2264 = vrot.lane.b32.xlu0 %v2258, 112
    %v2265 = vpop.permute.xlu0 %2264
    %2266 = vrot.lane.b32.xlu0 %v2259, 112
    %v2267 = vpop.permute.xlu0 %2266
    %v2270 = vmul.f32 %v2260, %v2265
    %v2271 = vmul.f32 %v2261, %v2267
    %v2272 = vrot.slane %v2008, 7
    %2273 = vrot.lane.b32.xlu0 %v2272, 64
    %v2274 = vpop.permute.xlu0 %2273
    %2275 = vrot.lane.b32.xlu0 %v2008, 64
    %v2276 = vpop.permute.xlu0 %2275
    %v2279 = vmul.f32 %v2237, %v2274
    %v2280 = vmul.f32 %v2239, %v2276
    %v2281 = vadd.f32 %v2270, %v2279
    %v2282 = vadd.f32 %v2271, %v2280
    %v2285 = vrot.slane %v2143, 6
    %v2286 = vrot.slane %v2144, 5
    %v2287 = vsel %vm485, %v2286, %v2285
    %2288 = vrot.lane.b32.xlu0 %v2287, 112
    %v2289 = vpop.permute.xlu0 %2288
    %v2291 = vsel %vm799, %v2289, %v1999
    %v2294 = vrot.slane %v2281, 1
    %v2295 = vsel %vm485, %v2282, %v2294
    %2296 = vrot.lane.b32.xlu0 %v2295, 64
    %v2297 = vpop.permute.xlu0 %2296
    %v2299 = vsel %vm785, %v2297, %v2008
    %v2301 = vsel %vm213, %v2291, 0
    %2303 = vmatprep.subr.mxu0 0.0
    %2304 = vmatpush1.msra.mxu0 %v108
    %2305 = vmatprep.subr.mxu0 0.0
    %2306 = vmatpush1.msra.mxu0 %v109
    %2307 = vmatprep.subr.mxu0 0.0
    %2308 = vmatpush1.msra.mxu0 0.0
    %2309 = vmatprep.subr.mxu0 0.0
    %2310 = vmatpush1.msra.mxu0 0.0
    %2311 = vmatprep.subr.mxu0 0.0
    %2312 = vmatpush1.msra.mxu0 0.0
    %2313 = vmatprep.subr.mxu0 0.0
    %2314 = vmatpush1.msra.mxu0 0.0
    %2315 = vmatprep.subr.mxu0 0.0
    %2316 = vmatpush1.msra.mxu0 0.0
    %2317 = vmatprep.subr.mxu0 0.0
    %2318 = vmatpush1.msra.mxu0 0.0
    %2319 = vmatprep.subr.mxu0 0.0
    %2320 = vmatpush1.msra.mxu0 0.0
    %2321 = vmatprep.subr.mxu0 0.0
    %2322 = vmatpush1.msra.mxu0 0.0
    %2323 = vmatprep.subr.mxu0 0.0
    %2324 = vmatpush1.msra.mxu0 0.0
    %2325 = vmatprep.subr.mxu0 0.0
    %2326 = vmatpush1.msra.mxu0 0.0
    %2327 = vmatprep.subr.mxu0 0.0
    %2328 = vmatpush1.msra.mxu0 0.0
    %2329 = vmatprep.subr.mxu0 0.0
    %2330 = vmatpush1.msra.mxu0 0.0
    %2331 = vmatprep.subr.mxu0 0.0
    %2332 = vmatpush1.msra.mxu0 0.0
    %2333 = vmatprep.subr.mxu0 0.0
    %2334 = vmatpush1.msra.mxu0 0.0
    %2335 = vmatprep.subr.mxu0 0.0
    %2336 = vmatpush1.msra.mxu0 0.0
    %2337 = vmatprep.subr.mxu0 0.0
    %2338 = vmatpush1.msra.mxu0 0.0
    %2339 = vmatprep.subr.mxu0 0.0
    %2340 = vmatpush1.msra.mxu0 0.0
    %2341 = vmatprep.subr.mxu0 0.0
    %2342 = vmatpush1.msra.mxu0 0.0
    %2343 = vmatprep.subr.mxu0 0.0
    %2344 = vmatpush1.msra.mxu0 0.0
    %2345 = vmatprep.subr.mxu0 0.0
    %2346 = vmatpush1.msra.mxu0 0.0
    %2347 = vmatprep.subr.mxu0 0.0
    %2348 = vmatpush1.msra.mxu0 0.0
    %2349 = vmatprep.subr.mxu0 0.0
    %2350 = vmatpush1.msra.mxu0 0.0
    %2351 = vmatprep.subr.mxu0 0.0
    %2352 = vmatpush1.msra.mxu0 0.0
    %2353 = vmatprep.subr.mxu0 0.0
    %2354 = vmatpush1.msra.mxu0 0.0
    %2355 = vmatprep.subr.mxu0 0.0
    %2356 = vmatpush1.msra.mxu0 0.0
    %2357 = vmatprep.subr.mxu0 0.0
    %2358 = vmatpush1.msra.mxu0 0.0
    %2359 = vmatprep.subr.mxu0 0.0
    %2360 = vmatpush1.msra.mxu0 0.0
    %2361 = vmatprep.subr.mxu0 0.0
    %2362 = vmatpush1.msra.mxu0 0.0
    %2363 = vmatprep.subr.mxu0 0.0
    %2364 = vmatpush1.msra.mxu0 0.0
    %2365 = vmatprep.subr.mxu0 0.0
    %2366 = vmatpush1.msra.mxu0 0.0
    %2367 = vmatprep.mubr.f32.mxu0 0.0
    %2368 = vmatmul.mubr.f32.gmra.mrb[0].mxu0 %v2301
    %v2369 = vpop.f32.mrb[0].mxu0
    %v2370 = vadd.f32 %v211, %v2369
    %v2371 = vpop.f32.mrb[0].mxu0
    %2372 = vdwg.mxu0
    %v2374 = vrot.slane %v2370, 1
    %v2375 = vrot.slane %v2370, 2
    %v2378 = vadd.f32 %v199, %v2374
    %v2379 = vadd.f32 %v204, %v2375
    %v2380 = vxor.u32 %v2378, 2147483648
    %v2381 = vxor.u32 %v2379, 2147483648
    %v2382 = vmul.f32 %v2380, 1.442695
    %v2383 = vpow.pop %v2382
    %v2384 = vmul.f32 %v2381, 1.442695
    %v2385 = vpow.pop %v2384
    %v2386 = vadd.f32 %v2383, 1.0
    %v2387 = vadd.f32 %v2385, 1.0
    %v2388 = vrcp.pop %v2386
    %v2389 = vmul.f32 1.0, %v2388
    %v2390 = vrcp.pop %v2387
    %v2391 = vmul.f32 1.0, %v2390
    %2392 = vrot.lane.b32.xlu0 %v2374, 96
    %v2393 = vpop.permute.xlu0 %2392
    %2394 = vrot.lane.b32.xlu0 %v2375, 96
    %v2395 = vpop.permute.xlu0 %2394
    %v2398 = vmul.f32 %v2389, %v2393
    %v2399 = vmul.f32 %v2391, %v2395
    %2402 = vrot.lane.b32.xlu0 %v2398, 32
    %v2403 = vpop.permute.xlu0 %2402
    %2404 = vrot.lane.b32.xlu0 %v2399, 32
    %v2405 = vpop.permute.xlu0 %2404
    %v2408 = vadd.f32 %v199, %v2403
    %v2409 = vadd.f32 %v204, %v2405
    %v2410 = vtanh.pop %v2408
    %v2411 = vtanh.pop %v2409
    %v2412 = vsub.f32 1.0, %v2389
    %v2413 = vsub.f32 1.0, %v2391
    %2416 = vrot.lane.b32.xlu0 %v2410, 112
    %v2417 = vpop.permute.xlu0 %2416
    %2418 = vrot.lane.b32.xlu0 %v2411, 112
    %v2419 = vpop.permute.xlu0 %2418
    %v2422 = vmul.f32 %v2412, %v2417
    %v2423 = vmul.f32 %v2413, %v2419
    %v2424 = vrot.slane %v2291, 1
    %v2425 = vrot.slane %v2291, 2
    %2426 = vrot.lane.b32.xlu0 %v2424, 16
    %v2427 = vpop.permute.xlu0 %2426
    %2428 = vrot.lane.b32.xlu0 %v2425, 16
    %v2429 = vpop.permute.xlu0 %2428
    %v2432 = vmul.f32 %v2389, %v2427
    %v2433 = vmul.f32 %v2391, %v2429
    %v2434 = vadd.f32 %v2422, %v2432
    %v2435 = vadd.f32 %v2423, %v2433
    %v2437 = vsel %vm213, %v2299, 0
    %2439 = vmatprep.subr.mxu0 0.0
    %2440 = vmatpush1.msra.mxu0 %v111
    %2441 = vmatprep.subr.mxu0 0.0
    %2442 = vmatpush1.msra.mxu0 %v112
    %2443 = vmatprep.subr.mxu0 0.0
    %2444 = vmatpush1.msra.mxu0 0.0
    %2445 = vmatprep.subr.mxu0 0.0
    %2446 = vmatpush1.msra.mxu0 0.0
    %2447 = vmatprep.subr.mxu0 0.0
    %2448 = vmatpush1.msra.mxu0 0.0
    %2449 = vmatprep.subr.mxu0 0.0
    %2450 = vmatpush1.msra.mxu0 0.0
    %2451 = vmatprep.subr.mxu0 0.0
    %2452 = vmatpush1.msra.mxu0 0.0
    %2453 = vmatprep.subr.mxu0 0.0
    %2454 = vmatpush1.msra.mxu0 0.0
    %2455 = vmatprep.subr.mxu0 0.0
    %2456 = vmatpush1.msra.mxu0 0.0
    %2457 = vmatprep.subr.mxu0 0.0
    %2458 = vmatpush1.msra.mxu0 0.0
    %2459 = vmatprep.subr.mxu0 0.0
    %2460 = vmatpush1.msra.mxu0 0.0
    %2461 = vmatprep.subr.mxu0 0.0
    %2462 = vmatpush1.msra.mxu0 0.0
    %2463 = vmatprep.subr.mxu0 0.0
    %2464 = vmatpush1.msra.mxu0 0.0
    %2465 = vmatprep.subr.mxu0 0.0
    %2466 = vmatpush1.msra.mxu0 0.0
    %2467 = vmatprep.subr.mxu0 0.0
    %2468 = vmatpush1.msra.mxu0 0.0
    %2469 = vmatprep.subr.mxu0 0.0
    %2470 = vmatpush1.msra.mxu0 0.0
    %2471 = vmatprep.subr.mxu0 0.0
    %2472 = vmatpush1.msra.mxu0 0.0
    %2473 = vmatprep.subr.mxu0 0.0
    %2474 = vmatpush1.msra.mxu0 0.0
    %2475 = vmatprep.subr.mxu0 0.0
    %2476 = vmatpush1.msra.mxu0 0.0
    %2477 = vmatprep.subr.mxu0 0.0
    %2478 = vmatpush1.msra.mxu0 0.0
    %2479 = vmatprep.subr.mxu0 0.0
    %2480 = vmatpush1.msra.mxu0 0.0
    %2481 = vmatprep.subr.mxu0 0.0
    %2482 = vmatpush1.msra.mxu0 0.0
    %2483 = vmatprep.subr.mxu0 0.0
    %2484 = vmatpush1.msra.mxu0 0.0
    %2485 = vmatprep.subr.mxu0 0.0
    %2486 = vmatpush1.msra.mxu0 0.0
    %2487 = vmatprep.subr.mxu0 0.0
    %2488 = vmatpush1.msra.mxu0 0.0
    %2489 = vmatprep.subr.mxu0 0.0
    %2490 = vmatpush1.msra.mxu0 0.0
    %2491 = vmatprep.subr.mxu0 0.0
    %2492 = vmatpush1.msra.mxu0 0.0
    %2493 = vmatprep.subr.mxu0 0.0
    %2494 = vmatpush1.msra.mxu0 0.0
    %2495 = vmatprep.subr.mxu0 0.0
    %2496 = vmatpush1.msra.mxu0 0.0
    %2497 = vmatprep.subr.mxu0 0.0
    %2498 = vmatpush1.msra.mxu0 0.0
    %2499 = vmatprep.subr.mxu0 0.0
    %2500 = vmatpush1.msra.mxu0 0.0
    %2501 = vmatprep.subr.mxu0 0.0
    %2502 = vmatpush1.msra.mxu0 0.0
    %2503 = vmatprep.mubr.f32.mxu0 0.0
    %2504 = vmatmul.mubr.f32.gmra.mrb[0].mxu0 %v2437
    %v2505 = vpop.f32.mrb[0].mxu0
    %v2506 = vadd.f32 %v345, %v2505
    %v2507 = vpop.f32.mrb[0].mxu0
    %2508 = vdwg.mxu0
    %v2510 = vrot.slane %v2506, 1
    %2511 = vrot.lane.b32.xlu0 %v2506, 48
    %v2512 = vpop.permute.xlu0 %2511
    %2513 = vrot.lane.b32.xlu0 %v2510, 48
    %v2514 = vpop.permute.xlu0 %2513
    %v2517 = vadd.f32 %v199, %v2512
    %v2518 = vadd.f32 %v204, %v2514
    %v2519 = vxor.u32 %v2517, 2147483648
    %v2520 = vxor.u32 %v2518, 2147483648
    %v2521 = vmul.f32 %v2519, 1.442695
    %v2522 = vpow.pop %v2521
    %v2523 = vmul.f32 %v2520, 1.442695
    %v2524 = vpow.pop %v2523
    %v2525 = vadd.f32 %v2522, 1.0
    %v2526 = vadd.f32 %v2524, 1.0
    %v2527 = vrcp.pop %v2525
    %v2528 = vmul.f32 1.0, %v2527
    %v2529 = vrcp.pop %v2526
    %v2530 = vmul.f32 1.0, %v2529
    %2531 = vrot.lane.b32.xlu0 %v2506, 16
    %v2532 = vpop.permute.xlu0 %2531
    %2533 = vrot.lane.b32.xlu0 %v2510, 16
    %v2534 = vpop.permute.xlu0 %2533
    %v2537 = vmul.f32 %v2528, %v2532
    %v2538 = vmul.f32 %v2530, %v2534
    %2541 = vrot.lane.b32.xlu0 %v2537, 32
    %v2542 = vpop.permute.xlu0 %2541
    %2543 = vrot.lane.b32.xlu0 %v2538, 32
    %v2544 = vpop.permute.xlu0 %2543
    %v2547 = vadd.f32 %v199, %v2542
    %v2548 = vadd.f32 %v204, %v2544
    %v2549 = vtanh.pop %v2547
    %v2550 = vtanh.pop %v2548
    %v2551 = vsub.f32 1.0, %v2528
    %v2552 = vsub.f32 1.0, %v2530
    %2555 = vrot.lane.b32.xlu0 %v2549, 112
    %v2556 = vpop.permute.xlu0 %2555
    %2557 = vrot.lane.b32.xlu0 %v2550, 112
    %v2558 = vpop.permute.xlu0 %2557
    %v2561 = vmul.f32 %v2551, %v2556
    %v2562 = vmul.f32 %v2552, %v2558
    %v2563 = vrot.slane %v2299, 1
    %2564 = vrot.lane.b32.xlu0 %v2299, 64
    %v2565 = vpop.permute.xlu0 %2564
    %2566 = vrot.lane.b32.xlu0 %v2563, 64
    %v2567 = vpop.permute.xlu0 %2566
    %v2570 = vmul.f32 %v2528, %v2565
    %v2571 = vmul.f32 %v2530, %v2567
    %v2572 = vadd.f32 %v2561, %v2570
    %v2573 = vadd.f32 %v2562, %v2571
    %v2576 = vrot.slane %v2434, 7
    %v2577 = vrot.slane %v2435, 6
    %v2578 = vsel %vm485, %v2577, %v2576
    %2579 = vrot.lane.b32.xlu0 %v2578, 112
    %v2580 = vpop.permute.xlu0 %2579
    %v2582 = vsel %vm496, %v2580, %v2291
    %v2585 = vrot.slane %v2573, 7
    %v2586 = vsel %vm485, %v2585, %v2572
    %2587 = vrot.lane.b32.xlu0 %v2586, 64
    %v2588 = vpop.permute.xlu0 %2587
    %v2590 = vsel %vm481, %v2588, %v2299
    %2592 = vrot.lane.b32.xlu0 %v2590, 16
    %v2593 = vpop.permute.xlu0 %2592
    %v2595 = vsel %vm213, %v2582, %v2593
    %v2596 = vld [vmem:[%s8] sm:$0xff]
    %v2597 = vld [vmem:[%s8 + $0x8] sm:$0xff]
    %v2598 = vld [vmem:[%s8 + $0x10] sm:$0xff]
    %v2599 = vld [vmem:[%s8 + $0x18] sm:$0xff]
    %2600 = vmatprep.subr.mxu0 0.0
    %2601 = vmatpush1.msra.mxu0 %v2596
    %2602 = vmatprep.subr.mxu0 0.0
    %2603 = vmatpush1.msra.mxu0 %v2597
    %2604 = vmatprep.subr.mxu0 0.0
    %2605 = vmatpush1.msra.mxu0 %v2598
    %2606 = vmatprep.subr.mxu0 0.0
    %2607 = vmatpush1.msra.mxu0 %v2599
    %2608 = vmatprep.subr.mxu0 0.0
    %2609 = vmatpush1.msra.mxu0 0.0
    %2610 = vmatprep.subr.mxu0 0.0
    %2611 = vmatpush1.msra.mxu0 0.0
    %2612 = vmatprep.subr.mxu0 0.0
    %2613 = vmatpush1.msra.mxu0 0.0
    %2614 = vmatprep.subr.mxu0 0.0
    %2615 = vmatpush1.msra.mxu0 0.0
    %2616 = vmatprep.subr.mxu0 0.0
    %2617 = vmatpush1.msra.mxu0 0.0
    %2618 = vmatprep.subr.mxu0 0.0
    %2619 = vmatpush1.msra.mxu0 0.0
    %2620 = vmatprep.subr.mxu0 0.0
    %2621 = vmatpush1.msra.mxu0 0.0
    %2622 = vmatprep.subr.mxu0 0.0
    %2623 = vmatpush1.msra.mxu0 0.0
    %2624 = vmatprep.subr.mxu0 0.0
    %2625 = vmatpush1.msra.mxu0 0.0
    %2626 = vmatprep.subr.mxu0 0.0
    %2627 = vmatpush1.msra.mxu0 0.0
    %2628 = vmatprep.subr.mxu0 0.0
    %2629 = vmatpush1.msra.mxu0 0.0
    %2630 = vmatprep.subr.mxu0 0.0
    %2631 = vmatpush1.msra.mxu0 0.0
    %2632 = vmatprep.subr.mxu0 0.0
    %2633 = vmatpush1.msra.mxu0 0.0
    %2634 = vmatprep.subr.mxu0 0.0
    %2635 = vmatpush1.msra.mxu0 0.0
    %2636 = vmatprep.subr.mxu0 0.0
    %2637 = vmatpush1.msra.mxu0 0.0
    %2638 = vmatprep.subr.mxu0 0.0
    %2639 = vmatpush1.msra.mxu0 0.0
    %2640 = vmatprep.subr.mxu0 0.0
    %2641 = vmatpush1.msra.mxu0 0.0
    %2642 = vmatprep.subr.mxu0 0.0
    %2643 = vmatpush1.msra.mxu0 0.0
    %2644 = vmatprep.subr.mxu0 0.0
    %2645 = vmatpush1.msra.mxu0 0.0
    %2646 = vmatprep.subr.mxu0 0.0
    %2647 = vmatpush1.msra.mxu0 0.0
    %2648 = vmatprep.subr.mxu0 0.0
    %2649 = vmatpush1.msra.mxu0 0.0
    %2650 = vmatprep.subr.mxu0 0.0
    %2651 = vmatpush1.msra.mxu0 0.0
    %2652 = vmatprep.subr.mxu0 0.0
    %2653 = vmatpush1.msra.mxu0 0.0
    %2654 = vmatprep.subr.mxu0 0.0
    %2655 = vmatpush1.msra.mxu0 0.0
    %2656 = vmatprep.subr.mxu0 0.0
    %2657 = vmatpush1.msra.mxu0 0.0
    %2658 = vmatprep.subr.mxu0 0.0
    %2659 = vmatpush1.msra.mxu0 0.0
    %2660 = vmatprep.subr.mxu0 0.0
    %2661 = vmatpush1.msra.mxu0 0.0
    %2662 = vmatprep.subr.mxu0 0.0
    %2663 = vmatpush1.msra.mxu0 0.0
    %2664 = vmatprep.mubr.f32.mxu0 0.0
    %2665 = vmatmul.mubr.f32.gmra.mrb[0].mxu0 %v127
    %v2666 = vpop.f32.mrb[0].mxu0
    %v2667 = vadd.f32 0.0, %v2666
    %v2668 = vpop.f32.mrb[0].mxu0
    %2669 = vmatprep.mubr.f32.mxu0 0.0
    %2670 = vmatmul.mubr.f32.gmra.mrb[0].mxu0 %v130
    %v2671 = vpop.f32.mrb[0].mxu0
    %v2672 = vadd.f32 0.0, %v2671
    %v2673 = vpop.f32.mrb[0].mxu0
    %2674 = vdwg.mxu0
    %v2675 = vtanh.pop %v2667
    %v2676 = vtanh.pop %v2672
    %v2677 = vld [vmem:[%s9] sm:$0x1]
    %v2679 = vlaneseq
    %v2680 = vshrl.u32 %v2679, 7
    %v2681 = vsub.s32 0, %v2680
    %v2682 = vrot.slane %v2677, %v2681
    %v2684 = vmul.f32 %v2675, %v2682
    %v2685 = vmul.f32 %v2676, %v2682
    %v2686 = vsel %vm213, %v2684, 0.0
    %2687 = vadd.xlane.f32.xlu0 %v2686
    %v2688 = vpop.xlane.xlu0 %2687
    %v2689 = vsel %vm213, %v2685, 0.0
    %2690 = vadd.xlane.f32.xlu0 %v2689
    %v2691 = vpop.xlane.xlu0 %2690
    %v2692 = vlaneseq
    %v2693 = vand.u32 %v2692, 127
    %2694 = vset.pattern.permute.xlu0 0
    %2695 = vperm.xlu0 %2694, %v107
    %v2696 = vpop.permute.xlu0 %2695
    %vm2697 = vcmp.ge.s32.totalorder %v2693, %v2696
    %v2700 = vlaneseq
    %v2701 = vshrl.u32 %v2700, 7
    %v2702 = vsub.s32 %v2693, %v2701
    %v2703 = vrot.slane %v2688, %v2702
    %v2704 = vlaneseq
    %v2705 = vshrl.u32 %v2704, 7
    %v2706 = vsub.s32 %v2693, %v2705
    %v2707 = vrot.slane %v2691, %v2706
    %v2708 = vsel %vm485, %v2707, %v2703
    %v2710 = vsel %vm2697, -1e+30, %v2708
    %vm2711 = vcmask 58368
    %v2712 = vsel %vm2711, %v2710, -inf
    %2713 = vmax.xlane.f32.xlu0 %v2712
    %v2714 = vpop.xlane.xlu0 %2713
    %v2715 = vsub.f32 %v2710, %v2714
    %v2716 = vmul.f32 %v2715, 1.442695
    %v2717 = vpow.pop %v2716
    %v2718 = vsel %vm2711, %v2717, 0.0
    %2719 = vadd.xlane.f32.xlu0 %v2718
    %v2720 = vpop.xlane.xlu0 %2719
    %v2721 = vrcp.pop %v2720
    %v2722 = vmul.f32 %v2717, %v2721
    %2723 = vst.msk [vmem:[#allocation11] sm:$0x3] %vm2711, %v2722
    %v2726 = vunpack.c.l.s4 1966171168
    %v2727 = vunpack.c.0.s8 %v2726
    %v2728 = vlaneseq
    %v2729 = vshrl.u32 %v2728, 7
    %v2730 = vsub.s32 %v2727, %v2729
    %v2731 = vrot.slane %v2722, %v2730
    %v2732 = vcombine.high %v2731, %v2731
    %v2734 = vunpack.c.l.s4 1966171168
    %v2735 = vunpack.c.0.s8 %v2734
    %v2736 = vlaneseq
    %v2737 = vshrl.u32 %v2736, 7
    %v2738 = vsub.s32 %v2735, %v2737
    %v2739 = vrot.slane %v2731, %v2738
    %v2741 = vunpack.c.l.s4 1966171168
    %v2742 = vunpack.c.0.s8 %v2741
    %v2743 = vlaneseq
    %v2744 = vshrl.u32 %v2743, 7
    %v2745 = vsub.s32 %v2742, %v2744
    %v2746 = vrot.slane %v2732, %v2745
    %vm2747 = vcmask 64512
    %v2748 = vsel %vm2747, %v2739, 0
    %2750 = vmatprep.subr.mxu0 0.0
    %2751 = vmatpush1.msra.mxu0 %v105
    %2752 = vmatprep.subr.mxu0 0.0
    %2753 = vmatpush1.msra.mxu0 0.0
    %2754 = vmatprep.subr.mxu0 0.0
    %2755 = vmatpush1.msra.mxu0 0.0
    %2756 = vmatprep.subr.mxu0 0.0
    %2757 = vmatpush1.msra.mxu0 0.0
    %2758 = vmatprep.subr.mxu0 0.0
    %2759 = vmatpush1.msra.mxu0 0.0
    %2760 = vmatprep.subr.mxu0 0.0
    %2761 = vmatpush1.msra.mxu0 0.0
    %2762 = vmatprep.subr.mxu0 0.0
    %2763 = vmatpush1.msra.mxu0 0.0
    %2764 = vmatprep.subr.mxu0 0.0
    %2765 = vmatpush1.msra.mxu0 0.0
    %2766 = vmatprep.subr.mxu0 0.0
    %2767 = vmatpush1.msra.mxu0 0.0
    %2768 = vmatprep.subr.mxu0 0.0
    %2769 = vmatpush1.msra.mxu0 0.0
    %2770 = vmatprep.subr.mxu0 0.0
    %2771 = vmatpush1.msra.mxu0 0.0
    %2772 = vmatprep.subr.mxu0 0.0
    %2773 = vmatpush1.msra.mxu0 0.0
    %2774 = vmatprep.subr.mxu0 0.0
    %2775 = vmatpush1.msra.mxu0 0.0
    %2776 = vmatprep.subr.mxu0 0.0
    %2777 = vmatpush1.msra.mxu0 0.0
    %2778 = vmatprep.subr.mxu0 0.0
    %2779 = vmatpush1.msra.mxu0 0.0
    %2780 = vmatprep.subr.mxu0 0.0
    %2781 = vmatpush1.msra.mxu0 0.0
    %2782 = vmatprep.subr.mxu0 0.0
    %2783 = vmatpush1.msra.mxu0 0.0
    %2784 = vmatprep.subr.mxu0 0.0
    %2785 = vmatpush1.msra.mxu0 0.0
    %2786 = vmatprep.subr.mxu0 0.0
    %2787 = vmatpush1.msra.mxu0 0.0
    %2788 = vmatprep.subr.mxu0 0.0
    %2789 = vmatpush1.msra.mxu0 0.0
    %2790 = vmatprep.subr.mxu0 0.0
    %2791 = vmatpush1.msra.mxu0 0.0
    %2792 = vmatprep.subr.mxu0 0.0
    %2793 = vmatpush1.msra.mxu0 0.0
    %2794 = vmatprep.subr.mxu0 0.0
    %2795 = vmatpush1.msra.mxu0 0.0
    %2796 = vmatprep.subr.mxu0 0.0
    %2797 = vmatpush1.msra.mxu0 0.0
    %2798 = vmatprep.subr.mxu0 0.0
    %2799 = vmatpush1.msra.mxu0 0.0
    %2800 = vmatprep.subr.mxu0 0.0
    %2801 = vmatpush1.msra.mxu0 0.0
    %2802 = vmatprep.subr.mxu0 0.0
    %2803 = vmatpush1.msra.mxu0 0.0
    %2804 = vmatprep.subr.mxu0 0.0
    %2805 = vmatpush1.msra.mxu0 0.0
    %2806 = vmatprep.subr.mxu0 0.0
    %2807 = vmatpush1.msra.mxu0 0.0
    %2808 = vmatprep.subr.mxu0 0.0
    %2809 = vmatpush1.msra.mxu0 0.0
    %2810 = vmatprep.subr.mxu0 0.0
    %2811 = vmatpush1.msra.mxu0 0.0
    %2812 = vmatprep.subr.mxu0 0.0
    %2813 = vmatpush1.msra.mxu0 0.0
    %2814 = vmatprep.mubr.f32.mxu0 0.0
    %2815 = vmatmul.mubr.f32.gmra.mrb[0].mxu0 %v2748
    %v2816 = vpop.f32.mrb[0].mxu0
    %v2817 = vadd.f32 0.0, %v2816
    %v2818 = vpop.f32.mrb[0].mxu0
    %2819 = vdwg.mxu0
    %v2820 = vsel %vm2747, %v2746, 0
    %2822 = vmatprep.subr.mxu0 0.0
    %2823 = vmatpush1.msra.mxu0 %v106
    %2824 = vmatprep.subr.mxu0 0.0
    %2825 = vmatpush1.msra.mxu0 0.0
    %2826 = vmatprep.subr.mxu0 0.0
    %2827 = vmatpush1.msra.mxu0 0.0
    %2828 = vmatprep.subr.mxu0 0.0
    %2829 = vmatpush1.msra.mxu0 0.0
    %2830 = vmatprep.subr.mxu0 0.0
    %2831 = vmatpush1.msra.mxu0 0.0
    %2832 = vmatprep.subr.mxu0 0.0
    %2833 = vmatpush1.msra.mxu0 0.0
    %2834 = vmatprep.subr.mxu0 0.0
    %2835 = vmatpush1.msra.mxu0 0.0
    %2836 = vmatprep.subr.mxu0 0.0
    %2837 = vmatpush1.msra.mxu0 0.0
    %2838 = vmatprep.subr.mxu0 0.0
    %2839 = vmatpush1.msra.mxu0 0.0
    %2840 = vmatprep.subr.mxu0 0.0
    %2841 = vmatpush1.msra.mxu0 0.0
    %2842 = vmatprep.subr.mxu0 0.0
    %2843 = vmatpush1.msra.mxu0 0.0
    %2844 = vmatprep.subr.mxu0 0.0
    %2845 = vmatpush1.msra.mxu0 0.0
    %2846 = vmatprep.subr.mxu0 0.0
    %2847 = vmatpush1.msra.mxu0 0.0
    %2848 = vmatprep.subr.mxu0 0.0
    %2849 = vmatpush1.msra.mxu0 0.0
    %2850 = vmatprep.subr.mxu0 0.0
    %2851 = vmatpush1.msra.mxu0 0.0
    %2852 = vmatprep.subr.mxu0 0.0
    %2853 = vmatpush1.msra.mxu0 0.0
    %2854 = vmatprep.subr.mxu0 0.0
    %2855 = vmatpush1.msra.mxu0 0.0
    %2856 = vmatprep.subr.mxu0 0.0
    %2857 = vmatpush1.msra.mxu0 0.0
    %2858 = vmatprep.subr.mxu0 0.0
    %2859 = vmatpush1.msra.mxu0 0.0
    %2860 = vmatprep.subr.mxu0 0.0
    %2861 = vmatpush1.msra.mxu0 0.0
    %2862 = vmatprep.subr.mxu0 0.0
    %2863 = vmatpush1.msra.mxu0 0.0
    %2864 = vmatprep.subr.mxu0 0.0
    %2865 = vmatpush1.msra.mxu0 0.0
    %2866 = vmatprep.subr.mxu0 0.0
    %2867 = vmatpush1.msra.mxu0 0.0
    %2868 = vmatprep.subr.mxu0 0.0
    %2869 = vmatpush1.msra.mxu0 0.0
    %2870 = vmatprep.subr.mxu0 0.0
    %2871 = vmatpush1.msra.mxu0 0.0
    %2872 = vmatprep.subr.mxu0 0.0
    %2873 = vmatpush1.msra.mxu0 0.0
    %2874 = vmatprep.subr.mxu0 0.0
    %2875 = vmatpush1.msra.mxu0 0.0
    %2876 = vmatprep.subr.mxu0 0.0
    %2877 = vmatpush1.msra.mxu0 0.0
    %2878 = vmatprep.subr.mxu0 0.0
    %2879 = vmatpush1.msra.mxu0 0.0
    %2880 = vmatprep.subr.mxu0 0.0
    %2881 = vmatpush1.msra.mxu0 0.0
    %2882 = vmatprep.subr.mxu0 0.0
    %2883 = vmatpush1.msra.mxu0 0.0
    %2884 = vmatprep.subr.mxu0 0.0
    %2885 = vmatpush1.msra.mxu0 0.0
    %2886 = vmatprep.mubr.f32.mxu0 0.0
    %2887 = vmatmul.mubr.f32.gmra.mrb[0].mxu0 %v2820
    %v2888 = vpop.f32.mrb[0].mxu0
    %v2889 = vadd.f32 0.0, %v2888
    %v2890 = vpop.f32.mrb[0].mxu0
    %2891 = vdwg.mxu0
    %v2892 = vld [vmem:[%s10] sm:$0xff]
    %v2893 = vld [vmem:[%s10 + $0x8] sm:$0xff]
    %v2894 = vld [vmem:[%s10 + $0x10] sm:$0xff]
    %v2895 = vld [vmem:[%s10 + $0x18] sm:$0xff]
    %v2896 = vld [vmem:[%s11] sm:$0x1]
    %v2898 = vlaneseq
    %v2899 = vshrl.u32 %v2898, 7
    %v2900 = vsub.s32 0, %v2899
    %v2901 = vrot.slane %v2896, %v2900
    %v2905 = vrot.slane %v2889, 7
    %v2906 = vsel %vm485, %v2905, %v2817
    %v2907 = vsel %vm125, %v2906, 0
    %2909 = vmatprep.subr.mxu0 0.0
    %2910 = vmatpush1.msra.mxu0 %v2892
    %2911 = vmatprep.subr.mxu0 0.0
    %2912 = vmatpush1.msra.mxu0 %v2893
    %2913 = vmatprep.subr.mxu0 0.0
    %2914 = vmatpush1.msra.mxu0 %v2894
    %2915 = vmatprep.subr.mxu0 0.0
    %2916 = vmatpush1.msra.mxu0 %v2895
    %2917 = vmatprep.subr.mxu0 0.0
    %2918 = vmatpush1.msra.mxu0 0.0
    %2919 = vmatprep.subr.mxu0 0.0
    %2920 = vmatpush1.msra.mxu0 0.0
    %2921 = vmatprep.subr.mxu0 0.0
    %2922 = vmatpush1.msra.mxu0 0.0
    %2923 = vmatprep.subr.mxu0 0.0
    %2924 = vmatpush1.msra.mxu0 0.0
    %2925 = vmatprep.subr.mxu0 0.0
    %2926 = vmatpush1.msra.mxu0 0.0
    %2927 = vmatprep.subr.mxu0 0.0
    %2928 = vmatpush1.msra.mxu0 0.0
    %2929 = vmatprep.subr.mxu0 0.0
    %2930 = vmatpush1.msra.mxu0 0.0
    %2931 = vmatprep.subr.mxu0 0.0
    %2932 = vmatpush1.msra.mxu0 0.0
    %2933 = vmatprep.subr.mxu0 0.0
    %2934 = vmatpush1.msra.mxu0 0.0
    %2935 = vmatprep.subr.mxu0 0.0
    %2936 = vmatpush1.msra.mxu0 0.0
    %2937 = vmatprep.subr.mxu0 0.0
    %2938 = vmatpush1.msra.mxu0 0.0
    %2939 = vmatprep.subr.mxu0 0.0
    %2940 = vmatpush1.msra.mxu0 0.0
    %2941 = vmatprep.subr.mxu0 0.0
    %2942 = vmatpush1.msra.mxu0 0.0
    %2943 = vmatprep.subr.mxu0 0.0
    %2944 = vmatpush1.msra.mxu0 0.0
    %2945 = vmatprep.subr.mxu0 0.0
    %2946 = vmatpush1.msra.mxu0 0.0
    %2947 = vmatprep.subr.mxu0 0.0
    %2948 = vmatpush1.msra.mxu0 0.0
    %2949 = vmatprep.subr.mxu0 0.0
    %2950 = vmatpush1.msra.mxu0 0.0
    %2951 = vmatprep.subr.mxu0 0.0
    %2952 = vmatpush1.msra.mxu0 0.0
    %2953 = vmatprep.subr.mxu0 0.0
    %2954 = vmatpush1.msra.mxu0 0.0
    %2955 = vmatprep.subr.mxu0 0.0
    %2956 = vmatpush1.msra.mxu0 0.0
    %2957 = vmatprep.subr.mxu0 0.0
    %2958 = vmatpush1.msra.mxu0 0.0
    %2959 = vmatprep.subr.mxu0 0.0
    %2960 = vmatpush1.msra.mxu0 0.0
    %2961 = vmatprep.subr.mxu0 0.0
    %2962 = vmatpush1.msra.mxu0 0.0
    %2963 = vmatprep.subr.mxu0 0.0
    %2964 = vmatpush1.msra.mxu0 0.0
    %2965 = vmatprep.subr.mxu0 0.0
    %2966 = vmatpush1.msra.mxu0 0.0
    %2967 = vmatprep.subr.mxu0 0.0
    %2968 = vmatpush1.msra.mxu0 0.0
    %2969 = vmatprep.subr.mxu0 0.0
    %2970 = vmatpush1.msra.mxu0 0.0
    %2971 = vmatprep.subr.mxu0 0.0
    %2972 = vmatpush1.msra.mxu0 0.0
    %2973 = vmatprep.mubr.f32.mxu0 0.0
    %2974 = vmatmul.mubr.f32.gmra.mrb[0].mxu0 %v2907
    %v2975 = vpop.f32.mrb[0].mxu0
    %v2976 = vadd.f32 %v2901, %v2975
    %v2977 = vpop.f32.mrb[0].mxu0
    %2978 = vdwg.mxu0
    %v2979 = vxor.u32 %v2976, 2147483648
    %v2980 = vmul.f32 %v2979, 1.442695
    %v2981 = vpow.pop %v2980
    %v2982 = vadd.f32 %v2981, 1.0
    %v2983 = vrcp.pop %v2982
    %v2984 = vmul.f32 1.0, %v2983
    %vm2985 = vcmask 254976
    %2986 = vst.msk [vmem:[#allocation13] sm:$0x3] %vm2985, %v2984
    %v2987 = vadd.f32 %v2595, %v2984
    %v2988 = vsel %vm2985, %v2987, 0.0
    %2989 = vadd.xlane.f32.xlu0 %v2988
    %v2990 = vpop.xlane.xlu0 %2989
    %v2991 = vrcp.pop 32.0
    %v2992 = vmul.f32 %v2990, %v2991
    %v2993 = vsub.f32 %v2987, %v2992
    %v2994 = vmul.f32 %v2993, %v2993
    %v2995 = vsel %vm2985, %v2994, 0.0
    %2996 = vadd.xlane.f32.xlu0 %v2995
    %v2997 = vpop.xlane.xlu0 %2996
    %v2998 = vmul.f32 %v2997, %v2991
    %v2999 = vadd.f32 %v2998, 1e-05
    %v3000 = vrsqrt.pop %v2999
    %v3001 = vmul.f32 %v2993, %v3000
    %v3002 = vld [vmem:[%s12] sm:$0x1]
    %v3004 = vlaneseq
    %v3005 = vshrl.u32 %v3004, 7
    %v3006 = vsub.s32 0, %v3005
    %v3007 = vrot.slane %v3002, %v3006
    %v3009 = vmul.f32 %v3001, %v3007
    %v3010 = vld [vmem:[%s13] sm:$0x1]
    %v3012 = vlaneseq
    %v3013 = vshrl.u32 %v3012, 7
    %v3014 = vsub.s32 0, %v3013
    %v3015 = vrot.slane %v3010, %v3014
    %v3017 = vadd.f32 %v3009, %v3015
    %v3018 = vmul.f32 %v3017, %v3017
    %v3019 = vsel %vm2985, %v3018, 0.0
    %3020 = vadd.xlane.f32.xlu0 %v3019
    %v3021 = vpop.xlane.xlu0 %3020
    %v3022 = vrsqrt.pop %v3021
    %v3023 = vmul.f32 %v3021, %v3022
    %vm3024 = vcmp.eq.f32.partialorder %v3021, inf
    %v3025 = vsel %vm3024, %v3021, %v3023
    %vm3026 = vcmp.eq.f32.partialorder %v3021, 0.0
    %v3027 = vand.u32 %v3021, 2147483648
    %v3028 = vsel %vm3026, %v3027, %v3025
    %v3029 = vrcp.pop %v3028
    %v3030 = vmul.f32 %v3017, %v3029
    %3031 = vst.msk [vmem:[#allocation10] sm:$0x3] %vm2985, %v3030
    // Predicated region
    $region74: #{tpu_custom_call.1} parent=1 // pred_check
      _
    $region75: #{tpu_custom_call.1} parent=1 // pred_check_branch
      %3033 = sbr.rel (0) target = $region77
    $region76: #{tpu_custom_call.1} parent=1 // pred_region
      %s3035 = ssub.s32 32, 32
      %3036 = vsyncadd [#allocation4], %s3035
      %s3038 = sshll.u32 [#allocation10], 4
      %s3039 = int_to_ptr.vmem [resolvable:$true] %s3038
      %3041 = dma.vmem_to_hbm [thread:$0]  %s3039, 32, %s14, [#allocation4]
    $region77: #{tpu_custom_call.1} parent=1 // pred_fallthru
      _
    // Predicated region
    $region78: #{tpu_custom_call.1} parent=1 // pred_check
      _
    $region79: #{tpu_custom_call.1} parent=1 // pred_check_branch
      %3043 = sbr.rel (0) target = $region81
    $region80: #{tpu_custom_call.1} parent=1 // pred_region
      %s3045 = ssub.s32 32, 32
      %3046 = vsyncadd [#allocation12], %s3045
      %s3048 = sshll.u32 [#allocation11], 4
      %s3049 = int_to_ptr.vmem [resolvable:$true] %s3048
      %3051 = dma.vmem_to_hbm [thread:$0]  %s3049, 32, %s15, [#allocation12]
    $region81: #{tpu_custom_call.1} parent=1 // pred_fallthru
      _
    // Predicated region
    $region82: #{tpu_custom_call.1} parent=1 // pred_check
      _
    $region83: #{tpu_custom_call.1} parent=1 // pred_check_branch
      %3053 = sbr.rel (0) target = $region85
    $region84: #{tpu_custom_call.1} parent=1 // pred_region
      %s3055 = ssub.s32 32, 32
      %3056 = vsyncadd [#allocation12], %s3055
      %s3058 = sshll.u32 [#allocation13], 4
      %s3059 = int_to_ptr.vmem [resolvable:$true] %s3058
      %3061 = dma.vmem_to_hbm [thread:$0]  %s3059, 32, %s16, [#allocation12]
    $region85: #{tpu_custom_call.1} parent=1 // pred_fallthru
      _
    // Predicated region
    $region86: #{tpu_custom_call.1} parent=1 // pred_check
      _
    $region87: #{tpu_custom_call.1} parent=1 // pred_check_branch
      %3063 = sbr.rel (0) target = $region89
    $region88: #{tpu_custom_call.1} parent=1 // pred_region
      %3064 = dma.done [#allocation4], 32
    $region89: #{tpu_custom_call.1} parent=1 // pred_fallthru
      _
    // Predicated region
    $region90: #{tpu_custom_call.1} parent=1 // pred_check
      _
    $region91: #{tpu_custom_call.1} parent=1 // pred_check_branch
      %3066 = sbr.rel (0) target = $region93
    $region92: #{tpu_custom_call.1} parent=1 // pred_region
      %3067 = dma.done [#allocation12], 32
    $region93: #{tpu_custom_call.1} parent=1 // pred_fallthru
      _
    // Predicated region
    $region94: #{tpu_custom_call.1} parent=1 // pred_check
      _
    $region95: #{tpu_custom_call.1} parent=1 // pred_check_branch
      %3069 = sbr.rel (0) target = $region97
    $region96: #{tpu_custom_call.1} parent=1 // pred_region
      %3070 = dma.done [#allocation12], 32
    $region97: #{tpu_custom_call.1} parent=1 // pred_fallthru
      _
    %3071 = vsyncpa [#allocation3], 1
    %3072 = vsyncpa [#allocation6], 1
    %3073 = vsyncpa [#allocation9], 1
    %3074 = vsyncpa [#allocation4], 1
    %3075 = vsyncpa [#allocation12], 1

</llo_original>
